<compile_context>
chip_gen: v5e
topology: v5e:2x2
jax: 0.10.0
libtpu: 0.0.40
codegen_flags: <defaults>
</compile_context>

<pallas_src>
import functools

import jax
import jax.numpy as jnp
import numpy as np
from jax import lax
from jax.experimental import pallas as pl
from jax.experimental.pallas import tpu as pltpu

H, W = 85, 3                 # spatial dims implied by the 85*3*32 flatten
HP = H + 2                   # conv input rows incl. one zero-pad row each side
C1, C2 = 16, 32              # conv channels
WC1, WC2 = W * C1, W * C2    # 48, 96: packed (w, c) lane layouts
FC1_IN = H * W * C2          # 8160
FC1_OUT = 128

BT = 64                      # batch tile (must be a multiple of 8)


def _round_up(x, m):
    return (x + m - 1) // m * m


# ---------------------------------------------------------------------------
# Fused Pallas kernel: conv1 + ReLU + conv2 + ReLU + fc1 + ReLU + fc2
# ---------------------------------------------------------------------------
def mycnn_kernel(x_ref, w1t_ref, b1t_ref, w2t_ref, b2t_ref,
                 w1p_ref, bfc1_ref, wfc2_ref, bfc2_ref,
                 o_ref, h1p_ref, act_ref, *, bt):
    """One batch tile of `bt` samples, rows ordered (h, b).

    x_ref:    (87, bt, 3)      input, H zero-padded by (1, 1)
    w1t_ref:  (3, 3, 48)       conv1 per-kh matrices (width taps + pad folded)
    b1t_ref:  (1, 48)
    w2t_ref:  (3, 48, 96)      conv2 per-kh matrices (width taps + pad folded)
    b2t_ref:  (1, 96)
    w1p_ref:  (85, 96, 128)    fc1 weight, NCHW-flatten-permuted, split per h
    bfc1_ref: (1, 128)
    wfc2_ref: (1, 128)         fc2 weight as a row (VPU reduction)
    bfc2_ref: (1, 1)
    o_ref:    (bt, 1)
    h1p_ref:  (87*bt, 48)      VMEM scratch: conv1 activation + H zero pads
    act_ref:  (85*bt, 96)      VMEM scratch: conv2 activation (never hits HBM)
    """
    f32 = jnp.float32

    # ---- conv1 (1 -> 16) + ReLU: 3 matmuls, K=3, N=48, rows (h, b) --------
    xv = x_ref[...].reshape(HP * bt, W)                       # layout-preserving
    acc1 = jnp.zeros((H * bt, WC1), f32)
    for kh in range(3):                                       # slab-aligned slices
        acc1 = acc1 + jnp.dot(xv[kh * bt:(kh + H) * bt, :], w1t_ref[kh],
                              preferred_element_type=f32)
    h1 = jnp.maximum(acc1 + b1t_ref[...], 0.0)                # (85*bt, 48)

    # H zero-padding for conv2: one zero slab above and below (re-written
    # every grid step so the kernel is correct on megacore parts too).
    zero_slab = jnp.zeros((bt, WC1), f32)
    h1p_ref[0:bt, :] = zero_slab
    h1p_ref[bt:(H + 1) * bt, :] = h1
    h1p_ref[(H + 1) * bt:HP * bt, :] = zero_slab

    # ---- conv2 (16 -> 32) + ReLU: 3 matmuls, K=48, N=96 --------------------
    acc2 = jnp.zeros((H * bt, WC2), f32)
    for kh in range(3):
        acc2 = acc2 + jnp.dot(h1p_ref[kh * bt:(kh + H) * bt, :], w2t_ref[kh],
                              preferred_element_type=f32)
    act_ref[...] = jnp.maximum(acc2 + b2t_ref[...], 0.0)      # (85*bt, 96)

    # ---- fc1 (8160 -> 128) + ReLU: 85 resident (96,128) matmuls over h -----
    def fc1_step(h, acc):
        row0 = pl.multiple_of(h * bt, bt)
        a = act_ref[pl.ds(row0, bt), :]                       # (bt, 96), aligned
        return acc + jnp.dot(a, w1p_ref[h], preferred_element_type=f32)

    accf = lax.fori_loop(0, H, fc1_step, jnp.zeros((bt, FC1_OUT), f32))
    hfc = jnp.maximum(accf + bfc1_ref[...], 0.0)              # (bt, 128)
    # TODO(synk): nn.Dropout(p=0.5) train-mode masking not reproduced; this is
    # eval-mode (identity) semantics.

    # ---- fc2 (128 -> 1) on the VPU/XLU (MXU would use 1 of 128+ columns) ----
    o_ref[...] = (jnp.sum(hfc * wfc2_ref[...], axis=-1, keepdims=True)
                  + bfc2_ref[...])


# ---------------------------------------------------------------------------
# pallas_call wrapper
# ---------------------------------------------------------------------------
def fused_forward(x_hbm, prep, *, bt):
    """x_hbm: (87, n_pad, 3) f32, n_pad a multiple of bt -> (n_pad, 1)."""
    n_pad = x_hbm.shape[1]
    assert n_pad % bt == 0 and bt % 8 == 0
    kernel = functools.partial(mycnn_kernel, bt=bt)
    return pl.pallas_call(
        kernel,
        out_shape=jax.ShapeDtypeStruct((n_pad, 1), jnp.float32),
        grid=(n_pad // bt,),
        in_specs=[
            pl.BlockSpec((HP, bt, W), lambda i: (0, i, 0)),        # input tile
            pl.BlockSpec((3, W, WC1), lambda i: (0, 0, 0)),        # resident
            pl.BlockSpec((1, WC1), lambda i: (0, 0)),              # resident
            pl.BlockSpec((3, WC1, WC2), lambda i: (0, 0, 0)),      # resident
            pl.BlockSpec((1, WC2), lambda i: (0, 0)),              # resident
            pl.BlockSpec((H, WC2, FC1_OUT), lambda i: (0, 0, 0)),  # fc1 resident
            pl.BlockSpec((1, FC1_OUT), lambda i: (0, 0)),          # resident
            pl.BlockSpec((1, FC1_OUT), lambda i: (0, 0)),          # resident
            pl.BlockSpec((1, 1), lambda i: (0, 0)),                # resident
        ],
        out_specs=pl.BlockSpec((bt, 1), lambda i: (i, 0)),
        scratch_shapes=[
            pltpu.VMEM((HP * bt, WC1), jnp.float32),   # padded conv1 activation
            pltpu.VMEM((H * bt, WC2), jnp.float32),    # conv2 activation slab
        ],
        compiler_params=pltpu.CompilerParams(
            dimension_semantics=("parallel",),
            vmem_limit_bytes=40 * 1024 * 1024),
    )(x_hbm, prep["w1t"], prep["b1t"], prep["w2t"], prep["b2t"],
      prep["w_fc1p"], prep["b_fc1"], prep["w_fc2r"], prep["b_fc2"])


# ---------------------------------------------------------------------------
# One-time parameter repack (host side, outside the hot path)
# ---------------------------------------------------------------------------
def prepare_params(params):
    w1 = np.asarray(params["w_conv1"], np.float32)       # (3,3,1,16) HWIO
    w2 = np.asarray(params["w_conv2"], np.float32)       # (3,3,16,32) HWIO
    w1t = np.zeros((3, W, WC1), np.float32)
    w2t = np.zeros((3, WC1, WC2), np.float32)
    for kh in range(3):
        for wo in range(W):            # output width position
            for wi in range(W):        # input width position (unpadded data)
                kw = wi - wo + 1
                if 0 <= kw < 3:        # width taps outside the data stay 0
                    w1t[kh, wi, wo * C1:(wo + 1) * C1] = w1[kh, kw, 0, :]
                    w2t[kh, wi * C1:(wi + 1) * C1,
                        wo * C2:(wo + 1) * C2] = w2[kh, kw]

    # Permute fc1 rows so the kernel's (h, w, c) feature order matches torch's
    # x.view(-1, 85*3*32) NCHW (c, h, w) flatten, then split per h position.
    wfc1 = np.asarray(params["w_fc1"], np.float32)        # (8160, 128)
    h_i = np.arange(H)[:, None, None]
    w_i = np.arange(W)[None, :, None]
    c_i = np.arange(C2)[None, None, :]
    src = (c_i * (H * W) + h_i * W + w_i).reshape(H, WC2)  # (85, 96)
    w1p = wfc1[src]                                        # (85, 96, 128)

    return {
        "w1t": jnp.asarray(w1t),
        "b1t": jnp.asarray(np.tile(np.asarray(params["b_conv1"]), W)
                           .reshape(1, WC1).astype(np.float32)),
        "w2t": jnp.asarray(w2t),
        "b2t": jnp.asarray(np.tile(np.asarray(params["b_conv2"]), W)
                           .reshape(1, WC2).astype(np.float32)),
        "w_fc1p": jnp.asarray(w1p),
        "b_fc1": params["b_fc1"].reshape(1, FC1_OUT),
        "w_fc2r": params["w_fc2"].reshape(1, FC1_OUT),
        "b_fc2": params["b_fc2"].reshape(1, 1),
    }


# ---------------------------------------------------------------------------
# Forward pass
# ---------------------------------------------------------------------------
def my_cnn_forward(x_nchw, prep):
    """Full MyCNN forward. x_nchw: (N, 1, 85, 3) float32 -> (N, 1)."""
    n = x_nchw.shape[0]
    bt = min(BT, _round_up(n, 8))
    n_pad = _round_up(n, bt)
    # (N,1,85,3) -> (85,N,3): (h, b) ordering; pad H by (1,1), batch once.
    x = jnp.transpose(x_nchw.reshape(n, H, W), (1, 0, 2))
    x = jnp.pad(x, ((1, 1), (0, n_pad - n), (0, 0)))         # (87, n_pad, 3)
    out = fused_forward(x, prep, bt=bt)                       # (n_pad, 1)
    return out[:n]


# ---------------------------------------------------------------------------
# Plain-JAX reference (torch-layout params, for correctness check)
# ---------------------------------------------------------------------------
def reference_forward(x_nchw, params):
    x = jnp.transpose(x_nchw, (0, 2, 3, 1))                   # NCHW -> NHWC
    for w, b in [(params["w_conv1"], params["b_conv1"]),
                 (params["w_conv2"], params["b_conv2"])]:
        x = lax.conv_general_dilated(
            x, w, window_strides=(1, 1), padding=((1, 1), (1, 1)),
            dimension_numbers=("NHWC", "HWIO", "NHWC"))
        x = jnp.maximum(x + b, 0.0)
    x = jnp.transpose(x, (0, 3, 1, 2)).reshape(x.shape[0], FC1_IN)
    h = jnp.maximum(x @ params["w_fc1"] + params["b_fc1"], 0.0)
    return h @ params["w_fc2"] + params["b_fc2"]


def init_params(key):
    ks = jax.random.split(key, 8)
    s = 0.1
    return {
        "w_conv1": s * jax.random.normal(ks[0], (3, 3, 1, C1), jnp.float32),
        "b_conv1": s * jax.random.normal(ks[1], (C1,), jnp.float32),
        "w_conv2": s * jax.random.normal(ks[2], (3, 3, C1, C2), jnp.float32),
        "b_conv2": s * jax.random.normal(ks[3], (C2,), jnp.float32),
        "w_fc1": s * jax.random.normal(ks[4], (FC1_IN, FC1_OUT), jnp.float32),
        "b_fc1": s * jax.random.normal(ks[5], (FC1_OUT,), jnp.float32),
        "w_fc2": s * jax.random.normal(ks[6], (FC1_OUT, 1), jnp.float32),
        "b_fc2": s * jax.random.normal(ks[7], (1,), jnp.float32),
    }


if __name__ == "__main__":
    key = jax.random.PRNGKey(0)
    k_x, k_p = jax.random.split(key)
    params = init_params(k_p)
    prep = prepare_params(params)                 # one-time host-side repack

    fwd = jax.jit(my_cnn_forward)
    ref_fwd = jax.jit(reference_forward)

    # Small primary test (batch=2, single tile with bt clamped to 8).
    batch = 2
    x = jax.random.normal(k_x, (batch, 1, H, W), jnp.float32)    # NCHW
    out = jax.block_until_ready(fwd(x, prep))
    ref = jax.block_until_ready(ref_fwd(x, params))
    np.testing.assert_allclose(np.asarray(out), np.asarray(ref),
                               rtol=1e-3, atol=1e-3)
    assert out.shape == (batch, 1)

    # Second check: full 64-sample tile, 2 grid steps, batch remainder.
    batch2 = 70
    x2 = jax.random.normal(jax.random.PRNGKey(1), (batch2, 1, H, W),
                           jnp.float32)
    out2 = jax.block_until_ready(fwd(x2, prep))
    ref2 = jax.block_until_ready(ref_fwd(x2, params))
    np.testing.assert_allclose(np.asarray(out2), np.asarray(ref2),
                               rtol=1e-3, atol=1e-3)
    assert out2.shape == (batch2, 1)

    print("KERNEL_OK")
</pallas_src>

<mosaic_0001>
module attributes {stable_mosaic.version = 11 : i64} {
  func.func @mycnn_kernel(%arg0: i32, %arg1: memref<87x8x3xf32, #tpu.memory_space<vmem>>, %arg2: memref<3x3x48xf32, #tpu.memory_space<vmem>>, %arg3: memref<1x48xf32, #tpu.memory_space<vmem>>, %arg4: memref<3x48x96xf32, #tpu.memory_space<vmem>>, %arg5: memref<1x96xf32, #tpu.memory_space<vmem>>, %arg6: memref<85x96x128xf32, #tpu.memory_space<vmem>>, %arg7: memref<1x128xf32, #tpu.memory_space<vmem>>, %arg8: memref<1x128xf32, #tpu.memory_space<vmem>>, %arg9: memref<1x1xf32, #tpu.memory_space<vmem>>, %arg10: memref<8x1xf32, #tpu.memory_space<vmem>>, %arg11: memref<696x48xf32, #tpu.memory_space<vmem>>, %arg12: memref<680x96xf32, #tpu.memory_space<vmem>>) attributes {dimension_semantics = [#tpu.dimension_semantics<parallel>], iteration_bounds = array<i64: 1>, scalar_prefetch = 0 : i64, scratch_operands = 2 : i64, tpu.core_type = #tpu.core_type<tc>, window_params = [{transform_indices = @transform_0, window_bounds = array<i64: 87, 8, 3>}, {pipeline_mode = #tpu.pipeline_mode<synchronous>, transform_indices = @transform_1, window_bounds = array<i64: 3, 3, 48>}, {pipeline_mode = #tpu.pipeline_mode<synchronous>, transform_indices = @transform_2, window_bounds = array<i64: 1, 48>}, {pipeline_mode = #tpu.pipeline_mode<synchronous>, transform_indices = @transform_3, window_bounds = array<i64: 3, 48, 96>}, {pipeline_mode = #tpu.pipeline_mode<synchronous>, transform_indices = @transform_4, window_bounds = array<i64: 1, 96>}, {pipeline_mode = #tpu.pipeline_mode<synchronous>, transform_indices = @transform_5, window_bounds = array<i64: 85, 96, 128>}, {pipeline_mode = #tpu.pipeline_mode<synchronous>, transform_indices = @transform_6, window_bounds = array<i64: 1, 128>}, {pipeline_mode = #tpu.pipeline_mode<synchronous>, transform_indices = @transform_7, window_bounds = array<i64: 1, 128>}, {pipeline_mode = #tpu.pipeline_mode<synchronous>, transform_indices = @transform_8, window_bounds = array<i64: 1, 1>}, {transform_indices = @transform_9, window_bounds = array<i64: 8, 1>}]} {
    %c0 = arith.constant 0 : index
    %c0_0 = arith.constant 0 : index
    %c0_1 = arith.constant 0 : index
    %0 = vector.load %arg1[%c0, %c0_0, %c0_1] : memref<87x8x3xf32, #tpu.memory_space<vmem>>, vector<87x8x3xf32>
    %1 = vector.shape_cast %0 : vector<87x8x3xf32> to vector<696x3xf32>
    %cst = arith.constant 0.000000e+00 : f32
    %2 = vector.broadcast %cst : f32 to vector<680x48xf32>
    %3 = vector.extract_strided_slice %1 {offsets = [0, 0], sizes = [680, 3], strides = [1, 1]} : vector<696x3xf32> to vector<680x3xf32>
    %c0_2 = arith.constant 0 : index
    %c0_3 = arith.constant 0 : index
    %c0_4 = arith.constant 0 : index
    %4 = vector.load %arg2[%c0_2, %c0_3, %c0_4] : memref<3x3x48xf32, #tpu.memory_space<vmem>>, vector<1x3x48xf32>
    %5 = vector.shape_cast %4 : vector<1x3x48xf32> to vector<3x48xf32>
    %cst_5 = arith.constant dense<0.000000e+00> : vector<680x48xf32>
    %6 = tpu.matmul %3, %5, %cst_5 {dimension_numbers = #tpu.dot_dimension_numbers<[1], [0], [0], [1], [0, 0, 1, 1], [], []>} : vector<680x3xf32>, vector<3x48xf32>, vector<680x48xf32> -> vector<680x48xf32>
    %7 = arith.addf %2, %6 : vector<680x48xf32>
    %8 = vector.extract_strided_slice %1 {offsets = [8, 0], sizes = [680, 3], strides = [1, 1]} : vector<696x3xf32> to vector<680x3xf32>
    %c1 = arith.constant 1 : index
    %c0_6 = arith.constant 0 : index
    %c0_7 = arith.constant 0 : index
    %9 = vector.load %arg2[%c1, %c0_6, %c0_7] : memref<3x3x48xf32, #tpu.memory_space<vmem>>, vector<1x3x48xf32>
    %10 = vector.shape_cast %9 : vector<1x3x48xf32> to vector<3x48xf32>
    %cst_8 = arith.constant dense<0.000000e+00> : vector<680x48xf32>
    %11 = tpu.matmul %8, %10, %cst_8 {dimension_numbers = #tpu.dot_dimension_numbers<[1], [0], [0], [1], [0, 0, 1, 1], [], []>} : vector<680x3xf32>, vector<3x48xf32>, vector<680x48xf32> -> vector<680x48xf32>
    %12 = arith.addf %7, %11 : vector<680x48xf32>
    %13 = vector.extract_strided_slice %1 {offsets = [16, 0], sizes = [680, 3], strides = [1, 1]} : vector<696x3xf32> to vector<680x3xf32>
    %c2 = arith.constant 2 : index
    %c0_9 = arith.constant 0 : index
    %c0_10 = arith.constant 0 : index
    %14 = vector.load %arg2[%c2, %c0_9, %c0_10] : memref<3x3x48xf32, #tpu.memory_space<vmem>>, vector<1x3x48xf32>
    %15 = vector.shape_cast %14 : vector<1x3x48xf32> to vector<3x48xf32>
    %cst_11 = arith.constant dense<0.000000e+00> : vector<680x48xf32>
    %16 = tpu.matmul %13, %15, %cst_11 {dimension_numbers = #tpu.dot_dimension_numbers<[1], [0], [0], [1], [0, 0, 1, 1], [], []>} : vector<680x3xf32>, vector<3x48xf32>, vector<680x48xf32> -> vector<680x48xf32>
    %17 = arith.addf %12, %16 : vector<680x48xf32>
    %c0_12 = arith.constant 0 : index
    %c0_13 = arith.constant 0 : index
    %18 = vector.load %arg3[%c0_12, %c0_13] : memref<1x48xf32, #tpu.memory_space<vmem>>, vector<1x48xf32>
    %19 = vector.broadcast %18 : vector<1x48xf32> to vector<680x48xf32>
    %20 = arith.addf %17, %19 : vector<680x48xf32>
    %cst_14 = arith.constant 0.000000e+00 : f32
    %21 = vector.broadcast %cst_14 : f32 to vector<680x48xf32>
    %22 = arith.maximumf %20, %21 : vector<680x48xf32>
    %cst_15 = arith.constant 0.000000e+00 : f32
    %23 = vector.broadcast %cst_15 : f32 to vector<8x48xf32>
    %c0_16 = arith.constant 0 : index
    %c0_17 = arith.constant 0 : index
    %24 = vector.load %arg11[%c0_16, %c0_17] : memref<696x48xf32, #tpu.memory_space<vmem>>, vector<8x48xf32>
    tpu.vector_store %arg11[%c0_16, %c0_17], %23 {strides = array<i32>} : memref<696x48xf32, #tpu.memory_space<vmem>>, vector<8x48xf32>,
    %c8 = arith.constant 8 : index
    %c0_18 = arith.constant 0 : index
    %25 = vector.load %arg11[%c8, %c0_18] : memref<696x48xf32, #tpu.memory_space<vmem>>, vector<680x48xf32>
    tpu.vector_store %arg11[%c8, %c0_18], %22 {strides = array<i32>} : memref<696x48xf32, #tpu.memory_space<vmem>>, vector<680x48xf32>,
    %c688 = arith.constant 688 : index
    %c0_19 = arith.constant 0 : index
    %26 = vector.load %arg11[%c688, %c0_19] : memref<696x48xf32, #tpu.memory_space<vmem>>, vector<8x48xf32>
    tpu.vector_store %arg11[%c688, %c0_19], %23 {strides = array<i32>} : memref<696x48xf32, #tpu.memory_space<vmem>>, vector<8x48xf32>,
    %cst_20 = arith.constant 0.000000e+00 : f32
    %27 = vector.broadcast %cst_20 : f32 to vector<680x96xf32>
    %c0_21 = arith.constant 0 : index
    %c0_22 = arith.constant 0 : index
    %28 = vector.load %arg11[%c0_21, %c0_22] : memref<696x48xf32, #tpu.memory_space<vmem>>, vector<680x48xf32>
    %c0_23 = arith.constant 0 : index
    %c0_24 = arith.constant 0 : index
    %c0_25 = arith.constant 0 : index
    %29 = vector.load %arg4[%c0_23, %c0_24, %c0_25] : memref<3x48x96xf32, #tpu.memory_space<vmem>>, vector<1x48x96xf32>
    %30 = vector.shape_cast %29 : vector<1x48x96xf32> to vector<48x96xf32>
    %cst_26 = arith.constant dense<0.000000e+00> : vector<680x96xf32>
    %31 = tpu.matmul %28, %30, %cst_26 {dimension_numbers = #tpu.dot_dimension_numbers<[1], [0], [0], [1], [0, 0, 1, 1], [], []>} : vector<680x48xf32>, vector<48x96xf32>, vector<680x96xf32> -> vector<680x96xf32>
    %32 = arith.addf %27, %31 : vector<680x96xf32>
    %c8_27 = arith.constant 8 : index
    %c0_28 = arith.constant 0 : index
    %33 = vector.load %arg11[%c8_27, %c0_28] : memref<696x48xf32, #tpu.memory_space<vmem>>, vector<680x48xf32>
    %c1_29 = arith.constant 1 : index
    %c0_30 = arith.constant 0 : index
    %c0_31 = arith.constant 0 : index
    %34 = vector.load %arg4[%c1_29, %c0_30, %c0_31] : memref<3x48x96xf32, #tpu.memory_space<vmem>>, vector<1x48x96xf32>
    %35 = vector.shape_cast %34 : vector<1x48x96xf32> to vector<48x96xf32>
    %cst_32 = arith.constant dense<0.000000e+00> : vector<680x96xf32>
    %36 = tpu.matmul %33, %35, %cst_32 {dimension_numbers = #tpu.dot_dimension_numbers<[1], [0], [0], [1], [0, 0, 1, 1], [], []>} : vector<680x48xf32>, vector<48x96xf32>, vector<680x96xf32> -> vector<680x96xf32>
    %37 = arith.addf %32, %36 : vector<680x96xf32>
    %c16 = arith.constant 16 : index
    %c0_33 = arith.constant 0 : index
    %38 = vector.load %arg11[%c16, %c0_33] : memref<696x48xf32, #tpu.memory_space<vmem>>, vector<680x48xf32>
    %c2_34 = arith.constant 2 : index
    %c0_35 = arith.constant 0 : index
    %c0_36 = arith.constant 0 : index
    %39 = vector.load %arg4[%c2_34, %c0_35, %c0_36] : memref<3x48x96xf32, #tpu.memory_space<vmem>>, vector<1x48x96xf32>
    %40 = vector.shape_cast %39 : vector<1x48x96xf32> to vector<48x96xf32>
    %cst_37 = arith.constant dense<0.000000e+00> : vector<680x96xf32>
    %41 = tpu.matmul %38, %40, %cst_37 {dimension_numbers = #tpu.dot_dimension_numbers<[1], [0], [0], [1], [0, 0, 1, 1], [], []>} : vector<680x48xf32>, vector<48x96xf32>, vector<680x96xf32> -> vector<680x96xf32>
    %42 = arith.addf %37, %41 : vector<680x96xf32>
    %c0_38 = arith.constant 0 : index
    %c0_39 = arith.constant 0 : index
    %43 = vector.load %arg5[%c0_38, %c0_39] : memref<1x96xf32, #tpu.memory_space<vmem>>, vector<1x96xf32>
    %44 = vector.broadcast %43 : vector<1x96xf32> to vector<680x96xf32>
    %45 = arith.addf %42, %44 : vector<680x96xf32>
    %cst_40 = arith.constant 0.000000e+00 : f32
    %46 = vector.broadcast %cst_40 : f32 to vector<680x96xf32>
    %47 = arith.maximumf %45, %46 : vector<680x96xf32>
    %c0_41 = arith.constant 0 : index
    %c0_42 = arith.constant 0 : index
    %48 = vector.load %arg12[%c0_41, %c0_42] : memref<680x96xf32, #tpu.memory_space<vmem>>, vector<680x96xf32>
    tpu.vector_store %arg12[%c0_41, %c0_42], %47 {strides = array<i32>} : memref<680x96xf32, #tpu.memory_space<vmem>>, vector<680x96xf32>,
    %cst_43 = arith.constant 0.000000e+00 : f32
    %49 = vector.broadcast %cst_43 : f32 to vector<8x128xf32>
    %c0_i32 = arith.constant 0 : i32
    %c85_i32 = arith.constant 85 : i32
    %50 = arith.addi %c0_i32, %c85_i32 : i32
    %c1_i32 = arith.constant 1 : i32
    %51 = scf.for %arg13 = %c0_i32 to %50 step %c1_i32 iter_args(%arg14 = %49) -> (vector<8x128xf32>)  : i32 {
      %c8_i32 = arith.constant 8 : i32
      %66 = arith.muli %arg13, %c8_i32 : i32
      %67 = tpu.assume_multiple %66, 8 : i32
      %68 = arith.index_cast %67 : i32 to index
      %c0_55 = arith.constant 0 : index
      %69 = vector.load %arg12[%68, %c0_55] : memref<680x96xf32, #tpu.memory_space<vmem>>, vector<8x96xf32>
      %70 = arith.index_cast %arg13 : i32 to index
      %c0_56 = arith.constant 0 : index
      %c0_57 = arith.constant 0 : index
      %71 = vector.load %arg6[%70, %c0_56, %c0_57] : memref<85x96x128xf32, #tpu.memory_space<vmem>>, vector<1x96x128xf32>
      %72 = vector.shape_cast %71 : vector<1x96x128xf32> to vector<96x128xf32>
      %cst_58 = arith.constant dense<0.000000e+00> : vector<8x128xf32>
      %73 = tpu.matmul %69, %72, %cst_58 {dimension_numbers = #tpu.dot_dimension_numbers<[1], [0], [0], [1], [0, 0, 1, 1], [], []>} : vector<8x96xf32>, vector<96x128xf32>, vector<8x128xf32> -> vector<8x128xf32>
      %74 = arith.addf %arg14, %73 : vector<8x128xf32>
      scf.yield %74 : vector<8x128xf32>
    }
    %c85_i32_44 = arith.constant 85 : i32
    %c0_45 = arith.constant 0 : index
    %c0_46 = arith.constant 0 : index
    %52 = vector.load %arg7[%c0_45, %c0_46] : memref<1x128xf32, #tpu.memory_space<vmem>>, vector<1x128xf32>
    %53 = vector.broadcast %52 : vector<1x128xf32> to vector<8x128xf32>
    %54 = arith.addf %51, %53 : vector<8x128xf32>
    %cst_47 = arith.constant 0.000000e+00 : f32
    %55 = vector.broadcast %cst_47 : f32 to vector<8x128xf32>
    %56 = arith.maximumf %54, %55 : vector<8x128xf32>
    %c0_48 = arith.constant 0 : index
    %c0_49 = arith.constant 0 : index
    %57 = vector.load %arg8[%c0_48, %c0_49] : memref<1x128xf32, #tpu.memory_space<vmem>>, vector<1x128xf32>
    %58 = vector.broadcast %57 : vector<1x128xf32> to vector<8x128xf32>
    %59 = arith.mulf %56, %58 : vector<8x128xf32>
    %cst_50 = arith.constant dense<0.000000e+00> : vector<8xf32>
    %60 = vector.multi_reduction <add>, %59, %cst_50 [1] : vector<8x128xf32> to vector<8xf32>
    %61 = vector.shape_cast %60 : vector<8xf32> to vector<8x1xf32>
    %c0_51 = arith.constant 0 : index
    %c0_52 = arith.constant 0 : index
    %62 = vector.load %arg9[%c0_51, %c0_52] : memref<1x1xf32, #tpu.memory_space<vmem>>, vector<1x1xf32>
    %63 = vector.broadcast %62 : vector<1x1xf32> to vector<8x1xf32>
    %64 = arith.addf %61, %63 : vector<8x1xf32>
    %c0_53 = arith.constant 0 : index
    %c0_54 = arith.constant 0 : index
    %65 = vector.load %arg10[%c0_53, %c0_54] : memref<8x1xf32, #tpu.memory_space<vmem>>, vector<8x1xf32>
    tpu.vector_store %arg10[%c0_53, %c0_54], %64 {strides = array<i32>} : memref<8x1xf32, #tpu.memory_space<vmem>>, vector<8x1xf32>,
    return
  }
  func.func @transform_0(%arg0: i32) -> (i32, i32, i32) {
    %c0_i32 = arith.constant 0 : i32
    %c0_i32_0 = arith.constant 0 : i32
    %c0_i32_1 = arith.constant 0 : i32
    return %c0_i32, %arg0, %c0_i32_0 : i32, i32, i32
  }
  func.func @transform_1(%arg0: i32) -> (i32, i32, i32) {
    %c0_i32 = arith.constant 0 : i32
    %c0_i32_0 = arith.constant 0 : i32
    %c0_i32_1 = arith.constant 0 : i32
    %c0_i32_2 = arith.constant 0 : i32
    return %c0_i32, %c0_i32_0, %c0_i32_1 : i32, i32, i32
  }
  func.func @transform_2(%arg0: i32) -> (i32, i32) {
    %c0_i32 = arith.constant 0 : i32
    %c0_i32_0 = arith.constant 0 : i32
    %c0_i32_1 = arith.constant 0 : i32
    return %c0_i32, %c0_i32_0 : i32, i32
  }
  func.func @transform_3(%arg0: i32) -> (i32, i32, i32) {
    %c0_i32 = arith.constant 0 : i32
    %c0_i32_0 = arith.constant 0 : i32
    %c0_i32_1 = arith.constant 0 : i32
    %c0_i32_2 = arith.constant 0 : i32
    return %c0_i32, %c0_i32_0, %c0_i32_1 : i32, i32, i32
  }
  func.func @transform_4(%arg0: i32) -> (i32, i32) {
    %c0_i32 = arith.constant 0 : i32
    %c0_i32_0 = arith.constant 0 : i32
    %c0_i32_1 = arith.constant 0 : i32
    return %c0_i32, %c0_i32_0 : i32, i32
  }
  func.func @transform_5(%arg0: i32) -> (i32, i32, i32) {
    %c0_i32 = arith.constant 0 : i32
    %c0_i32_0 = arith.constant 0 : i32
    %c0_i32_1 = arith.constant 0 : i32
    %c0_i32_2 = arith.constant 0 : i32
    return %c0_i32, %c0_i32_0, %c0_i32_1 : i32, i32, i32
  }
  func.func @transform_6(%arg0: i32) -> (i32, i32) {
    %c0_i32 = arith.constant 0 : i32
    %c0_i32_0 = arith.constant 0 : i32
    %c0_i32_1 = arith.constant 0 : i32
    return %c0_i32, %c0_i32_0 : i32, i32
  }
  func.func @transform_7(%arg0: i32) -> (i32, i32) {
    %c0_i32 = arith.constant 0 : i32
    %c0_i32_0 = arith.constant 0 : i32
    %c0_i32_1 = arith.constant 0 : i32
    return %c0_i32, %c0_i32_0 : i32, i32
  }
  func.func @transform_8(%arg0: i32) -> (i32, i32) {
    %c0_i32 = arith.constant 0 : i32
    %c0_i32_0 = arith.constant 0 : i32
    %c0_i32_1 = arith.constant 0 : i32
    return %c0_i32, %c0_i32_0 : i32, i32
  }
  func.func @transform_9(%arg0: i32) -> (i32, i32) {
    %c0_i32 = arith.constant 0 : i32
    %c0_i32_0 = arith.constant 0 : i32
    return %arg0, %c0_i32 : i32, i32
  }
}

</mosaic_0001>

<llo_original>
// kernel: my_cnn_forward.1
$region0: #{my_cnn_forward.1}
  #allocation0 [shape = 'u32[]', space=smem, size = 0x4, offset = 0x4, fixed_abs, tag = 'smem constant byte address 0x4 - core index']
  #allocation1 [shape = 'u32[72,128]{1,0:T(1,128)}', space=vmem, size = 0x9000, scoped, tag = 'internal scratch']
  #allocation2 [shape = 'f32[696,48]{1,0:T(8,128)}', space=vmem, size = 0x57000, scoped, tag = 'scratch operand']
  #allocation3 [shape = 'f32[680,96]{1,0:T(8,128)}', space=vmem, size = 0x55000, scoped, tag = 'scratch operand']
  #allocation4 [shape = 'f32[1,1]{1,0:T(1,128)S(1)}', space=vmem, size = 0x200, scoped, tag = 'scoped memory for my_cnn_forward.1']
  %s0 = inlined_call_operand.vmem [shape: f32[87,8,3], index: 0, kind: input, shape index: {}]
  %s1 = inlined_call_operand.hbm [shape: f32[3,3,48], index: 1, kind: input, shape index: {}]
  %s2 = inlined_call_operand.hbm [shape: f32[1,48], index: 2, kind: input, shape index: {}]
  %s3 = inlined_call_operand.hbm [shape: f32[3,48,96], index: 3, kind: input, shape index: {}]
  %s4 = inlined_call_operand.hbm [shape: f32[1,96], index: 4, kind: input, shape index: {}]
  %s5 = inlined_call_operand.hbm [shape: f32[85,96,128], index: 5, kind: input, shape index: {}]
  %s6 = inlined_call_operand.hbm [shape: f32[1,128], index: 6, kind: input, shape index: {}]
  %s7 = inlined_call_operand.hbm [shape: f32[1,128], index: 7, kind: input, shape index: {}]
  %s8 = inlined_call_operand.<no memory space> [shape: f32[1,1], index: 8, kind: input, shape index: {}]
  %s9 = inlined_call_operand.vmem [shape: f32[8,1], index: 9, kind: output, shape index: {}]
  %s10 = sld [smem:[#allocation0]]
  $region81: #{my_cnn_forward.1} parent=0
    _
  %s12 = ssub.s32 1, %s10
  %s13 = scalar_select 0, %s12, %s10
  %v14 = vstv %s8
  %15 = vst [vmem:[#allocation4] sm:$0x1] %v14
  $region1: #{my_cnn_forward.1} parent=0
    #allocation5 [shape = 'u8[6144]{0}', space=vmem, size = 0x1800, scoped, tag = 'input window, operand 1, single buffered']
    #allocation6 [shape = 's32[1]{0}', space=sflag, size = 0x4, scoped, tag = 'scoped memory for my_cnn_forward.1']
    #allocation7 [shape = 'u8[512]{0}', space=vmem, size = 0x400, scoped, tag = 'input window, operand 2, single buffered']
    #allocation8 [shape = 's32[1]{0}', space=sflag, size = 0x4, scoped, tag = 'scoped memory for my_cnn_forward.1']
    #allocation9 [shape = 'u8[73728]{0}', space=vmem, size = 0x12000, scoped, tag = 'input window, operand 3, single buffered']
    #allocation10 [shape = 'u8[512]{0}', space=vmem, size = 0x400, scoped, tag = 'input window, operand 4, single buffered']
    #allocation11 [shape = 's32[1]{0}', space=sflag, size = 0x4, scoped, tag = 'scoped memory for my_cnn_forward.1']
    #allocation12 [shape = 'u8[4177920]{0}', space=vmem, size = 0x3fc000, scoped, tag = 'input window, operand 5, single buffered']
    #allocation13 [shape = 'u8[512]{0}', space=vmem, size = 0x400, scoped, tag = 'input window, operand 6, single buffered']
    #allocation14 [shape = 's32[1]{0}', space=sflag, size = 0x4, scoped, tag = 'scoped memory for my_cnn_forward.1']
    #allocation15 [shape = 'u8[512]{0}', space=vmem, size = 0x400, scoped, tag = 'input window, operand 7, single buffered']
    %16 = vsyncpa [#allocation6], 0
    %17 = vsyncpa [#allocation8], 0
    %18 = vsyncpa [#allocation11], 0
    %19 = vsyncpa [#allocation14], 0
    // Predicated region
    $region2: #{my_cnn_forward.1} parent=1 // pred_check
      _
    $region3: #{my_cnn_forward.1} parent=1 // pred_check_branch
      %21 = sbr.rel (0) target = $region5
    $region4: #{my_cnn_forward.1} parent=1 // pred_region
      _
    $region5: #{my_cnn_forward.1} parent=1 // pred_fallthru
      _
    // Predicated region
    $region6: #{my_cnn_forward.1} parent=1 // pred_check
      _
    $region7: #{my_cnn_forward.1} parent=1 // pred_check_branch
      %23 = sbr.rel (0) target = $region9
    $region8: #{my_cnn_forward.1} parent=1 // pred_region
      %25 = vsyncadd [#allocation6], 0
      %s26 = sshll.u32 %s1, 4
      %s27 = int_to_ptr.hbm [resolvable:$true] %s26
      %s28 = sshll.u32 [#allocation5], 4
      %s29 = int_to_ptr.vmem [resolvable:$true] %s28
      %34 = dma.hbm_to_vmem [thread:$0]  %s27, 192, %s29, [#allocation6], 64, 64, 4
    $region9: #{my_cnn_forward.1} parent=1 // pred_fallthru
      _
    // Predicated region
    $region10: #{my_cnn_forward.1} parent=1 // pred_check
      _
    $region11: #{my_cnn_forward.1} parent=1 // pred_check_branch
      %36 = sbr.rel (0) target = $region13
    $region12: #{my_cnn_forward.1} parent=1 // pred_region
      %38 = vsyncadd [#allocation8], 0
      %s40 = sshll.u32 %s2, 4
      %s41 = int_to_ptr.hbm [resolvable:$true] %s40
      %s42 = sshll.u32 [#allocation7], 4
      %s43 = int_to_ptr.vmem [resolvable:$true] %s42
      %45 = dma.hbm_to_vmem [thread:$0]  %s41, 16, %s43, [#allocation8]
    $region13: #{my_cnn_forward.1} parent=1 // pred_fallthru
      _
    // Predicated region
    $region14: #{my_cnn_forward.1} parent=1 // pred_check
      _
    $region15: #{my_cnn_forward.1} parent=1 // pred_check_branch
      %47 = sbr.rel (0) target = $region17
    $region16: #{my_cnn_forward.1} parent=1 // pred_region
      %49 = vsyncadd [#allocation8], 0
      %s50 = sshll.u32 %s3, 4
      %s51 = int_to_ptr.hbm [resolvable:$true] %s50
      %s52 = sshll.u32 [#allocation9], 4
      %s53 = int_to_ptr.vmem [resolvable:$true] %s52
      %58 = dma.hbm_to_vmem [thread:$0]  %s51, 2304, %s53, [#allocation8], 128, 128, 8
    $region17: #{my_cnn_forward.1} parent=1 // pred_fallthru
      _
    // Predicated region
    $region18: #{my_cnn_forward.1} parent=1 // pred_check
      _
    $region19: #{my_cnn_forward.1} parent=1 // pred_check_branch
      %60 = sbr.rel (0) target = $region21
    $region20: #{my_cnn_forward.1} parent=1 // pred_region
      %62 = vsyncadd [#allocation11], 0
      %s64 = sshll.u32 %s4, 4
      %s65 = int_to_ptr.hbm [resolvable:$true] %s64
      %s66 = sshll.u32 [#allocation10], 4
      %s67 = int_to_ptr.vmem [resolvable:$true] %s66
      %69 = dma.hbm_to_vmem [thread:$0]  %s65, 16, %s67, [#allocation11]
    $region21: #{my_cnn_forward.1} parent=1 // pred_fallthru
      _
    // Predicated region
    $region22: #{my_cnn_forward.1} parent=1 // pred_check
      _
    $region23: #{my_cnn_forward.1} parent=1 // pred_check_branch
      %71 = sbr.rel (0) target = $region25
    $region24: #{my_cnn_forward.1} parent=1 // pred_region
      %73 = vsyncadd [#allocation11], 0
      %s74 = sshll.u32 %s5, 4
      %s75 = int_to_ptr.hbm [resolvable:$true] %s74
      %s76 = sshll.u32 [#allocation12], 4
      %s77 = int_to_ptr.vmem [resolvable:$true] %s76
      %82 = dma.hbm_to_vmem [thread:$0]  %s75, 130560, %s77, [#allocation11], 128, 128, 8
    $region25: #{my_cnn_forward.1} parent=1 // pred_fallthru
      _
    // Predicated region
    $region26: #{my_cnn_forward.1} parent=1 // pred_check
      _
    $region27: #{my_cnn_forward.1} parent=1 // pred_check_branch
      %84 = sbr.rel (0) target = $region29
    $region28: #{my_cnn_forward.1} parent=1 // pred_region
      %86 = vsyncadd [#allocation14], 0
      %s88 = sshll.u32 %s6, 4
      %s89 = int_to_ptr.hbm [resolvable:$true] %s88
      %s90 = sshll.u32 [#allocation13], 4
      %s91 = int_to_ptr.vmem [resolvable:$true] %s90
      %93 = dma.hbm_to_vmem [thread:$0]  %s89, 16, %s91, [#allocation14]
    $region29: #{my_cnn_forward.1} parent=1 // pred_fallthru
      _
    // Predicated region
    $region30: #{my_cnn_forward.1} parent=1 // pred_check
      _
    $region31: #{my_cnn_forward.1} parent=1 // pred_check_branch
      %95 = sbr.rel (0) target = $region33
    $region32: #{my_cnn_forward.1} parent=1 // pred_region
      %97 = vsyncadd [#allocation14], 0
      %s99 = sshll.u32 %s7, 4
      %s100 = int_to_ptr.hbm [resolvable:$true] %s99
      %s101 = sshll.u32 [#allocation15], 4
      %s102 = int_to_ptr.vmem [resolvable:$true] %s101
      %104 = dma.hbm_to_vmem [thread:$0]  %s100, 16, %s102, [#allocation14]
    $region33: #{my_cnn_forward.1} parent=1 // pred_fallthru
      _
    // Predicated region
    $region34: #{my_cnn_forward.1} parent=1 // pred_check
      _
    $region35: #{my_cnn_forward.1} parent=1 // pred_check_branch
      %106 = sbr.rel (0) target = $region37
    $region36: #{my_cnn_forward.1} parent=1 // pred_region
      _
    $region37: #{my_cnn_forward.1} parent=1 // pred_fallthru
      _
    // Predicated region
    $region38: #{my_cnn_forward.1} parent=1 // pred_check
      _
    $region39: #{my_cnn_forward.1} parent=1 // pred_check_branch
      %108 = sbr.rel (0) target = $region41
    $region40: #{my_cnn_forward.1} parent=1 // pred_region
      %110 = dma.done [#allocation6], 192
    $region41: #{my_cnn_forward.1} parent=1 // pred_fallthru
      _
    // Predicated region
    $region42: #{my_cnn_forward.1} parent=1 // pred_check
      _
    $region43: #{my_cnn_forward.1} parent=1 // pred_check_branch
      %112 = sbr.rel (0) target = $region45
    $region44: #{my_cnn_forward.1} parent=1 // pred_region
      %114 = dma.done [#allocation8], 16
    $region45: #{my_cnn_forward.1} parent=1 // pred_fallthru
      _
    // Predicated region
    $region46: #{my_cnn_forward.1} parent=1 // pred_check
      _
    $region47: #{my_cnn_forward.1} parent=1 // pred_check_branch
      %116 = sbr.rel (0) target = $region49
    $region48: #{my_cnn_forward.1} parent=1 // pred_region
      %118 = dma.done [#allocation8], 2304
    $region49: #{my_cnn_forward.1} parent=1 // pred_fallthru
      _
    // Predicated region
    $region50: #{my_cnn_forward.1} parent=1 // pred_check
      _
    $region51: #{my_cnn_forward.1} parent=1 // pred_check_branch
      %120 = sbr.rel (0) target = $region53
    $region52: #{my_cnn_forward.1} parent=1 // pred_region
      %122 = dma.done [#allocation11], 16
    $region53: #{my_cnn_forward.1} parent=1 // pred_fallthru
      _
    // Predicated region
    $region54: #{my_cnn_forward.1} parent=1 // pred_check
      _
    $region55: #{my_cnn_forward.1} parent=1 // pred_check_branch
      %124 = sbr.rel (0) target = $region57
    $region56: #{my_cnn_forward.1} parent=1 // pred_region
      %126 = dma.done [#allocation11], 130560
    $region57: #{my_cnn_forward.1} parent=1 // pred_fallthru
      _
    // Predicated region
    $region58: #{my_cnn_forward.1} parent=1 // pred_check
      _
    $region59: #{my_cnn_forward.1} parent=1 // pred_check_branch
      %128 = sbr.rel (0) target = $region61
    $region60: #{my_cnn_forward.1} parent=1 // pred_region
      %130 = dma.done [#allocation14], 16
    $region61: #{my_cnn_forward.1} parent=1 // pred_fallthru
      _
    // Predicated region
    $region62: #{my_cnn_forward.1} parent=1 // pred_check
      _
    $region63: #{my_cnn_forward.1} parent=1 // pred_check_branch
      %132 = sbr.rel (0) target = $region65
    $region64: #{my_cnn_forward.1} parent=1 // pred_region
      %134 = dma.done [#allocation14], 16
    $region65: #{my_cnn_forward.1} parent=1 // pred_fallthru
      _
    %v135 = vld [vmem:[%s0] sm:$0xff]
    %v136 = vld [vmem:[%s0 + $0x8] sm:$0xff]
    %v137 = vld [vmem:[%s0 + $0x10] sm:$0xff]
    %v138 = vld [vmem:[%s0 + $0x18] sm:$0xff]
    %v139 = vld [vmem:[%s0 + $0x20] sm:$0xff]
    %v140 = vld [vmem:[%s0 + $0x28] sm:$0xff]
    %v141 = vld [vmem:[%s0 + $0x30] sm:$0xff]
    %v142 = vld [vmem:[%s0 + $0x38] sm:$0xff]
    %v143 = vld [vmem:[%s0 + $0x40] sm:$0xff]
    %v144 = vld [vmem:[%s0 + $0x48] sm:$0xff]
    %v145 = vld [vmem:[%s0 + $0x50] sm:$0xff]
    %v146 = vld [vmem:[%s0 + $0x58] sm:$0xff]
    %v147 = vld [vmem:[%s0 + $0x60] sm:$0xff]
    %v148 = vld [vmem:[%s0 + $0x68] sm:$0xff]
    %v149 = vld [vmem:[%s0 + $0x70] sm:$0xff]
    %v150 = vld [vmem:[%s0 + $0x78] sm:$0xff]
    %v151 = vld [vmem:[%s0 + $0x80] sm:$0xff]
    %v152 = vld [vmem:[%s0 + $0x88] sm:$0xff]
    %v153 = vld [vmem:[%s0 + $0x90] sm:$0xff]
    %v154 = vld [vmem:[%s0 + $0x98] sm:$0xff]
    %v155 = vld [vmem:[%s0 + $0xa0] sm:$0xff]
    %v156 = vld [vmem:[%s0 + $0xa8] sm:$0xff]
    %v157 = vld [vmem:[%s0 + $0xb0] sm:$0xff]
    %v158 = vld [vmem:[%s0 + $0xb8] sm:$0xff]
    %v159 = vld [vmem:[%s0 + $0xc0] sm:$0xff]
    %v160 = vld [vmem:[%s0 + $0xc8] sm:$0xff]
    %v161 = vld [vmem:[%s0 + $0xd0] sm:$0xff]
    %v162 = vld [vmem:[%s0 + $0xd8] sm:$0xff]
    %v163 = vld [vmem:[%s0 + $0xe0] sm:$0xff]
    %v164 = vld [vmem:[%s0 + $0xe8] sm:$0xff]
    %v165 = vld [vmem:[%s0 + $0xf0] sm:$0xff]
    %v166 = vld [vmem:[%s0 + $0xf8] sm:$0xff]
    %v167 = vld [vmem:[%s0 + $0x100] sm:$0xff]
    %v168 = vld [vmem:[%s0 + $0x108] sm:$0xff]
    %v169 = vld [vmem:[%s0 + $0x110] sm:$0xff]
    %v170 = vld [vmem:[%s0 + $0x118] sm:$0xff]
    %v171 = vld [vmem:[%s0 + $0x120] sm:$0xff]
    %v172 = vld [vmem:[%s0 + $0x128] sm:$0xff]
    %v173 = vld [vmem:[%s0 + $0x130] sm:$0xff]
    %v174 = vld [vmem:[%s0 + $0x138] sm:$0xff]
    %v175 = vld [vmem:[%s0 + $0x140] sm:$0xff]
    %v176 = vld [vmem:[%s0 + $0x148] sm:$0xff]
    %v177 = vld [vmem:[%s0 + $0x150] sm:$0xff]
    %v178 = vld [vmem:[%s0 + $0x158] sm:$0xff]
    %v179 = vld [vmem:[%s0 + $0x160] sm:$0xff]
    %v180 = vld [vmem:[%s0 + $0x168] sm:$0xff]
    %v181 = vld [vmem:[%s0 + $0x170] sm:$0xff]
    %v182 = vld [vmem:[%s0 + $0x178] sm:$0xff]
    %v183 = vld [vmem:[%s0 + $0x180] sm:$0xff]
    %v184 = vld [vmem:[%s0 + $0x188] sm:$0xff]
    %v185 = vld [vmem:[%s0 + $0x190] sm:$0xff]
    %v186 = vld [vmem:[%s0 + $0x198] sm:$0xff]
    %v187 = vld [vmem:[%s0 + $0x1a0] sm:$0xff]
    %v188 = vld [vmem:[%s0 + $0x1a8] sm:$0xff]
    %v189 = vld [vmem:[%s0 + $0x1b0] sm:$0xff]
    %v190 = vld [vmem:[%s0 + $0x1b8] sm:$0xff]
    %v191 = vld [vmem:[%s0 + $0x1c0] sm:$0xff]
    %v192 = vld [vmem:[%s0 + $0x1c8] sm:$0xff]
    %v193 = vld [vmem:[%s0 + $0x1d0] sm:$0xff]
    %v194 = vld [vmem:[%s0 + $0x1d8] sm:$0xff]
    %v195 = vld [vmem:[%s0 + $0x1e0] sm:$0xff]
    %v196 = vld [vmem:[%s0 + $0x1e8] sm:$0xff]
    %v197 = vld [vmem:[%s0 + $0x1f0] sm:$0xff]
    %v198 = vld [vmem:[%s0 + $0x1f8] sm:$0xff]
    %v199 = vld [vmem:[%s0 + $0x200] sm:$0xff]
    %v200 = vld [vmem:[%s0 + $0x208] sm:$0xff]
    %v201 = vld [vmem:[%s0 + $0x210] sm:$0xff]
    %v202 = vld [vmem:[%s0 + $0x218] sm:$0xff]
    %v203 = vld [vmem:[%s0 + $0x220] sm:$0xff]
    %v204 = vld [vmem:[%s0 + $0x228] sm:$0xff]
    %v205 = vld [vmem:[%s0 + $0x230] sm:$0xff]
    %v206 = vld [vmem:[%s0 + $0x238] sm:$0xff]
    %v207 = vld [vmem:[%s0 + $0x240] sm:$0xff]
    %v208 = vld [vmem:[%s0 + $0x248] sm:$0xff]
    %v209 = vld [vmem:[%s0 + $0x250] sm:$0xff]
    %v210 = vld [vmem:[%s0 + $0x258] sm:$0xff]
    %v211 = vld [vmem:[%s0 + $0x260] sm:$0xff]
    %v212 = vld [vmem:[%s0 + $0x268] sm:$0xff]
    %v213 = vld [vmem:[%s0 + $0x270] sm:$0xff]
    %v214 = vld [vmem:[%s0 + $0x278] sm:$0xff]
    %v215 = vld [vmem:[%s0 + $0x280] sm:$0xff]
    %v216 = vld [vmem:[%s0 + $0x288] sm:$0xff]
    %v217 = vld [vmem:[%s0 + $0x290] sm:$0xff]
    %v218 = vld [vmem:[%s0 + $0x298] sm:$0xff]
    %v219 = vld [vmem:[%s0 + $0x2a0] sm:$0xff]
    %v220 = vld [vmem:[%s0 + $0x2a8] sm:$0xff]
    %v221 = vld [vmem:[%s0 + $0x2b0] sm:$0xff]
    %v222 = vld [vmem:[#allocation5] sm:$0x7]
    %s223 = scalar_lea.vmem [#allocation5], 4
    %v224 = vld [vmem:[%s223] sm:$0x7]
    %vm225 = vcmask 23552
    %v227 = vsel %vm225, %v136, 0
    %v230 = vsel %vm225, %v137, 0
    %v233 = vsel %vm225, %v138, 0
    %v236 = vsel %vm225, %v139, 0
    %v239 = vsel %vm225, %v140, 0
    %v242 = vsel %vm225, %v141, 0
    %v245 = vsel %vm225, %v142, 0
    %v248 = vsel %vm225, %v143, 0
    %v251 = vsel %vm225, %v144, 0
    %v254 = vsel %vm225, %v145, 0
    %v257 = vsel %vm225, %v146, 0
    %v260 = vsel %vm225, %v147, 0
    %v263 = vsel %vm225, %v148, 0
    %v266 = vsel %vm225, %v149, 0
    %v269 = vsel %vm225, %v150, 0
    %v272 = vsel %vm225, %v151, 0
    %v275 = vsel %vm225, %v152, 0
    %v278 = vsel %vm225, %v153, 0
    %v281 = vsel %vm225, %v154, 0
    %v284 = vsel %vm225, %v155, 0
    %v287 = vsel %vm225, %v156, 0
    %v290 = vsel %vm225, %v157, 0
    %v293 = vsel %vm225, %v158, 0
    %v296 = vsel %vm225, %v159, 0
    %v299 = vsel %vm225, %v160, 0
    %v302 = vsel %vm225, %v161, 0
    %v305 = vsel %vm225, %v162, 0
    %v308 = vsel %vm225, %v163, 0
    %v311 = vsel %vm225, %v164, 0
    %v314 = vsel %vm225, %v165, 0
    %v317 = vsel %vm225, %v166, 0
    %v320 = vsel %vm225, %v167, 0
    %v323 = vsel %vm225, %v168, 0
    %v326 = vsel %vm225, %v169, 0
    %v329 = vsel %vm225, %v170, 0
    %v332 = vsel %vm225, %v171, 0
    %v335 = vsel %vm225, %v172, 0
    %v338 = vsel %vm225, %v173, 0
    %v341 = vsel %vm225, %v174, 0
    %v344 = vsel %vm225, %v175, 0
    %v347 = vsel %vm225, %v176, 0
    %v350 = vsel %vm225, %v177, 0
    %v353 = vsel %vm225, %v178, 0
    %v356 = vsel %vm225, %v179, 0
    %v359 = vsel %vm225, %v180, 0
    %v362 = vsel %vm225, %v181, 0
    %v365 = vsel %vm225, %v182, 0
    %v368 = vsel %vm225, %v183, 0
    %v371 = vsel %vm225, %v184, 0
    %v374 = vsel %vm225, %v185, 0
    %v377 = vsel %vm225, %v186, 0
    %v380 = vsel %vm225, %v187, 0
    %v383 = vsel %vm225, %v188, 0
    %v386 = vsel %vm225, %v189, 0
    %v389 = vsel %vm225, %v190, 0
    %v392 = vsel %vm225, %v191, 0
    %v395 = vsel %vm225, %v192, 0
    %v398 = vsel %vm225, %v193, 0
    %v401 = vsel %vm225, %v194, 0
    %v404 = vsel %vm225, %v195, 0
    %v407 = vsel %vm225, %v196, 0
    %v410 = vsel %vm225, %v197, 0
    %v413 = vsel %vm225, %v198, 0
    %v416 = vsel %vm225, %v199, 0
    %v419 = vsel %vm225, %v200, 0
    %v422 = vsel %vm225, %v201, 0
    %v425 = vsel %vm225, %v202, 0
    %v428 = vsel %vm225, %v203, 0
    %v431 = vsel %vm225, %v204, 0
    %v434 = vsel %vm225, %v205, 0
    %v437 = vsel %vm225, %v206, 0
    %v440 = vsel %vm225, %v207, 0
    %v443 = vsel %vm225, %v208, 0
    %v446 = vsel %vm225, %v209, 0
    %v449 = vsel %vm225, %v210, 0
    %v452 = vsel %vm225, %v211, 0
    %v455 = vsel %vm225, %v212, 0
    %v458 = vsel %vm225, %v213, 0
    %v461 = vsel %vm225, %v214, 0
    %v464 = vsel %vm225, %v215, 0
    %v467 = vsel %vm225, %v216, 0
    %v470 = vsel %vm225, %v217, 0
    %v473 = vsel %vm225, %v218, 0
    %v476 = vsel %vm225, %v219, 0
    %v479 = vsel %vm225, %v220, 0
    %vm481 = vcmask 1042432
    %v483 = vsel %vm481, %v224, 0
    %485 = vmatpush.msra.mxu0 0.0
    %486 = vmatpush.msra.mxu0 0.0
    %487 = vmatpush.msra.mxu0 0.0
    %488 = vmatpush.msra.mxu0 0.0
    %489 = vmatpush.msra.mxu0 0.0
    %490 = vmatpush.msra.mxu0 0.0
    %491 = vmatpush.msra.mxu0 0.0
    %492 = vmatpush.msra.mxu0 0.0
    %493 = vmatpush.msra.mxu0 0.0
    %494 = vmatpush.msra.mxu0 0.0
    %495 = vmatpush.msra.mxu0 0.0
    %496 = vmatpush.msra.mxu0 0.0
    %497 = vmatpush.msra.mxu0 0.0
    %498 = vmatpush.msra.mxu0 0.0
    %499 = vmatpush.msra.mxu0 0.0
    %500 = vmatpush.msra.mxu0 %v483
    %501 = vmatmul.f32.gmra.mxu0 %v227
    %v502 = vpop.f32.mrf.mxu0
    %v503 = vadd.f32 0.0, %v502
    %504 = vmatmul.f32.gmra.mxu0 %v230
    %v505 = vpop.f32.mrf.mxu0
    %v506 = vadd.f32 0.0, %v505
    %507 = vmatmul.f32.gmra.mxu0 %v233
    %v508 = vpop.f32.mrf.mxu0
    %v509 = vadd.f32 0.0, %v508
    %510 = vmatmul.f32.gmra.mxu0 %v236
    %v511 = vpop.f32.mrf.mxu0
    %v512 = vadd.f32 0.0, %v511
    %513 = vmatmul.f32.gmra.mxu0 %v239
    %v514 = vpop.f32.mrf.mxu0
    %v515 = vadd.f32 0.0, %v514
    %516 = vmatmul.f32.gmra.mxu0 %v242
    %v517 = vpop.f32.mrf.mxu0
    %v518 = vadd.f32 0.0, %v517
    %519 = vmatmul.f32.gmra.mxu0 %v245
    %v520 = vpop.f32.mrf.mxu0
    %v521 = vadd.f32 0.0, %v520
    %522 = vmatmul.f32.gmra.mxu0 %v248
    %v523 = vpop.f32.mrf.mxu0
    %v524 = vadd.f32 0.0, %v523
    %525 = vmatmul.f32.gmra.mxu0 %v251
    %v526 = vpop.f32.mrf.mxu0
    %v527 = vadd.f32 0.0, %v526
    %528 = vmatmul.f32.gmra.mxu0 %v254
    %v529 = vpop.f32.mrf.mxu0
    %v530 = vadd.f32 0.0, %v529
    %531 = vmatmul.f32.gmra.mxu0 %v257
    %v532 = vpop.f32.mrf.mxu0
    %v533 = vadd.f32 0.0, %v532
    %534 = vmatmul.f32.gmra.mxu0 %v260
    %v535 = vpop.f32.mrf.mxu0
    %v536 = vadd.f32 0.0, %v535
    %537 = vmatmul.f32.gmra.mxu0 %v263
    %v538 = vpop.f32.mrf.mxu0
    %v539 = vadd.f32 0.0, %v538
    %540 = vmatmul.f32.gmra.mxu0 %v266
    %v541 = vpop.f32.mrf.mxu0
    %v542 = vadd.f32 0.0, %v541
    %543 = vmatmul.f32.gmra.mxu0 %v269
    %v544 = vpop.f32.mrf.mxu0
    %v545 = vadd.f32 0.0, %v544
    %546 = vmatmul.f32.gmra.mxu0 %v272
    %v547 = vpop.f32.mrf.mxu0
    %v548 = vadd.f32 0.0, %v547
    %549 = vmatmul.f32.gmra.mxu0 %v275
    %v550 = vpop.f32.mrf.mxu0
    %v551 = vadd.f32 0.0, %v550
    %552 = vmatmul.f32.gmra.mxu0 %v278
    %v553 = vpop.f32.mrf.mxu0
    %v554 = vadd.f32 0.0, %v553
    %555 = vmatmul.f32.gmra.mxu0 %v281
    %v556 = vpop.f32.mrf.mxu0
    %v557 = vadd.f32 0.0, %v556
    %558 = vmatmul.f32.gmra.mxu0 %v284
    %v559 = vpop.f32.mrf.mxu0
    %v560 = vadd.f32 0.0, %v559
    %561 = vmatmul.f32.gmra.mxu0 %v287
    %v562 = vpop.f32.mrf.mxu0
    %v563 = vadd.f32 0.0, %v562
    %564 = vmatmul.f32.gmra.mxu0 %v290
    %v565 = vpop.f32.mrf.mxu0
    %v566 = vadd.f32 0.0, %v565
    %567 = vmatmul.f32.gmra.mxu0 %v293
    %v568 = vpop.f32.mrf.mxu0
    %v569 = vadd.f32 0.0, %v568
    %570 = vmatmul.f32.gmra.mxu0 %v296
    %v571 = vpop.f32.mrf.mxu0
    %v572 = vadd.f32 0.0, %v571
    %573 = vmatmul.f32.gmra.mxu0 %v299
    %v574 = vpop.f32.mrf.mxu0
    %v575 = vadd.f32 0.0, %v574
    %576 = vmatmul.f32.gmra.mxu0 %v302
    %v577 = vpop.f32.mrf.mxu0
    %v578 = vadd.f32 0.0, %v577
    %579 = vmatmul.f32.gmra.mxu0 %v305
    %v580 = vpop.f32.mrf.mxu0
    %v581 = vadd.f32 0.0, %v580
    %582 = vmatmul.f32.gmra.mxu0 %v308
    %v583 = vpop.f32.mrf.mxu0
    %v584 = vadd.f32 0.0, %v583
    %585 = vmatmul.f32.gmra.mxu0 %v311
    %v586 = vpop.f32.mrf.mxu0
    %v587 = vadd.f32 0.0, %v586
    %588 = vmatmul.f32.gmra.mxu0 %v314
    %v589 = vpop.f32.mrf.mxu0
    %v590 = vadd.f32 0.0, %v589
    %591 = vmatmul.f32.gmra.mxu0 %v317
    %v592 = vpop.f32.mrf.mxu0
    %v593 = vadd.f32 0.0, %v592
    %594 = vmatmul.f32.gmra.mxu0 %v320
    %v595 = vpop.f32.mrf.mxu0
    %v596 = vadd.f32 0.0, %v595
    %597 = vmatmul.f32.gmra.mxu0 %v323
    %v598 = vpop.f32.mrf.mxu0
    %v599 = vadd.f32 0.0, %v598
    %600 = vmatmul.f32.gmra.mxu0 %v326
    %v601 = vpop.f32.mrf.mxu0
    %v602 = vadd.f32 0.0, %v601
    %603 = vmatmul.f32.gmra.mxu0 %v329
    %v604 = vpop.f32.mrf.mxu0
    %v605 = vadd.f32 0.0, %v604
    %606 = vmatmul.f32.gmra.mxu0 %v332
    %v607 = vpop.f32.mrf.mxu0
    %v608 = vadd.f32 0.0, %v607
    %609 = vmatmul.f32.gmra.mxu0 %v335
    %v610 = vpop.f32.mrf.mxu0
    %v611 = vadd.f32 0.0, %v610
    %612 = vmatmul.f32.gmra.mxu0 %v338
    %v613 = vpop.f32.mrf.mxu0
    %v614 = vadd.f32 0.0, %v613
    %615 = vmatmul.f32.gmra.mxu0 %v341
    %v616 = vpop.f32.mrf.mxu0
    %v617 = vadd.f32 0.0, %v616
    %618 = vmatmul.f32.gmra.mxu0 %v344
    %v619 = vpop.f32.mrf.mxu0
    %v620 = vadd.f32 0.0, %v619
    %621 = vmatmul.f32.gmra.mxu0 %v347
    %v622 = vpop.f32.mrf.mxu0
    %v623 = vadd.f32 0.0, %v622
    %624 = vmatmul.f32.gmra.mxu0 %v350
    %v625 = vpop.f32.mrf.mxu0
    %v626 = vadd.f32 0.0, %v625
    %627 = vmatmul.f32.gmra.mxu0 %v353
    %v628 = vpop.f32.mrf.mxu0
    %v629 = vadd.f32 0.0, %v628
    %630 = vmatmul.f32.gmra.mxu0 %v356
    %v631 = vpop.f32.mrf.mxu0
    %v632 = vadd.f32 0.0, %v631
    %633 = vmatmul.f32.gmra.mxu0 %v359
    %v634 = vpop.f32.mrf.mxu0
    %v635 = vadd.f32 0.0, %v634
    %636 = vmatmul.f32.gmra.mxu0 %v362
    %v637 = vpop.f32.mrf.mxu0
    %v638 = vadd.f32 0.0, %v637
    %639 = vmatmul.f32.gmra.mxu0 %v365
    %v640 = vpop.f32.mrf.mxu0
    %v641 = vadd.f32 0.0, %v640
    %642 = vmatmul.f32.gmra.mxu0 %v368
    %v643 = vpop.f32.mrf.mxu0
    %v644 = vadd.f32 0.0, %v643
    %645 = vmatmul.f32.gmra.mxu0 %v371
    %v646 = vpop.f32.mrf.mxu0
    %v647 = vadd.f32 0.0, %v646
    %648 = vmatmul.f32.gmra.mxu0 %v374
    %v649 = vpop.f32.mrf.mxu0
    %v650 = vadd.f32 0.0, %v649
    %651 = vmatmul.f32.gmra.mxu0 %v377
    %v652 = vpop.f32.mrf.mxu0
    %v653 = vadd.f32 0.0, %v652
    %654 = vmatmul.f32.gmra.mxu0 %v380
    %v655 = vpop.f32.mrf.mxu0
    %v656 = vadd.f32 0.0, %v655
    %657 = vmatmul.f32.gmra.mxu0 %v383
    %v658 = vpop.f32.mrf.mxu0
    %v659 = vadd.f32 0.0, %v658
    %660 = vmatmul.f32.gmra.mxu0 %v386
    %v661 = vpop.f32.mrf.mxu0
    %v662 = vadd.f32 0.0, %v661
    %663 = vmatmul.f32.gmra.mxu0 %v389
    %v664 = vpop.f32.mrf.mxu0
    %v665 = vadd.f32 0.0, %v664
    %666 = vmatmul.f32.gmra.mxu0 %v392
    %v667 = vpop.f32.mrf.mxu0
    %v668 = vadd.f32 0.0, %v667
    %669 = vmatmul.f32.gmra.mxu0 %v395
    %v670 = vpop.f32.mrf.mxu0
    %v671 = vadd.f32 0.0, %v670
    %672 = vmatmul.f32.gmra.mxu0 %v398
    %v673 = vpop.f32.mrf.mxu0
    %v674 = vadd.f32 0.0, %v673
    %675 = vmatmul.f32.gmra.mxu0 %v401
    %v676 = vpop.f32.mrf.mxu0
    %v677 = vadd.f32 0.0, %v676
    %678 = vmatmul.f32.gmra.mxu0 %v404
    %v679 = vpop.f32.mrf.mxu0
    %v680 = vadd.f32 0.0, %v679
    %681 = vmatmul.f32.gmra.mxu0 %v407
    %v682 = vpop.f32.mrf.mxu0
    %v683 = vadd.f32 0.0, %v682
    %684 = vmatmul.f32.gmra.mxu0 %v410
    %v685 = vpop.f32.mrf.mxu0
    %v686 = vadd.f32 0.0, %v685
    %687 = vmatmul.f32.gmra.mxu0 %v413
    %v688 = vpop.f32.mrf.mxu0
    %v689 = vadd.f32 0.0, %v688
    %690 = vmatmul.f32.gmra.mxu0 %v416
    %v691 = vpop.f32.mrf.mxu0
    %v692 = vadd.f32 0.0, %v691
    %693 = vmatmul.f32.gmra.mxu0 %v419
    %v694 = vpop.f32.mrf.mxu0
    %v695 = vadd.f32 0.0, %v694
    %696 = vmatmul.f32.gmra.mxu0 %v422
    %v697 = vpop.f32.mrf.mxu0
    %v698 = vadd.f32 0.0, %v697
    %699 = vmatmul.f32.gmra.mxu0 %v425
    %v700 = vpop.f32.mrf.mxu0
    %v701 = vadd.f32 0.0, %v700
    %702 = vmatmul.f32.gmra.mxu0 %v428
    %v703 = vpop.f32.mrf.mxu0
    %v704 = vadd.f32 0.0, %v703
    %705 = vmatmul.f32.gmra.mxu0 %v431
    %v706 = vpop.f32.mrf.mxu0
    %v707 = vadd.f32 0.0, %v706
    %708 = vmatmul.f32.gmra.mxu0 %v434
    %v709 = vpop.f32.mrf.mxu0
    %v710 = vadd.f32 0.0, %v709
    %711 = vmatmul.f32.gmra.mxu0 %v437
    %v712 = vpop.f32.mrf.mxu0
    %v713 = vadd.f32 0.0, %v712
    %714 = vmatmul.f32.gmra.mxu0 %v440
    %v715 = vpop.f32.mrf.mxu0
    %v716 = vadd.f32 0.0, %v715
    %717 = vmatmul.f32.gmra.mxu0 %v443
    %v718 = vpop.f32.mrf.mxu0
    %v719 = vadd.f32 0.0, %v718
    %720 = vmatmul.f32.gmra.mxu0 %v446
    %v721 = vpop.f32.mrf.mxu0
    %v722 = vadd.f32 0.0, %v721
    %723 = vmatmul.f32.gmra.mxu0 %v449
    %v724 = vpop.f32.mrf.mxu0
    %v725 = vadd.f32 0.0, %v724
    %726 = vmatmul.f32.gmra.mxu0 %v452
    %v727 = vpop.f32.mrf.mxu0
    %v728 = vadd.f32 0.0, %v727
    %729 = vmatmul.f32.gmra.mxu0 %v455
    %v730 = vpop.f32.mrf.mxu0
    %v731 = vadd.f32 0.0, %v730
    %732 = vmatmul.f32.gmra.mxu0 %v458
    %v733 = vpop.f32.mrf.mxu0
    %v734 = vadd.f32 0.0, %v733
    %735 = vmatmul.f32.gmra.mxu0 %v461
    %v736 = vpop.f32.mrf.mxu0
    %v737 = vadd.f32 0.0, %v736
    %738 = vmatmul.f32.gmra.mxu0 %v464
    %v739 = vpop.f32.mrf.mxu0
    %v740 = vadd.f32 0.0, %v739
    %741 = vmatmul.f32.gmra.mxu0 %v467
    %v742 = vpop.f32.mrf.mxu0
    %v743 = vadd.f32 0.0, %v742
    %744 = vmatmul.f32.gmra.mxu0 %v470
    %v745 = vpop.f32.mrf.mxu0
    %v746 = vadd.f32 0.0, %v745
    %747 = vmatmul.f32.gmra.mxu0 %v473
    %v748 = vpop.f32.mrf.mxu0
    %v749 = vadd.f32 0.0, %v748
    %750 = vmatmul.f32.gmra.mxu0 %v476
    %v751 = vpop.f32.mrf.mxu0
    %v752 = vadd.f32 0.0, %v751
    %753 = vmatmul.f32.gmra.mxu0 %v479
    %v754 = vpop.f32.mrf.mxu0
    %v755 = vadd.f32 0.0, %v754
    %756 = vdwg.mxu0
    %v758 = vsel %vm225, %v135, 0
    %v761 = vsel %vm481, %v222, 0
    %763 = vmatpush.msra.mxu0 0.0
    %764 = vmatpush.msra.mxu0 0.0
    %765 = vmatpush.msra.mxu0 0.0
    %766 = vmatpush.msra.mxu0 0.0
    %767 = vmatpush.msra.mxu0 0.0
    %768 = vmatpush.msra.mxu0 0.0
    %769 = vmatpush.msra.mxu0 0.0
    %770 = vmatpush.msra.mxu0 0.0
    %771 = vmatpush.msra.mxu0 0.0
    %772 = vmatpush.msra.mxu0 0.0
    %773 = vmatpush.msra.mxu0 0.0
    %774 = vmatpush.msra.mxu0 0.0
    %775 = vmatpush.msra.mxu0 0.0
    %776 = vmatpush.msra.mxu0 0.0
    %777 = vmatpush.msra.mxu0 0.0
    %778 = vmatpush.msra.mxu0 %v761
    %779 = vmatmul.f32.gmra.mxu0 %v758
    %v780 = vpop.f32.mrf.mxu0
    %v781 = vadd.f32 %v503, %v780
    %782 = vmatmul.f32.gmra.mxu0 %v227
    %v783 = vpop.f32.mrf.mxu0
    %v784 = vadd.f32 %v506, %v783
    %785 = vmatmul.f32.gmra.mxu0 %v230
    %v786 = vpop.f32.mrf.mxu0
    %v787 = vadd.f32 %v509, %v786
    %788 = vmatmul.f32.gmra.mxu0 %v233
    %v789 = vpop.f32.mrf.mxu0
    %v790 = vadd.f32 %v512, %v789
    %791 = vmatmul.f32.gmra.mxu0 %v236
    %v792 = vpop.f32.mrf.mxu0
    %v793 = vadd.f32 %v515, %v792
    %794 = vmatmul.f32.gmra.mxu0 %v239
    %v795 = vpop.f32.mrf.mxu0
    %v796 = vadd.f32 %v518, %v795
    %797 = vmatmul.f32.gmra.mxu0 %v242
    %v798 = vpop.f32.mrf.mxu0
    %v799 = vadd.f32 %v521, %v798
    %800 = vmatmul.f32.gmra.mxu0 %v245
    %v801 = vpop.f32.mrf.mxu0
    %v802 = vadd.f32 %v524, %v801
    %803 = vmatmul.f32.gmra.mxu0 %v248
    %v804 = vpop.f32.mrf.mxu0
    %v805 = vadd.f32 %v527, %v804
    %806 = vmatmul.f32.gmra.mxu0 %v251
    %v807 = vpop.f32.mrf.mxu0
    %v808 = vadd.f32 %v530, %v807
    %809 = vmatmul.f32.gmra.mxu0 %v254
    %v810 = vpop.f32.mrf.mxu0
    %v811 = vadd.f32 %v533, %v810
    %812 = vmatmul.f32.gmra.mxu0 %v257
    %v813 = vpop.f32.mrf.mxu0
    %v814 = vadd.f32 %v536, %v813
    %815 = vmatmul.f32.gmra.mxu0 %v260
    %v816 = vpop.f32.mrf.mxu0
    %v817 = vadd.f32 %v539, %v816
    %818 = vmatmul.f32.gmra.mxu0 %v263
    %v819 = vpop.f32.mrf.mxu0
    %v820 = vadd.f32 %v542, %v819
    %821 = vmatmul.f32.gmra.mxu0 %v266
    %v822 = vpop.f32.mrf.mxu0
    %v823 = vadd.f32 %v545, %v822
    %824 = vmatmul.f32.gmra.mxu0 %v269
    %v825 = vpop.f32.mrf.mxu0
    %v826 = vadd.f32 %v548, %v825
    %827 = vmatmul.f32.gmra.mxu0 %v272
    %v828 = vpop.f32.mrf.mxu0
    %v829 = vadd.f32 %v551, %v828
    %830 = vmatmul.f32.gmra.mxu0 %v275
    %v831 = vpop.f32.mrf.mxu0
    %v832 = vadd.f32 %v554, %v831
    %833 = vmatmul.f32.gmra.mxu0 %v278
    %v834 = vpop.f32.mrf.mxu0
    %v835 = vadd.f32 %v557, %v834
    %836 = vmatmul.f32.gmra.mxu0 %v281
    %v837 = vpop.f32.mrf.mxu0
    %v838 = vadd.f32 %v560, %v837
    %839 = vmatmul.f32.gmra.mxu0 %v284
    %v840 = vpop.f32.mrf.mxu0
    %v841 = vadd.f32 %v563, %v840
    %842 = vmatmul.f32.gmra.mxu0 %v287
    %v843 = vpop.f32.mrf.mxu0
    %v844 = vadd.f32 %v566, %v843
    %845 = vmatmul.f32.gmra.mxu0 %v290
    %v846 = vpop.f32.mrf.mxu0
    %v847 = vadd.f32 %v569, %v846
    %848 = vmatmul.f32.gmra.mxu0 %v293
    %v849 = vpop.f32.mrf.mxu0
    %v850 = vadd.f32 %v572, %v849
    %851 = vmatmul.f32.gmra.mxu0 %v296
    %v852 = vpop.f32.mrf.mxu0
    %v853 = vadd.f32 %v575, %v852
    %854 = vmatmul.f32.gmra.mxu0 %v299
    %v855 = vpop.f32.mrf.mxu0
    %v856 = vadd.f32 %v578, %v855
    %857 = vmatmul.f32.gmra.mxu0 %v302
    %v858 = vpop.f32.mrf.mxu0
    %v859 = vadd.f32 %v581, %v858
    %860 = vmatmul.f32.gmra.mxu0 %v305
    %v861 = vpop.f32.mrf.mxu0
    %v862 = vadd.f32 %v584, %v861
    %863 = vmatmul.f32.gmra.mxu0 %v308
    %v864 = vpop.f32.mrf.mxu0
    %v865 = vadd.f32 %v587, %v864
    %866 = vmatmul.f32.gmra.mxu0 %v311
    %v867 = vpop.f32.mrf.mxu0
    %v868 = vadd.f32 %v590, %v867
    %869 = vmatmul.f32.gmra.mxu0 %v314
    %v870 = vpop.f32.mrf.mxu0
    %v871 = vadd.f32 %v593, %v870
    %872 = vmatmul.f32.gmra.mxu0 %v317
    %v873 = vpop.f32.mrf.mxu0
    %v874 = vadd.f32 %v596, %v873
    %875 = vmatmul.f32.gmra.mxu0 %v320
    %v876 = vpop.f32.mrf.mxu0
    %v877 = vadd.f32 %v599, %v876
    %878 = vmatmul.f32.gmra.mxu0 %v323
    %v879 = vpop.f32.mrf.mxu0
    %v880 = vadd.f32 %v602, %v879
    %881 = vmatmul.f32.gmra.mxu0 %v326
    %v882 = vpop.f32.mrf.mxu0
    %v883 = vadd.f32 %v605, %v882
    %884 = vmatmul.f32.gmra.mxu0 %v329
    %v885 = vpop.f32.mrf.mxu0
    %v886 = vadd.f32 %v608, %v885
    %887 = vmatmul.f32.gmra.mxu0 %v332
    %v888 = vpop.f32.mrf.mxu0
    %v889 = vadd.f32 %v611, %v888
    %890 = vmatmul.f32.gmra.mxu0 %v335
    %v891 = vpop.f32.mrf.mxu0
    %v892 = vadd.f32 %v614, %v891
    %893 = vmatmul.f32.gmra.mxu0 %v338
    %v894 = vpop.f32.mrf.mxu0
    %v895 = vadd.f32 %v617, %v894
    %896 = vmatmul.f32.gmra.mxu0 %v341
    %v897 = vpop.f32.mrf.mxu0
    %v898 = vadd.f32 %v620, %v897
    %899 = vmatmul.f32.gmra.mxu0 %v344
    %v900 = vpop.f32.mrf.mxu0
    %v901 = vadd.f32 %v623, %v900
    %902 = vmatmul.f32.gmra.mxu0 %v347
    %v903 = vpop.f32.mrf.mxu0
    %v904 = vadd.f32 %v626, %v903
    %905 = vmatmul.f32.gmra.mxu0 %v350
    %v906 = vpop.f32.mrf.mxu0
    %v907 = vadd.f32 %v629, %v906
    %908 = vmatmul.f32.gmra.mxu0 %v353
    %v909 = vpop.f32.mrf.mxu0
    %v910 = vadd.f32 %v632, %v909
    %911 = vmatmul.f32.gmra.mxu0 %v356
    %v912 = vpop.f32.mrf.mxu0
    %v913 = vadd.f32 %v635, %v912
    %914 = vmatmul.f32.gmra.mxu0 %v359
    %v915 = vpop.f32.mrf.mxu0
    %v916 = vadd.f32 %v638, %v915
    %917 = vmatmul.f32.gmra.mxu0 %v362
    %v918 = vpop.f32.mrf.mxu0
    %v919 = vadd.f32 %v641, %v918
    %920 = vmatmul.f32.gmra.mxu0 %v365
    %v921 = vpop.f32.mrf.mxu0
    %v922 = vadd.f32 %v644, %v921
    %923 = vmatmul.f32.gmra.mxu0 %v368
    %v924 = vpop.f32.mrf.mxu0
    %v925 = vadd.f32 %v647, %v924
    %926 = vmatmul.f32.gmra.mxu0 %v371
    %v927 = vpop.f32.mrf.mxu0
    %v928 = vadd.f32 %v650, %v927
    %929 = vmatmul.f32.gmra.mxu0 %v374
    %v930 = vpop.f32.mrf.mxu0
    %v931 = vadd.f32 %v653, %v930
    %932 = vmatmul.f32.gmra.mxu0 %v377
    %v933 = vpop.f32.mrf.mxu0
    %v934 = vadd.f32 %v656, %v933
    %935 = vmatmul.f32.gmra.mxu0 %v380
    %v936 = vpop.f32.mrf.mxu0
    %v937 = vadd.f32 %v659, %v936
    %938 = vmatmul.f32.gmra.mxu0 %v383
    %v939 = vpop.f32.mrf.mxu0
    %v940 = vadd.f32 %v662, %v939
    %941 = vmatmul.f32.gmra.mxu0 %v386
    %v942 = vpop.f32.mrf.mxu0
    %v943 = vadd.f32 %v665, %v942
    %944 = vmatmul.f32.gmra.mxu0 %v389
    %v945 = vpop.f32.mrf.mxu0
    %v946 = vadd.f32 %v668, %v945
    %947 = vmatmul.f32.gmra.mxu0 %v392
    %v948 = vpop.f32.mrf.mxu0
    %v949 = vadd.f32 %v671, %v948
    %950 = vmatmul.f32.gmra.mxu0 %v395
    %v951 = vpop.f32.mrf.mxu0
    %v952 = vadd.f32 %v674, %v951
    %953 = vmatmul.f32.gmra.mxu0 %v398
    %v954 = vpop.f32.mrf.mxu0
    %v955 = vadd.f32 %v677, %v954
    %956 = vmatmul.f32.gmra.mxu0 %v401
    %v957 = vpop.f32.mrf.mxu0
    %v958 = vadd.f32 %v680, %v957
    %959 = vmatmul.f32.gmra.mxu0 %v404
    %v960 = vpop.f32.mrf.mxu0
    %v961 = vadd.f32 %v683, %v960
    %962 = vmatmul.f32.gmra.mxu0 %v407
    %v963 = vpop.f32.mrf.mxu0
    %v964 = vadd.f32 %v686, %v963
    %965 = vmatmul.f32.gmra.mxu0 %v410
    %v966 = vpop.f32.mrf.mxu0
    %v967 = vadd.f32 %v689, %v966
    %968 = vmatmul.f32.gmra.mxu0 %v413
    %v969 = vpop.f32.mrf.mxu0
    %v970 = vadd.f32 %v692, %v969
    %971 = vmatmul.f32.gmra.mxu0 %v416
    %v972 = vpop.f32.mrf.mxu0
    %v973 = vadd.f32 %v695, %v972
    %974 = vmatmul.f32.gmra.mxu0 %v419
    %v975 = vpop.f32.mrf.mxu0
    %v976 = vadd.f32 %v698, %v975
    %977 = vmatmul.f32.gmra.mxu0 %v422
    %v978 = vpop.f32.mrf.mxu0
    %v979 = vadd.f32 %v701, %v978
    %980 = vmatmul.f32.gmra.mxu0 %v425
    %v981 = vpop.f32.mrf.mxu0
    %v982 = vadd.f32 %v704, %v981
    %983 = vmatmul.f32.gmra.mxu0 %v428
    %v984 = vpop.f32.mrf.mxu0
    %v985 = vadd.f32 %v707, %v984
    %986 = vmatmul.f32.gmra.mxu0 %v431
    %v987 = vpop.f32.mrf.mxu0
    %v988 = vadd.f32 %v710, %v987
    %989 = vmatmul.f32.gmra.mxu0 %v434
    %v990 = vpop.f32.mrf.mxu0
    %v991 = vadd.f32 %v713, %v990
    %992 = vmatmul.f32.gmra.mxu0 %v437
    %v993 = vpop.f32.mrf.mxu0
    %v994 = vadd.f32 %v716, %v993
    %995 = vmatmul.f32.gmra.mxu0 %v440
    %v996 = vpop.f32.mrf.mxu0
    %v997 = vadd.f32 %v719, %v996
    %998 = vmatmul.f32.gmra.mxu0 %v443
    %v999 = vpop.f32.mrf.mxu0
    %v1000 = vadd.f32 %v722, %v999
    %1001 = vmatmul.f32.gmra.mxu0 %v446
    %v1002 = vpop.f32.mrf.mxu0
    %v1003 = vadd.f32 %v725, %v1002
    %1004 = vmatmul.f32.gmra.mxu0 %v449
    %v1005 = vpop.f32.mrf.mxu0
    %v1006 = vadd.f32 %v728, %v1005
    %1007 = vmatmul.f32.gmra.mxu0 %v452
    %v1008 = vpop.f32.mrf.mxu0
    %v1009 = vadd.f32 %v731, %v1008
    %1010 = vmatmul.f32.gmra.mxu0 %v455
    %v1011 = vpop.f32.mrf.mxu0
    %v1012 = vadd.f32 %v734, %v1011
    %1013 = vmatmul.f32.gmra.mxu0 %v458
    %v1014 = vpop.f32.mrf.mxu0
    %v1015 = vadd.f32 %v737, %v1014
    %1016 = vmatmul.f32.gmra.mxu0 %v461
    %v1017 = vpop.f32.mrf.mxu0
    %v1018 = vadd.f32 %v740, %v1017
    %1019 = vmatmul.f32.gmra.mxu0 %v464
    %v1020 = vpop.f32.mrf.mxu0
    %v1021 = vadd.f32 %v743, %v1020
    %1022 = vmatmul.f32.gmra.mxu0 %v467
    %v1023 = vpop.f32.mrf.mxu0
    %v1024 = vadd.f32 %v746, %v1023
    %1025 = vmatmul.f32.gmra.mxu0 %v470
    %v1026 = vpop.f32.mrf.mxu0
    %v1027 = vadd.f32 %v749, %v1026
    %1028 = vmatmul.f32.gmra.mxu0 %v473
    %v1029 = vpop.f32.mrf.mxu0
    %v1030 = vadd.f32 %v752, %v1029
    %1031 = vmatmul.f32.gmra.mxu0 %v476
    %v1032 = vpop.f32.mrf.mxu0
    %v1033 = vadd.f32 %v755, %v1032
    %1034 = vdwg.mxu0
    %s1035 = scalar_lea.vmem [#allocation5], 8
    %v1036 = vld [vmem:[%s1035] sm:$0x7]
    %v1038 = vsel %vm225, %v221, 0
    %v1041 = vsel %vm481, %v1036, 0
    %1043 = vmatpush.msra.mxu0 0.0
    %1044 = vmatpush.msra.mxu0 0.0
    %1045 = vmatpush.msra.mxu0 0.0
    %1046 = vmatpush.msra.mxu0 0.0
    %1047 = vmatpush.msra.mxu0 0.0
    %1048 = vmatpush.msra.mxu0 0.0
    %1049 = vmatpush.msra.mxu0 0.0
    %1050 = vmatpush.msra.mxu0 0.0
    %1051 = vmatpush.msra.mxu0 0.0
    %1052 = vmatpush.msra.mxu0 0.0
    %1053 = vmatpush.msra.mxu0 0.0
    %1054 = vmatpush.msra.mxu0 0.0
    %1055 = vmatpush.msra.mxu0 0.0
    %1056 = vmatpush.msra.mxu0 0.0
    %1057 = vmatpush.msra.mxu0 0.0
    %1058 = vmatpush.msra.mxu0 %v1041
    %1059 = vmatmul.f32.gmra.mxu0 %v230
    %v1060 = vpop.f32.mrf.mxu0
    %v1061 = vadd.f32 0.0, %v1060
    %1062 = vmatmul.f32.gmra.mxu0 %v233
    %v1063 = vpop.f32.mrf.mxu0
    %v1064 = vadd.f32 0.0, %v1063
    %1065 = vmatmul.f32.gmra.mxu0 %v236
    %v1066 = vpop.f32.mrf.mxu0
    %v1067 = vadd.f32 0.0, %v1066
    %1068 = vmatmul.f32.gmra.mxu0 %v239
    %v1069 = vpop.f32.mrf.mxu0
    %v1070 = vadd.f32 0.0, %v1069
    %1071 = vmatmul.f32.gmra.mxu0 %v242
    %v1072 = vpop.f32.mrf.mxu0
    %v1073 = vadd.f32 0.0, %v1072
    %1074 = vmatmul.f32.gmra.mxu0 %v245
    %v1075 = vpop.f32.mrf.mxu0
    %v1076 = vadd.f32 0.0, %v1075
    %1077 = vmatmul.f32.gmra.mxu0 %v248
    %v1078 = vpop.f32.mrf.mxu0
    %v1079 = vadd.f32 0.0, %v1078
    %1080 = vmatmul.f32.gmra.mxu0 %v251
    %v1081 = vpop.f32.mrf.mxu0
    %v1082 = vadd.f32 0.0, %v1081
    %1083 = vmatmul.f32.gmra.mxu0 %v254
    %v1084 = vpop.f32.mrf.mxu0
    %v1085 = vadd.f32 0.0, %v1084
    %1086 = vmatmul.f32.gmra.mxu0 %v257
    %v1087 = vpop.f32.mrf.mxu0
    %v1088 = vadd.f32 0.0, %v1087
    %1089 = vmatmul.f32.gmra.mxu0 %v260
    %v1090 = vpop.f32.mrf.mxu0
    %v1091 = vadd.f32 0.0, %v1090
    %1092 = vmatmul.f32.gmra.mxu0 %v263
    %v1093 = vpop.f32.mrf.mxu0
    %v1094 = vadd.f32 0.0, %v1093
    %1095 = vmatmul.f32.gmra.mxu0 %v266
    %v1096 = vpop.f32.mrf.mxu0
    %v1097 = vadd.f32 0.0, %v1096
    %1098 = vmatmul.f32.gmra.mxu0 %v269
    %v1099 = vpop.f32.mrf.mxu0
    %v1100 = vadd.f32 0.0, %v1099
    %1101 = vmatmul.f32.gmra.mxu0 %v272
    %v1102 = vpop.f32.mrf.mxu0
    %v1103 = vadd.f32 0.0, %v1102
    %1104 = vmatmul.f32.gmra.mxu0 %v275
    %v1105 = vpop.f32.mrf.mxu0
    %v1106 = vadd.f32 0.0, %v1105
    %1107 = vmatmul.f32.gmra.mxu0 %v278
    %v1108 = vpop.f32.mrf.mxu0
    %v1109 = vadd.f32 0.0, %v1108
    %1110 = vmatmul.f32.gmra.mxu0 %v281
    %v1111 = vpop.f32.mrf.mxu0
    %v1112 = vadd.f32 0.0, %v1111
    %1113 = vmatmul.f32.gmra.mxu0 %v284
    %v1114 = vpop.f32.mrf.mxu0
    %v1115 = vadd.f32 0.0, %v1114
    %1116 = vmatmul.f32.gmra.mxu0 %v287
    %v1117 = vpop.f32.mrf.mxu0
    %v1118 = vadd.f32 0.0, %v1117
    %1119 = vmatmul.f32.gmra.mxu0 %v290
    %v1120 = vpop.f32.mrf.mxu0
    %v1121 = vadd.f32 0.0, %v1120
    %1122 = vmatmul.f32.gmra.mxu0 %v293
    %v1123 = vpop.f32.mrf.mxu0
    %v1124 = vadd.f32 0.0, %v1123
    %1125 = vmatmul.f32.gmra.mxu0 %v296
    %v1126 = vpop.f32.mrf.mxu0
    %v1127 = vadd.f32 0.0, %v1126
    %1128 = vmatmul.f32.gmra.mxu0 %v299
    %v1129 = vpop.f32.mrf.mxu0
    %v1130 = vadd.f32 0.0, %v1129
    %1131 = vmatmul.f32.gmra.mxu0 %v302
    %v1132 = vpop.f32.mrf.mxu0
    %v1133 = vadd.f32 0.0, %v1132
    %1134 = vmatmul.f32.gmra.mxu0 %v305
    %v1135 = vpop.f32.mrf.mxu0
    %v1136 = vadd.f32 0.0, %v1135
    %1137 = vmatmul.f32.gmra.mxu0 %v308
    %v1138 = vpop.f32.mrf.mxu0
    %v1139 = vadd.f32 0.0, %v1138
    %1140 = vmatmul.f32.gmra.mxu0 %v311
    %v1141 = vpop.f32.mrf.mxu0
    %v1142 = vadd.f32 0.0, %v1141
    %1143 = vmatmul.f32.gmra.mxu0 %v314
    %v1144 = vpop.f32.mrf.mxu0
    %v1145 = vadd.f32 0.0, %v1144
    %1146 = vmatmul.f32.gmra.mxu0 %v317
    %v1147 = vpop.f32.mrf.mxu0
    %v1148 = vadd.f32 0.0, %v1147
    %1149 = vmatmul.f32.gmra.mxu0 %v320
    %v1150 = vpop.f32.mrf.mxu0
    %v1151 = vadd.f32 0.0, %v1150
    %1152 = vmatmul.f32.gmra.mxu0 %v323
    %v1153 = vpop.f32.mrf.mxu0
    %v1154 = vadd.f32 0.0, %v1153
    %1155 = vmatmul.f32.gmra.mxu0 %v326
    %v1156 = vpop.f32.mrf.mxu0
    %v1157 = vadd.f32 0.0, %v1156
    %1158 = vmatmul.f32.gmra.mxu0 %v329
    %v1159 = vpop.f32.mrf.mxu0
    %v1160 = vadd.f32 0.0, %v1159
    %1161 = vmatmul.f32.gmra.mxu0 %v332
    %v1162 = vpop.f32.mrf.mxu0
    %v1163 = vadd.f32 0.0, %v1162
    %1164 = vmatmul.f32.gmra.mxu0 %v335
    %v1165 = vpop.f32.mrf.mxu0
    %v1166 = vadd.f32 0.0, %v1165
    %1167 = vmatmul.f32.gmra.mxu0 %v338
    %v1168 = vpop.f32.mrf.mxu0
    %v1169 = vadd.f32 0.0, %v1168
    %1170 = vmatmul.f32.gmra.mxu0 %v341
    %v1171 = vpop.f32.mrf.mxu0
    %v1172 = vadd.f32 0.0, %v1171
    %1173 = vmatmul.f32.gmra.mxu0 %v344
    %v1174 = vpop.f32.mrf.mxu0
    %v1175 = vadd.f32 0.0, %v1174
    %1176 = vmatmul.f32.gmra.mxu0 %v347
    %v1177 = vpop.f32.mrf.mxu0
    %v1178 = vadd.f32 0.0, %v1177
    %1179 = vmatmul.f32.gmra.mxu0 %v350
    %v1180 = vpop.f32.mrf.mxu0
    %v1181 = vadd.f32 0.0, %v1180
    %1182 = vmatmul.f32.gmra.mxu0 %v353
    %v1183 = vpop.f32.mrf.mxu0
    %v1184 = vadd.f32 0.0, %v1183
    %1185 = vmatmul.f32.gmra.mxu0 %v356
    %v1186 = vpop.f32.mrf.mxu0
    %v1187 = vadd.f32 0.0, %v1186
    %1188 = vmatmul.f32.gmra.mxu0 %v359
    %v1189 = vpop.f32.mrf.mxu0
    %v1190 = vadd.f32 0.0, %v1189
    %1191 = vmatmul.f32.gmra.mxu0 %v362
    %v1192 = vpop.f32.mrf.mxu0
    %v1193 = vadd.f32 0.0, %v1192
    %1194 = vmatmul.f32.gmra.mxu0 %v365
    %v1195 = vpop.f32.mrf.mxu0
    %v1196 = vadd.f32 0.0, %v1195
    %1197 = vmatmul.f32.gmra.mxu0 %v368
    %v1198 = vpop.f32.mrf.mxu0
    %v1199 = vadd.f32 0.0, %v1198
    %1200 = vmatmul.f32.gmra.mxu0 %v371
    %v1201 = vpop.f32.mrf.mxu0
    %v1202 = vadd.f32 0.0, %v1201
    %1203 = vmatmul.f32.gmra.mxu0 %v374
    %v1204 = vpop.f32.mrf.mxu0
    %v1205 = vadd.f32 0.0, %v1204
    %1206 = vmatmul.f32.gmra.mxu0 %v377
    %v1207 = vpop.f32.mrf.mxu0
    %v1208 = vadd.f32 0.0, %v1207
    %1209 = vmatmul.f32.gmra.mxu0 %v380
    %v1210 = vpop.f32.mrf.mxu0
    %v1211 = vadd.f32 0.0, %v1210
    %1212 = vmatmul.f32.gmra.mxu0 %v383
    %v1213 = vpop.f32.mrf.mxu0
    %v1214 = vadd.f32 0.0, %v1213
    %1215 = vmatmul.f32.gmra.mxu0 %v386
    %v1216 = vpop.f32.mrf.mxu0
    %v1217 = vadd.f32 0.0, %v1216
    %1218 = vmatmul.f32.gmra.mxu0 %v389
    %v1219 = vpop.f32.mrf.mxu0
    %v1220 = vadd.f32 0.0, %v1219
    %1221 = vmatmul.f32.gmra.mxu0 %v392
    %v1222 = vpop.f32.mrf.mxu0
    %v1223 = vadd.f32 0.0, %v1222
    %1224 = vmatmul.f32.gmra.mxu0 %v395
    %v1225 = vpop.f32.mrf.mxu0
    %v1226 = vadd.f32 0.0, %v1225
    %1227 = vmatmul.f32.gmra.mxu0 %v398
    %v1228 = vpop.f32.mrf.mxu0
    %v1229 = vadd.f32 0.0, %v1228
    %1230 = vmatmul.f32.gmra.mxu0 %v401
    %v1231 = vpop.f32.mrf.mxu0
    %v1232 = vadd.f32 0.0, %v1231
    %1233 = vmatmul.f32.gmra.mxu0 %v404
    %v1234 = vpop.f32.mrf.mxu0
    %v1235 = vadd.f32 0.0, %v1234
    %1236 = vmatmul.f32.gmra.mxu0 %v407
    %v1237 = vpop.f32.mrf.mxu0
    %v1238 = vadd.f32 0.0, %v1237
    %1239 = vmatmul.f32.gmra.mxu0 %v410
    %v1240 = vpop.f32.mrf.mxu0
    %v1241 = vadd.f32 0.0, %v1240
    %1242 = vmatmul.f32.gmra.mxu0 %v413
    %v1243 = vpop.f32.mrf.mxu0
    %v1244 = vadd.f32 0.0, %v1243
    %1245 = vmatmul.f32.gmra.mxu0 %v416
    %v1246 = vpop.f32.mrf.mxu0
    %v1247 = vadd.f32 0.0, %v1246
    %1248 = vmatmul.f32.gmra.mxu0 %v419
    %v1249 = vpop.f32.mrf.mxu0
    %v1250 = vadd.f32 0.0, %v1249
    %1251 = vmatmul.f32.gmra.mxu0 %v422
    %v1252 = vpop.f32.mrf.mxu0
    %v1253 = vadd.f32 0.0, %v1252
    %1254 = vmatmul.f32.gmra.mxu0 %v425
    %v1255 = vpop.f32.mrf.mxu0
    %v1256 = vadd.f32 0.0, %v1255
    %1257 = vmatmul.f32.gmra.mxu0 %v428
    %v1258 = vpop.f32.mrf.mxu0
    %v1259 = vadd.f32 0.0, %v1258
    %1260 = vmatmul.f32.gmra.mxu0 %v431
    %v1261 = vpop.f32.mrf.mxu0
    %v1262 = vadd.f32 0.0, %v1261
    %1263 = vmatmul.f32.gmra.mxu0 %v434
    %v1264 = vpop.f32.mrf.mxu0
    %v1265 = vadd.f32 0.0, %v1264
    %1266 = vmatmul.f32.gmra.mxu0 %v437
    %v1267 = vpop.f32.mrf.mxu0
    %v1268 = vadd.f32 0.0, %v1267
    %1269 = vmatmul.f32.gmra.mxu0 %v440
    %v1270 = vpop.f32.mrf.mxu0
    %v1271 = vadd.f32 0.0, %v1270
    %1272 = vmatmul.f32.gmra.mxu0 %v443
    %v1273 = vpop.f32.mrf.mxu0
    %v1274 = vadd.f32 0.0, %v1273
    %1275 = vmatmul.f32.gmra.mxu0 %v446
    %v1276 = vpop.f32.mrf.mxu0
    %v1277 = vadd.f32 0.0, %v1276
    %1278 = vmatmul.f32.gmra.mxu0 %v449
    %v1279 = vpop.f32.mrf.mxu0
    %v1280 = vadd.f32 0.0, %v1279
    %1281 = vmatmul.f32.gmra.mxu0 %v452
    %v1282 = vpop.f32.mrf.mxu0
    %v1283 = vadd.f32 0.0, %v1282
    %1284 = vmatmul.f32.gmra.mxu0 %v455
    %v1285 = vpop.f32.mrf.mxu0
    %v1286 = vadd.f32 0.0, %v1285
    %1287 = vmatmul.f32.gmra.mxu0 %v458
    %v1288 = vpop.f32.mrf.mxu0
    %v1289 = vadd.f32 0.0, %v1288
    %1290 = vmatmul.f32.gmra.mxu0 %v461
    %v1291 = vpop.f32.mrf.mxu0
    %v1292 = vadd.f32 0.0, %v1291
    %1293 = vmatmul.f32.gmra.mxu0 %v464
    %v1294 = vpop.f32.mrf.mxu0
    %v1295 = vadd.f32 0.0, %v1294
    %1296 = vmatmul.f32.gmra.mxu0 %v467
    %v1297 = vpop.f32.mrf.mxu0
    %v1298 = vadd.f32 0.0, %v1297
    %1299 = vmatmul.f32.gmra.mxu0 %v470
    %v1300 = vpop.f32.mrf.mxu0
    %v1301 = vadd.f32 0.0, %v1300
    %1302 = vmatmul.f32.gmra.mxu0 %v473
    %v1303 = vpop.f32.mrf.mxu0
    %v1304 = vadd.f32 0.0, %v1303
    %1305 = vmatmul.f32.gmra.mxu0 %v476
    %v1306 = vpop.f32.mrf.mxu0
    %v1307 = vadd.f32 0.0, %v1306
    %1308 = vmatmul.f32.gmra.mxu0 %v479
    %v1309 = vpop.f32.mrf.mxu0
    %v1310 = vadd.f32 0.0, %v1309
    %1311 = vmatmul.f32.gmra.mxu0 %v1038
    %v1312 = vpop.f32.mrf.mxu0
    %v1313 = vadd.f32 0.0, %v1312
    %1314 = vdwg.mxu0
    %v1315 = vadd.f32 %v781, %v1061
    %v1316 = vadd.f32 %v784, %v1064
    %v1317 = vadd.f32 %v787, %v1067
    %v1318 = vadd.f32 %v790, %v1070
    %v1319 = vadd.f32 %v793, %v1073
    %v1320 = vadd.f32 %v796, %v1076
    %v1321 = vadd.f32 %v799, %v1079
    %v1322 = vadd.f32 %v802, %v1082
    %v1323 = vadd.f32 %v805, %v1085
    %v1324 = vadd.f32 %v808, %v1088
    %v1325 = vadd.f32 %v811, %v1091
    %v1326 = vadd.f32 %v814, %v1094
    %v1327 = vadd.f32 %v817, %v1097
    %v1328 = vadd.f32 %v820, %v1100
    %v1329 = vadd.f32 %v823, %v1103
    %v1330 = vadd.f32 %v826, %v1106
    %v1331 = vadd.f32 %v829, %v1109
    %v1332 = vadd.f32 %v832, %v1112
    %v1333 = vadd.f32 %v835, %v1115
    %v1334 = vadd.f32 %v838, %v1118
    %v1335 = vadd.f32 %v841, %v1121
    %v1336 = vadd.f32 %v844, %v1124
    %v1337 = vadd.f32 %v847, %v1127
    %v1338 = vadd.f32 %v850, %v1130
    %v1339 = vadd.f32 %v853, %v1133
    %v1340 = vadd.f32 %v856, %v1136
    %v1341 = vadd.f32 %v859, %v1139
    %v1342 = vadd.f32 %v862, %v1142
    %v1343 = vadd.f32 %v865, %v1145
    %v1344 = vadd.f32 %v868, %v1148
    %v1345 = vadd.f32 %v871, %v1151
    %v1346 = vadd.f32 %v874, %v1154
    %v1347 = vadd.f32 %v877, %v1157
    %v1348 = vadd.f32 %v880, %v1160
    %v1349 = vadd.f32 %v883, %v1163
    %v1350 = vadd.f32 %v886, %v1166
    %v1351 = vadd.f32 %v889, %v1169
    %v1352 = vadd.f32 %v892, %v1172
    %v1353 = vadd.f32 %v895, %v1175
    %v1354 = vadd.f32 %v898, %v1178
    %v1355 = vadd.f32 %v901, %v1181
    %v1356 = vadd.f32 %v904, %v1184
    %v1357 = vadd.f32 %v907, %v1187
    %v1358 = vadd.f32 %v910, %v1190
    %v1359 = vadd.f32 %v913, %v1193
    %v1360 = vadd.f32 %v916, %v1196
    %v1361 = vadd.f32 %v919, %v1199
    %v1362 = vadd.f32 %v922, %v1202
    %v1363 = vadd.f32 %v925, %v1205
    %v1364 = vadd.f32 %v928, %v1208
    %v1365 = vadd.f32 %v931, %v1211
    %v1366 = vadd.f32 %v934, %v1214
    %v1367 = vadd.f32 %v937, %v1217
    %v1368 = vadd.f32 %v940, %v1220
    %v1369 = vadd.f32 %v943, %v1223
    %v1370 = vadd.f32 %v946, %v1226
    %v1371 = vadd.f32 %v949, %v1229
    %v1372 = vadd.f32 %v952, %v1232
    %v1373 = vadd.f32 %v955, %v1235
    %v1374 = vadd.f32 %v958, %v1238
    %v1375 = vadd.f32 %v961, %v1241
    %v1376 = vadd.f32 %v964, %v1244
    %v1377 = vadd.f32 %v967, %v1247
    %v1378 = vadd.f32 %v970, %v1250
    %v1379 = vadd.f32 %v973, %v1253
    %v1380 = vadd.f32 %v976, %v1256
    %v1381 = vadd.f32 %v979, %v1259
    %v1382 = vadd.f32 %v982, %v1262
    %v1383 = vadd.f32 %v985, %v1265
    %v1384 = vadd.f32 %v988, %v1268
    %v1385 = vadd.f32 %v991, %v1271
    %v1386 = vadd.f32 %v994, %v1274
    %v1387 = vadd.f32 %v997, %v1277
    %v1388 = vadd.f32 %v1000, %v1280
    %v1389 = vadd.f32 %v1003, %v1283
    %v1390 = vadd.f32 %v1006, %v1286
    %v1391 = vadd.f32 %v1009, %v1289
    %v1392 = vadd.f32 %v1012, %v1292
    %v1393 = vadd.f32 %v1015, %v1295
    %v1394 = vadd.f32 %v1018, %v1298
    %v1395 = vadd.f32 %v1021, %v1301
    %v1396 = vadd.f32 %v1024, %v1304
    %v1397 = vadd.f32 %v1027, %v1307
    %v1398 = vadd.f32 %v1030, %v1310
    %v1399 = vadd.f32 %v1033, %v1313
    %v1400 = vld [vmem:[#allocation7] sm:$0x1]
    %v1402 = vperm.slane %v1400, 0
    %v1404 = vadd.f32 %v1315, %v1402
    %v1405 = vadd.f32 %v1316, %v1402
    %v1406 = vadd.f32 %v1317, %v1402
    %v1407 = vadd.f32 %v1318, %v1402
    %v1408 = vadd.f32 %v1319, %v1402
    %v1409 = vadd.f32 %v1320, %v1402
    %v1410 = vadd.f32 %v1321, %v1402
    %v1411 = vadd.f32 %v1322, %v1402
    %v1412 = vadd.f32 %v1323, %v1402
    %v1413 = vadd.f32 %v1324, %v1402
    %v1414 = vadd.f32 %v1325, %v1402
    %v1415 = vadd.f32 %v1326, %v1402
    %v1416 = vadd.f32 %v1327, %v1402
    %v1417 = vadd.f32 %v1328, %v1402
    %v1418 = vadd.f32 %v1329, %v1402
    %v1419 = vadd.f32 %v1330, %v1402
    %v1420 = vadd.f32 %v1331, %v1402
    %v1421 = vadd.f32 %v1332, %v1402
    %v1422 = vadd.f32 %v1333, %v1402
    %v1423 = vadd.f32 %v1334, %v1402
    %v1424 = vadd.f32 %v1335, %v1402
    %v1425 = vadd.f32 %v1336, %v1402
    %v1426 = vadd.f32 %v1337, %v1402
    %v1427 = vadd.f32 %v1338, %v1402
    %v1428 = vadd.f32 %v1339, %v1402
    %v1429 = vadd.f32 %v1340, %v1402
    %v1430 = vadd.f32 %v1341, %v1402
    %v1431 = vadd.f32 %v1342, %v1402
    %v1432 = vadd.f32 %v1343, %v1402
    %v1433 = vadd.f32 %v1344, %v1402
    %v1434 = vadd.f32 %v1345, %v1402
    %v1435 = vadd.f32 %v1346, %v1402
    %v1436 = vadd.f32 %v1347, %v1402
    %v1437 = vadd.f32 %v1348, %v1402
    %v1438 = vadd.f32 %v1349, %v1402
    %v1439 = vadd.f32 %v1350, %v1402
    %v1440 = vadd.f32 %v1351, %v1402
    %v1441 = vadd.f32 %v1352, %v1402
    %v1442 = vadd.f32 %v1353, %v1402
    %v1443 = vadd.f32 %v1354, %v1402
    %v1444 = vadd.f32 %v1355, %v1402
    %v1445 = vadd.f32 %v1356, %v1402
    %v1446 = vadd.f32 %v1357, %v1402
    %v1447 = vadd.f32 %v1358, %v1402
    %v1448 = vadd.f32 %v1359, %v1402
    %v1449 = vadd.f32 %v1360, %v1402
    %v1450 = vadd.f32 %v1361, %v1402
    %v1451 = vadd.f32 %v1362, %v1402
    %v1452 = vadd.f32 %v1363, %v1402
    %v1453 = vadd.f32 %v1364, %v1402
    %v1454 = vadd.f32 %v1365, %v1402
    %v1455 = vadd.f32 %v1366, %v1402
    %v1456 = vadd.f32 %v1367, %v1402
    %v1457 = vadd.f32 %v1368, %v1402
    %v1458 = vadd.f32 %v1369, %v1402
    %v1459 = vadd.f32 %v1370, %v1402
    %v1460 = vadd.f32 %v1371, %v1402
    %v1461 = vadd.f32 %v1372, %v1402
    %v1462 = vadd.f32 %v1373, %v1402
    %v1463 = vadd.f32 %v1374, %v1402
    %v1464 = vadd.f32 %v1375, %v1402
    %v1465 = vadd.f32 %v1376, %v1402
    %v1466 = vadd.f32 %v1377, %v1402
    %v1467 = vadd.f32 %v1378, %v1402
    %v1468 = vadd.f32 %v1379, %v1402
    %v1469 = vadd.f32 %v1380, %v1402
    %v1470 = vadd.f32 %v1381, %v1402
    %v1471 = vadd.f32 %v1382, %v1402
    %v1472 = vadd.f32 %v1383, %v1402
    %v1473 = vadd.f32 %v1384, %v1402
    %v1474 = vadd.f32 %v1385, %v1402
    %v1475 = vadd.f32 %v1386, %v1402
    %v1476 = vadd.f32 %v1387, %v1402
    %v1477 = vadd.f32 %v1388, %v1402
    %v1478 = vadd.f32 %v1389, %v1402
    %v1479 = vadd.f32 %v1390, %v1402
    %v1480 = vadd.f32 %v1391, %v1402
    %v1481 = vadd.f32 %v1392, %v1402
    %v1482 = vadd.f32 %v1393, %v1402
    %v1483 = vadd.f32 %v1394, %v1402
    %v1484 = vadd.f32 %v1395, %v1402
    %v1485 = vadd.f32 %v1396, %v1402
    %v1486 = vadd.f32 %v1397, %v1402
    %v1487 = vadd.f32 %v1398, %v1402
    %v1488 = vadd.f32 %v1399, %v1402
    %v1489 = vmax.f32 %v1404, 0.0
    %v1490 = vmax.f32 %v1405, 0.0
    %v1491 = vmax.f32 %v1406, 0.0
    %v1492 = vmax.f32 %v1407, 0.0
    %v1493 = vmax.f32 %v1408, 0.0
    %v1494 = vmax.f32 %v1409, 0.0
    %v1495 = vmax.f32 %v1410, 0.0
    %v1496 = vmax.f32 %v1411, 0.0
    %v1497 = vmax.f32 %v1412, 0.0
    %v1498 = vmax.f32 %v1413, 0.0
    %v1499 = vmax.f32 %v1414, 0.0
    %v1500 = vmax.f32 %v1415, 0.0
    %v1501 = vmax.f32 %v1416, 0.0
    %v1502 = vmax.f32 %v1417, 0.0
    %v1503 = vmax.f32 %v1418, 0.0
    %v1504 = vmax.f32 %v1419, 0.0
    %v1505 = vmax.f32 %v1420, 0.0
    %v1506 = vmax.f32 %v1421, 0.0
    %v1507 = vmax.f32 %v1422, 0.0
    %v1508 = vmax.f32 %v1423, 0.0
    %v1509 = vmax.f32 %v1424, 0.0
    %v1510 = vmax.f32 %v1425, 0.0
    %v1511 = vmax.f32 %v1426, 0.0
    %v1512 = vmax.f32 %v1427, 0.0
    %v1513 = vmax.f32 %v1428, 0.0
    %v1514 = vmax.f32 %v1429, 0.0
    %v1515 = vmax.f32 %v1430, 0.0
    %v1516 = vmax.f32 %v1431, 0.0
    %v1517 = vmax.f32 %v1432, 0.0
    %v1518 = vmax.f32 %v1433, 0.0
    %v1519 = vmax.f32 %v1434, 0.0
    %v1520 = vmax.f32 %v1435, 0.0
    %v1521 = vmax.f32 %v1436, 0.0
    %v1522 = vmax.f32 %v1437, 0.0
    %v1523 = vmax.f32 %v1438, 0.0
    %v1524 = vmax.f32 %v1439, 0.0
    %v1525 = vmax.f32 %v1440, 0.0
    %v1526 = vmax.f32 %v1441, 0.0
    %v1527 = vmax.f32 %v1442, 0.0
    %v1528 = vmax.f32 %v1443, 0.0
    %v1529 = vmax.f32 %v1444, 0.0
    %v1530 = vmax.f32 %v1445, 0.0
    %v1531 = vmax.f32 %v1446, 0.0
    %v1532 = vmax.f32 %v1447, 0.0
    %v1533 = vmax.f32 %v1448, 0.0
    %v1534 = vmax.f32 %v1449, 0.0
    %v1535 = vmax.f32 %v1450, 0.0
    %v1536 = vmax.f32 %v1451, 0.0
    %v1537 = vmax.f32 %v1452, 0.0
    %v1538 = vmax.f32 %v1453, 0.0
    %v1539 = vmax.f32 %v1454, 0.0
    %v1540 = vmax.f32 %v1455, 0.0
    %v1541 = vmax.f32 %v1456, 0.0
    %v1542 = vmax.f32 %v1457, 0.0
    %v1543 = vmax.f32 %v1458, 0.0
    %v1544 = vmax.f32 %v1459, 0.0
    %v1545 = vmax.f32 %v1460, 0.0
    %v1546 = vmax.f32 %v1461, 0.0
    %v1547 = vmax.f32 %v1462, 0.0
    %v1548 = vmax.f32 %v1463, 0.0
    %v1549 = vmax.f32 %v1464, 0.0
    %v1550 = vmax.f32 %v1465, 0.0
    %v1551 = vmax.f32 %v1466, 0.0
    %v1552 = vmax.f32 %v1467, 0.0
    %v1553 = vmax.f32 %v1468, 0.0
    %v1554 = vmax.f32 %v1469, 0.0
    %v1555 = vmax.f32 %v1470, 0.0
    %v1556 = vmax.f32 %v1471, 0.0
    %v1557 = vmax.f32 %v1472, 0.0
    %v1558 = vmax.f32 %v1473, 0.0
    %v1559 = vmax.f32 %v1474, 0.0
    %v1560 = vmax.f32 %v1475, 0.0
    %v1561 = vmax.f32 %v1476, 0.0
    %v1562 = vmax.f32 %v1477, 0.0
    %v1563 = vmax.f32 %v1478, 0.0
    %v1564 = vmax.f32 %v1479, 0.0
    %v1565 = vmax.f32 %v1480, 0.0
    %v1566 = vmax.f32 %v1481, 0.0
    %v1567 = vmax.f32 %v1482, 0.0
    %v1568 = vmax.f32 %v1483, 0.0
    %v1569 = vmax.f32 %v1484, 0.0
    %v1570 = vmax.f32 %v1485, 0.0
    %v1571 = vmax.f32 %v1486, 0.0
    %v1572 = vmax.f32 %v1487, 0.0
    %v1573 = vmax.f32 %v1488, 0.0
    %vm1574 = vcmask 392192
    %1575 = vst.msk [vmem:[#allocation2] sm:$0xff] %vm1574, 0.0
    %1576 = vst.msk [vmem:[#allocation2 + $0x8] sm:$0xff] %vm1574, %v1489
    %1577 = vst.msk [vmem:[#allocation2 + $0x10] sm:$0xff] %vm1574, %v1490
    %1578 = vst.msk [vmem:[#allocation2 + $0x18] sm:$0xff] %vm1574, %v1491
    %1579 = vst.msk [vmem:[#allocation2 + $0x20] sm:$0xff] %vm1574, %v1492
    %1580 = vst.msk [vmem:[#allocation2 + $0x28] sm:$0xff] %vm1574, %v1493
    %1581 = vst.msk [vmem:[#allocation2 + $0x30] sm:$0xff] %vm1574, %v1494
    %1582 = vst.msk [vmem:[#allocation2 + $0x38] sm:$0xff] %vm1574, %v1495
    %1583 = vst.msk [vmem:[#allocation2 + $0x40] sm:$0xff] %vm1574, %v1496
    %1584 = vst.msk [vmem:[#allocation2 + $0x48] sm:$0xff] %vm1574, %v1497
    %1585 = vst.msk [vmem:[#allocation2 + $0x50] sm:$0xff] %vm1574, %v1498
    %1586 = vst.msk [vmem:[#allocation2 + $0x58] sm:$0xff] %vm1574, %v1499
    %1587 = vst.msk [vmem:[#allocation2 + $0x60] sm:$0xff] %vm1574, %v1500
    %1588 = vst.msk [vmem:[#allocation2 + $0x68] sm:$0xff] %vm1574, %v1501
    %1589 = vst.msk [vmem:[#allocation2 + $0x70] sm:$0xff] %vm1574, %v1502
    %1590 = vst.msk [vmem:[#allocation2 + $0x78] sm:$0xff] %vm1574, %v1503
    %1591 = vst.msk [vmem:[#allocation2 + $0x80] sm:$0xff] %vm1574, %v1504
    %1592 = vst.msk [vmem:[#allocation2 + $0x88] sm:$0xff] %vm1574, %v1505
    %1593 = vst.msk [vmem:[#allocation2 + $0x90] sm:$0xff] %vm1574, %v1506
    %1594 = vst.msk [vmem:[#allocation2 + $0x98] sm:$0xff] %vm1574, %v1507
    %1595 = vst.msk [vmem:[#allocation2 + $0xa0] sm:$0xff] %vm1574, %v1508
    %1596 = vst.msk [vmem:[#allocation2 + $0xa8] sm:$0xff] %vm1574, %v1509
    %1597 = vst.msk [vmem:[#allocation2 + $0xb0] sm:$0xff] %vm1574, %v1510
    %1598 = vst.msk [vmem:[#allocation2 + $0xb8] sm:$0xff] %vm1574, %v1511
    %1599 = vst.msk [vmem:[#allocation2 + $0xc0] sm:$0xff] %vm1574, %v1512
    %1600 = vst.msk [vmem:[#allocation2 + $0xc8] sm:$0xff] %vm1574, %v1513
    %1601 = vst.msk [vmem:[#allocation2 + $0xd0] sm:$0xff] %vm1574, %v1514
    %1602 = vst.msk [vmem:[#allocation2 + $0xd8] sm:$0xff] %vm1574, %v1515
    %1603 = vst.msk [vmem:[#allocation2 + $0xe0] sm:$0xff] %vm1574, %v1516
    %1604 = vst.msk [vmem:[#allocation2 + $0xe8] sm:$0xff] %vm1574, %v1517
    %1605 = vst.msk [vmem:[#allocation2 + $0xf0] sm:$0xff] %vm1574, %v1518
    %1606 = vst.msk [vmem:[#allocation2 + $0xf8] sm:$0xff] %vm1574, %v1519
    %1607 = vst.msk [vmem:[#allocation2 + $0x100] sm:$0xff] %vm1574, %v1520
    %1608 = vst.msk [vmem:[#allocation2 + $0x108] sm:$0xff] %vm1574, %v1521
    %1609 = vst.msk [vmem:[#allocation2 + $0x110] sm:$0xff] %vm1574, %v1522
    %1610 = vst.msk [vmem:[#allocation2 + $0x118] sm:$0xff] %vm1574, %v1523
    %1611 = vst.msk [vmem:[#allocation2 + $0x120] sm:$0xff] %vm1574, %v1524
    %1612 = vst.msk [vmem:[#allocation2 + $0x128] sm:$0xff] %vm1574, %v1525
    %1613 = vst.msk [vmem:[#allocation2 + $0x130] sm:$0xff] %vm1574, %v1526
    %1614 = vst.msk [vmem:[#allocation2 + $0x138] sm:$0xff] %vm1574, %v1527
    %1615 = vst.msk [vmem:[#allocation2 + $0x140] sm:$0xff] %vm1574, %v1528
    %1616 = vst.msk [vmem:[#allocation2 + $0x148] sm:$0xff] %vm1574, %v1529
    %1617 = vst.msk [vmem:[#allocation2 + $0x150] sm:$0xff] %vm1574, %v1530
    %1618 = vst.msk [vmem:[#allocation2 + $0x158] sm:$0xff] %vm1574, %v1531
    %1619 = vst.msk [vmem:[#allocation2 + $0x160] sm:$0xff] %vm1574, %v1532
    %1620 = vst.msk [vmem:[#allocation2 + $0x168] sm:$0xff] %vm1574, %v1533
    %1621 = vst.msk [vmem:[#allocation2 + $0x170] sm:$0xff] %vm1574, %v1534
    %1622 = vst.msk [vmem:[#allocation2 + $0x178] sm:$0xff] %vm1574, %v1535
    %1623 = vst.msk [vmem:[#allocation2 + $0x180] sm:$0xff] %vm1574, %v1536
    %1624 = vst.msk [vmem:[#allocation2 + $0x188] sm:$0xff] %vm1574, %v1537
    %1625 = vst.msk [vmem:[#allocation2 + $0x190] sm:$0xff] %vm1574, %v1538
    %1626 = vst.msk [vmem:[#allocation2 + $0x198] sm:$0xff] %vm1574, %v1539
    %1627 = vst.msk [vmem:[#allocation2 + $0x1a0] sm:$0xff] %vm1574, %v1540
    %1628 = vst.msk [vmem:[#allocation2 + $0x1a8] sm:$0xff] %vm1574, %v1541
    %1629 = vst.msk [vmem:[#allocation2 + $0x1b0] sm:$0xff] %vm1574, %v1542
    %1630 = vst.msk [vmem:[#allocation2 + $0x1b8] sm:$0xff] %vm1574, %v1543
    %1631 = vst.msk [vmem:[#allocation2 + $0x1c0] sm:$0xff] %vm1574, %v1544
    %1632 = vst.msk [vmem:[#allocation2 + $0x1c8] sm:$0xff] %vm1574, %v1545
    %1633 = vst.msk [vmem:[#allocation2 + $0x1d0] sm:$0xff] %vm1574, %v1546
    %1634 = vst.msk [vmem:[#allocation2 + $0x1d8] sm:$0xff] %vm1574, %v1547
    %1635 = vst.msk [vmem:[#allocation2 + $0x1e0] sm:$0xff] %vm1574, %v1548
    %1636 = vst.msk [vmem:[#allocation2 + $0x1e8] sm:$0xff] %vm1574, %v1549
    %1637 = vst.msk [vmem:[#allocation2 + $0x1f0] sm:$0xff] %vm1574, %v1550
    %1638 = vst.msk [vmem:[#allocation2 + $0x1f8] sm:$0xff] %vm1574, %v1551
    %1639 = vst.msk [vmem:[#allocation2 + $0x200] sm:$0xff] %vm1574, %v1552
    %1640 = vst.msk [vmem:[#allocation2 + $0x208] sm:$0xff] %vm1574, %v1553
    %1641 = vst.msk [vmem:[#allocation2 + $0x210] sm:$0xff] %vm1574, %v1554
    %1642 = vst.msk [vmem:[#allocation2 + $0x218] sm:$0xff] %vm1574, %v1555
    %1643 = vst.msk [vmem:[#allocation2 + $0x220] sm:$0xff] %vm1574, %v1556
    %1644 = vst.msk [vmem:[#allocation2 + $0x228] sm:$0xff] %vm1574, %v1557
    %1645 = vst.msk [vmem:[#allocation2 + $0x230] sm:$0xff] %vm1574, %v1558
    %1646 = vst.msk [vmem:[#allocation2 + $0x238] sm:$0xff] %vm1574, %v1559
    %1647 = vst.msk [vmem:[#allocation2 + $0x240] sm:$0xff] %vm1574, %v1560
    %1648 = vst.msk [vmem:[#allocation2 + $0x248] sm:$0xff] %vm1574, %v1561
    %1649 = vst.msk [vmem:[#allocation2 + $0x250] sm:$0xff] %vm1574, %v1562
    %1650 = vst.msk [vmem:[#allocation2 + $0x258] sm:$0xff] %vm1574, %v1563
    %1651 = vst.msk [vmem:[#allocation2 + $0x260] sm:$0xff] %vm1574, %v1564
    %1652 = vst.msk [vmem:[#allocation2 + $0x268] sm:$0xff] %vm1574, %v1565
    %1653 = vst.msk [vmem:[#allocation2 + $0x270] sm:$0xff] %vm1574, %v1566
    %1654 = vst.msk [vmem:[#allocation2 + $0x278] sm:$0xff] %vm1574, %v1567
    %1655 = vst.msk [vmem:[#allocation2 + $0x280] sm:$0xff] %vm1574, %v1568
    %1656 = vst.msk [vmem:[#allocation2 + $0x288] sm:$0xff] %vm1574, %v1569
    %1657 = vst.msk [vmem:[#allocation2 + $0x290] sm:$0xff] %vm1574, %v1570
    %1658 = vst.msk [vmem:[#allocation2 + $0x298] sm:$0xff] %vm1574, %v1571
    %1659 = vst.msk [vmem:[#allocation2 + $0x2a0] sm:$0xff] %vm1574, %v1572
    %1660 = vst.msk [vmem:[#allocation2 + $0x2a8] sm:$0xff] %vm1574, %v1573
    %1661 = vst.msk [vmem:[#allocation2 + $0x2b0] sm:$0xff] %vm1574, 0.0
    %v1662 = vld [vmem:[#allocation2] sm:$0xff]
    %v1663 = vld [vmem:[#allocation2 + $0x8] sm:$0xff]
    %v1664 = vld [vmem:[#allocation2 + $0x10] sm:$0xff]
    %v1665 = vld [vmem:[#allocation2 + $0x18] sm:$0xff]
    %v1666 = vld [vmem:[#allocation2 + $0x20] sm:$0xff]
    %v1667 = vld [vmem:[#allocation2 + $0x28] sm:$0xff]
    %v1668 = vld [vmem:[#allocation2 + $0x30] sm:$0xff]
    %v1669 = vld [vmem:[#allocation2 + $0x38] sm:$0xff]
    %v1670 = vld [vmem:[#allocation2 + $0x40] sm:$0xff]
    %v1671 = vld [vmem:[#allocation2 + $0x48] sm:$0xff]
    %v1672 = vld [vmem:[#allocation2 + $0x50] sm:$0xff]
    %v1673 = vld [vmem:[#allocation2 + $0x58] sm:$0xff]
    %v1674 = vld [vmem:[#allocation2 + $0x60] sm:$0xff]
    %v1675 = vld [vmem:[#allocation2 + $0x68] sm:$0xff]
    %v1676 = vld [vmem:[#allocation2 + $0x70] sm:$0xff]
    %v1677 = vld [vmem:[#allocation2 + $0x78] sm:$0xff]
    %v1678 = vld [vmem:[#allocation2 + $0x80] sm:$0xff]
    %v1679 = vld [vmem:[#allocation2 + $0x88] sm:$0xff]
    %v1680 = vld [vmem:[#allocation2 + $0x90] sm:$0xff]
    %v1681 = vld [vmem:[#allocation2 + $0x98] sm:$0xff]
    %v1682 = vld [vmem:[#allocation2 + $0xa0] sm:$0xff]
    %v1683 = vld [vmem:[#allocation2 + $0xa8] sm:$0xff]
    %v1684 = vld [vmem:[#allocation2 + $0xb0] sm:$0xff]
    %v1685 = vld [vmem:[#allocation2 + $0xb8] sm:$0xff]
    %v1686 = vld [vmem:[#allocation2 + $0xc0] sm:$0xff]
    %v1687 = vld [vmem:[#allocation2 + $0xc8] sm:$0xff]
    %v1688 = vld [vmem:[#allocation2 + $0xd0] sm:$0xff]
    %v1689 = vld [vmem:[#allocation2 + $0xd8] sm:$0xff]
    %v1690 = vld [vmem:[#allocation2 + $0xe0] sm:$0xff]
    %v1691 = vld [vmem:[#allocation2 + $0xe8] sm:$0xff]
    %v1692 = vld [vmem:[#allocation2 + $0xf0] sm:$0xff]
    %v1693 = vld [vmem:[#allocation2 + $0xf8] sm:$0xff]
    %v1694 = vld [vmem:[#allocation2 + $0x100] sm:$0xff]
    %v1695 = vld [vmem:[#allocation2 + $0x108] sm:$0xff]
    %v1696 = vld [vmem:[#allocation2 + $0x110] sm:$0xff]
    %v1697 = vld [vmem:[#allocation2 + $0x118] sm:$0xff]
    %v1698 = vld [vmem:[#allocation2 + $0x120] sm:$0xff]
    %v1699 = vld [vmem:[#allocation2 + $0x128] sm:$0xff]
    %v1700 = vld [vmem:[#allocation2 + $0x130] sm:$0xff]
    %v1701 = vld [vmem:[#allocation2 + $0x138] sm:$0xff]
    %v1702 = vld [vmem:[#allocation2 + $0x140] sm:$0xff]
    %v1703 = vld [vmem:[#allocation2 + $0x148] sm:$0xff]
    %v1704 = vld [vmem:[#allocation2 + $0x150] sm:$0xff]
    %v1705 = vld [vmem:[#allocation2 + $0x158] sm:$0xff]
    %v1706 = vld [vmem:[#allocation2 + $0x160] sm:$0xff]
    %v1707 = vld [vmem:[#allocation2 + $0x168] sm:$0xff]
    %v1708 = vld [vmem:[#allocation2 + $0x170] sm:$0xff]
    %v1709 = vld [vmem:[#allocation2 + $0x178] sm:$0xff]
    %v1710 = vld [vmem:[#allocation2 + $0x180] sm:$0xff]
    %v1711 = vld [vmem:[#allocation2 + $0x188] sm:$0xff]
    %v1712 = vld [vmem:[#allocation2 + $0x190] sm:$0xff]
    %v1713 = vld [vmem:[#allocation2 + $0x198] sm:$0xff]
    %v1714 = vld [vmem:[#allocation2 + $0x1a0] sm:$0xff]
    %v1715 = vld [vmem:[#allocation2 + $0x1a8] sm:$0xff]
    %v1716 = vld [vmem:[#allocation2 + $0x1b0] sm:$0xff]
    %v1717 = vld [vmem:[#allocation2 + $0x1b8] sm:$0xff]
    %v1718 = vld [vmem:[#allocation2 + $0x1c0] sm:$0xff]
    %v1719 = vld [vmem:[#allocation2 + $0x1c8] sm:$0xff]
    %v1720 = vld [vmem:[#allocation2 + $0x1d0] sm:$0xff]
    %v1721 = vld [vmem:[#allocation2 + $0x1d8] sm:$0xff]
    %v1722 = vld [vmem:[#allocation2 + $0x1e0] sm:$0xff]
    %v1723 = vld [vmem:[#allocation2 + $0x1e8] sm:$0xff]
    %v1724 = vld [vmem:[#allocation2 + $0x1f0] sm:$0xff]
    %v1725 = vld [vmem:[#allocation2 + $0x1f8] sm:$0xff]
    %v1726 = vld [vmem:[#allocation2 + $0x200] sm:$0xff]
    %v1727 = vld [vmem:[#allocation2 + $0x208] sm:$0xff]
    %v1728 = vld [vmem:[#allocation2 + $0x210] sm:$0xff]
    %v1729 = vld [vmem:[#allocation2 + $0x218] sm:$0xff]
    %v1730 = vld [vmem:[#allocation2 + $0x220] sm:$0xff]
    %v1731 = vld [vmem:[#allocation2 + $0x228] sm:$0xff]
    %v1732 = vld [vmem:[#allocation2 + $0x230] sm:$0xff]
    %v1733 = vld [vmem:[#allocation2 + $0x238] sm:$0xff]
    %v1734 = vld [vmem:[#allocation2 + $0x240] sm:$0xff]
    %v1735 = vld [vmem:[#allocation2 + $0x248] sm:$0xff]
    %v1736 = vld [vmem:[#allocation2 + $0x250] sm:$0xff]
    %v1737 = vld [vmem:[#allocation2 + $0x258] sm:$0xff]
    %v1738 = vld [vmem:[#allocation2 + $0x260] sm:$0xff]
    %v1739 = vld [vmem:[#allocation2 + $0x268] sm:$0xff]
    %v1740 = vld [vmem:[#allocation2 + $0x270] sm:$0xff]
    %v1741 = vld [vmem:[#allocation2 + $0x278] sm:$0xff]
    %v1742 = vld [vmem:[#allocation2 + $0x280] sm:$0xff]
    %v1743 = vld [vmem:[#allocation2 + $0x288] sm:$0xff]
    %v1744 = vld [vmem:[#allocation2 + $0x290] sm:$0xff]
    %v1745 = vld [vmem:[#allocation2 + $0x298] sm:$0xff]
    %v1746 = vld [vmem:[#allocation2 + $0x2a0] sm:$0xff]
    %v1747 = vld [vmem:[#allocation9] sm:$0xff]
    %v1748 = vld [vmem:[#allocation9 + $0x8] sm:$0xff]
    %v1749 = vld [vmem:[#allocation9 + $0x10] sm:$0xff]
    %v1750 = vld [vmem:[#allocation9 + $0x18] sm:$0xff]
    %v1751 = vld [vmem:[#allocation9 + $0x20] sm:$0xff]
    %v1752 = vld [vmem:[#allocation9 + $0x28] sm:$0xff]
    %v1753 = vld [vmem:[#allocation2 + $0x2a8] sm:$0xff]
    %s1754 = scalar_lea.vmem [#allocation9], 48
    %v1755 = vld [vmem:[%s1754] sm:$0xff]
    %v1756 = vld [vmem:[%s1754 + $0x8] sm:$0xff]
    %v1757 = vld [vmem:[%s1754 + $0x10] sm:$0xff]
    %v1758 = vld [vmem:[%s1754 + $0x18] sm:$0xff]
    %v1759 = vld [vmem:[%s1754 + $0x20] sm:$0xff]
    %v1760 = vld [vmem:[%s1754 + $0x28] sm:$0xff]
    %v1762 = vsel %vm1574, %v1663, 0
    %v1765 = vsel %vm1574, %v1664, 0
    %v1768 = vsel %vm1574, %v1665, 0
    %v1771 = vsel %vm1574, %v1666, 0
    %v1774 = vsel %vm1574, %v1667, 0
    %v1777 = vsel %vm1574, %v1668, 0
    %v1780 = vsel %vm1574, %v1669, 0
    %v1783 = vsel %vm1574, %v1670, 0
    %v1786 = vsel %vm1574, %v1671, 0
    %v1789 = vsel %vm1574, %v1672, 0
    %v1792 = vsel %vm1574, %v1673, 0
    %v1795 = vsel %vm1574, %v1674, 0
    %v1798 = vsel %vm1574, %v1675, 0
    %v1801 = vsel %vm1574, %v1676, 0
    %v1804 = vsel %vm1574, %v1677, 0
    %v1807 = vsel %vm1574, %v1678, 0
    %v1810 = vsel %vm1574, %v1679, 0
    %v1813 = vsel %vm1574, %v1680, 0
    %v1816 = vsel %vm1574, %v1681, 0
    %v1819 = vsel %vm1574, %v1682, 0
    %v1822 = vsel %vm1574, %v1683, 0
    %v1825 = vsel %vm1574, %v1684, 0
    %v1828 = vsel %vm1574, %v1685, 0
    %v1831 = vsel %vm1574, %v1686, 0
    %v1834 = vsel %vm1574, %v1687, 0
    %v1837 = vsel %vm1574, %v1688, 0
    %v1840 = vsel %vm1574, %v1689, 0
    %v1843 = vsel %vm1574, %v1690, 0
    %v1846 = vsel %vm1574, %v1691, 0
    %v1849 = vsel %vm1574, %v1692, 0
    %v1852 = vsel %vm1574, %v1693, 0
    %v1855 = vsel %vm1574, %v1694, 0
    %v1858 = vsel %vm1574, %v1695, 0
    %v1861 = vsel %vm1574, %v1696, 0
    %v1864 = vsel %vm1574, %v1697, 0
    %v1867 = vsel %vm1574, %v1698, 0
    %v1870 = vsel %vm1574, %v1699, 0
    %v1873 = vsel %vm1574, %v1700, 0
    %v1876 = vsel %vm1574, %v1701, 0
    %v1879 = vsel %vm1574, %v1702, 0
    %v1882 = vsel %vm1574, %v1703, 0
    %v1885 = vsel %vm1574, %v1704, 0
    %v1888 = vsel %vm1574, %v1705, 0
    %v1891 = vsel %vm1574, %v1706, 0
    %v1894 = vsel %vm1574, %v1707, 0
    %v1897 = vsel %vm1574, %v1708, 0
    %v1900 = vsel %vm1574, %v1709, 0
    %v1903 = vsel %vm1574, %v1710, 0
    %v1906 = vsel %vm1574, %v1711, 0
    %v1909 = vsel %vm1574, %v1712, 0
    %v1912 = vsel %vm1574, %v1713, 0
    %v1915 = vsel %vm1574, %v1714, 0
    %v1918 = vsel %vm1574, %v1715, 0
    %v1921 = vsel %vm1574, %v1716, 0
    %v1924 = vsel %vm1574, %v1717, 0
    %v1927 = vsel %vm1574, %v1718, 0
    %v1930 = vsel %vm1574, %v1719, 0
    %v1933 = vsel %vm1574, %v1720, 0
    %v1936 = vsel %vm1574, %v1721, 0
    %v1939 = vsel %vm1574, %v1722, 0
    %v1942 = vsel %vm1574, %v1723, 0
    %v1945 = vsel %vm1574, %v1724, 0
    %v1948 = vsel %vm1574, %v1725, 0
    %v1951 = vsel %vm1574, %v1726, 0
    %v1954 = vsel %vm1574, %v1727, 0
    %v1957 = vsel %vm1574, %v1728, 0
    %v1960 = vsel %vm1574, %v1729, 0
    %v1963 = vsel %vm1574, %v1730, 0
    %v1966 = vsel %vm1574, %v1731, 0
    %v1969 = vsel %vm1574, %v1732, 0
    %v1972 = vsel %vm1574, %v1733, 0
    %v1975 = vsel %vm1574, %v1734, 0
    %v1978 = vsel %vm1574, %v1735, 0
    %v1981 = vsel %vm1574, %v1736, 0
    %v1984 = vsel %vm1574, %v1737, 0
    %v1987 = vsel %vm1574, %v1738, 0
    %v1990 = vsel %vm1574, %v1739, 0
    %v1993 = vsel %vm1574, %v1740, 0
    %v1996 = vsel %vm1574, %v1741, 0
    %v1999 = vsel %vm1574, %v1742, 0
    %v2002 = vsel %vm1574, %v1743, 0
    %v2005 = vsel %vm1574, %v1744, 0
    %v2008 = vsel %vm1574, %v1745, 0
    %v2011 = vsel %vm1574, %v1746, 0
    %v2014 = vsel %vm1574, %v1753, 0
    %2016 = vmatpush.msra.mxu0 0.0
    %2017 = vmatpush.msra.mxu0 0.0
    %2018 = vmatpush.msra.mxu0 0.0
    %2019 = vmatpush.msra.mxu0 0.0
    %2020 = vmatpush.msra.mxu0 0.0
    %2021 = vmatpush.msra.mxu0 0.0
    %2022 = vmatpush.msra.mxu0 0.0
    %2023 = vmatpush.msra.mxu0 0.0
    %2024 = vmatpush.msra.mxu0 0.0
    %2025 = vmatpush.msra.mxu0 0.0
    %2026 = vmatpush.msra.mxu0 %v1760
    %2027 = vmatpush.msra.mxu0 %v1759
    %2028 = vmatpush.msra.mxu0 %v1758
    %2029 = vmatpush.msra.mxu0 %v1757
    %2030 = vmatpush.msra.mxu0 %v1756
    %2031 = vmatpush.msra.mxu0 %v1755
    %2032 = vmatmul.f32.gmra.mxu0 %v1762
    %v2033 = vpop.f32.mrf.mxu0
    %v2034 = vadd.f32 0.0, %v2033
    %2035 = vmatmul.f32.gmra.mxu0 %v1765
    %v2036 = vpop.f32.mrf.mxu0
    %v2037 = vadd.f32 0.0, %v2036
    %2038 = vmatmul.f32.gmra.mxu0 %v1768
    %v2039 = vpop.f32.mrf.mxu0
    %v2040 = vadd.f32 0.0, %v2039
    %2041 = vmatmul.f32.gmra.mxu0 %v1771
    %v2042 = vpop.f32.mrf.mxu0
    %v2043 = vadd.f32 0.0, %v2042
    %2044 = vmatmul.f32.gmra.mxu0 %v1774
    %v2045 = vpop.f32.mrf.mxu0
    %v2046 = vadd.f32 0.0, %v2045
    %2047 = vmatmul.f32.gmra.mxu0 %v1777
    %v2048 = vpop.f32.mrf.mxu0
    %v2049 = vadd.f32 0.0, %v2048
    %2050 = vmatmul.f32.gmra.mxu0 %v1780
    %v2051 = vpop.f32.mrf.mxu0
    %v2052 = vadd.f32 0.0, %v2051
    %2053 = vmatmul.f32.gmra.mxu0 %v1783
    %v2054 = vpop.f32.mrf.mxu0
    %v2055 = vadd.f32 0.0, %v2054
    %2056 = vmatmul.f32.gmra.mxu0 %v1786
    %v2057 = vpop.f32.mrf.mxu0
    %v2058 = vadd.f32 0.0, %v2057
    %2059 = vmatmul.f32.gmra.mxu0 %v1789
    %v2060 = vpop.f32.mrf.mxu0
    %v2061 = vadd.f32 0.0, %v2060
    %2062 = vmatmul.f32.gmra.mxu0 %v1792
    %v2063 = vpop.f32.mrf.mxu0
    %v2064 = vadd.f32 0.0, %v2063
    %2065 = vmatmul.f32.gmra.mxu0 %v1795
    %v2066 = vpop.f32.mrf.mxu0
    %v2067 = vadd.f32 0.0, %v2066
    %2068 = vmatmul.f32.gmra.mxu0 %v1798
    %v2069 = vpop.f32.mrf.mxu0
    %v2070 = vadd.f32 0.0, %v2069
    %2071 = vmatmul.f32.gmra.mxu0 %v1801
    %v2072 = vpop.f32.mrf.mxu0
    %v2073 = vadd.f32 0.0, %v2072
    %2074 = vmatmul.f32.gmra.mxu0 %v1804
    %v2075 = vpop.f32.mrf.mxu0
    %v2076 = vadd.f32 0.0, %v2075
    %2077 = vmatmul.f32.gmra.mxu0 %v1807
    %v2078 = vpop.f32.mrf.mxu0
    %v2079 = vadd.f32 0.0, %v2078
    %2080 = vmatmul.f32.gmra.mxu0 %v1810
    %v2081 = vpop.f32.mrf.mxu0
    %v2082 = vadd.f32 0.0, %v2081
    %2083 = vmatmul.f32.gmra.mxu0 %v1813
    %v2084 = vpop.f32.mrf.mxu0
    %v2085 = vadd.f32 0.0, %v2084
    %2086 = vmatmul.f32.gmra.mxu0 %v1816
    %v2087 = vpop.f32.mrf.mxu0
    %v2088 = vadd.f32 0.0, %v2087
    %2089 = vmatmul.f32.gmra.mxu0 %v1819
    %v2090 = vpop.f32.mrf.mxu0
    %v2091 = vadd.f32 0.0, %v2090
    %2092 = vmatmul.f32.gmra.mxu0 %v1822
    %v2093 = vpop.f32.mrf.mxu0
    %v2094 = vadd.f32 0.0, %v2093
    %2095 = vmatmul.f32.gmra.mxu0 %v1825
    %v2096 = vpop.f32.mrf.mxu0
    %v2097 = vadd.f32 0.0, %v2096
    %2098 = vmatmul.f32.gmra.mxu0 %v1828
    %v2099 = vpop.f32.mrf.mxu0
    %v2100 = vadd.f32 0.0, %v2099
    %2101 = vmatmul.f32.gmra.mxu0 %v1831
    %v2102 = vpop.f32.mrf.mxu0
    %v2103 = vadd.f32 0.0, %v2102
    %2104 = vmatmul.f32.gmra.mxu0 %v1834
    %v2105 = vpop.f32.mrf.mxu0
    %v2106 = vadd.f32 0.0, %v2105
    %2107 = vmatmul.f32.gmra.mxu0 %v1837
    %v2108 = vpop.f32.mrf.mxu0
    %v2109 = vadd.f32 0.0, %v2108
    %2110 = vmatmul.f32.gmra.mxu0 %v1840
    %v2111 = vpop.f32.mrf.mxu0
    %v2112 = vadd.f32 0.0, %v2111
    %2113 = vmatmul.f32.gmra.mxu0 %v1843
    %v2114 = vpop.f32.mrf.mxu0
    %v2115 = vadd.f32 0.0, %v2114
    %2116 = vmatmul.f32.gmra.mxu0 %v1846
    %v2117 = vpop.f32.mrf.mxu0
    %v2118 = vadd.f32 0.0, %v2117
    %2119 = vmatmul.f32.gmra.mxu0 %v1849
    %v2120 = vpop.f32.mrf.mxu0
    %v2121 = vadd.f32 0.0, %v2120
    %2122 = vmatmul.f32.gmra.mxu0 %v1852
    %v2123 = vpop.f32.mrf.mxu0
    %v2124 = vadd.f32 0.0, %v2123
    %2125 = vmatmul.f32.gmra.mxu0 %v1855
    %v2126 = vpop.f32.mrf.mxu0
    %v2127 = vadd.f32 0.0, %v2126
    %2128 = vmatmul.f32.gmra.mxu0 %v1858
    %v2129 = vpop.f32.mrf.mxu0
    %v2130 = vadd.f32 0.0, %v2129
    %2131 = vmatmul.f32.gmra.mxu0 %v1861
    %v2132 = vpop.f32.mrf.mxu0
    %v2133 = vadd.f32 0.0, %v2132
    %2134 = vmatmul.f32.gmra.mxu0 %v1864
    %v2135 = vpop.f32.mrf.mxu0
    %v2136 = vadd.f32 0.0, %v2135
    %2137 = vmatmul.f32.gmra.mxu0 %v1867
    %v2138 = vpop.f32.mrf.mxu0
    %v2139 = vadd.f32 0.0, %v2138
    %2140 = vmatmul.f32.gmra.mxu0 %v1870
    %v2141 = vpop.f32.mrf.mxu0
    %v2142 = vadd.f32 0.0, %v2141
    %2143 = vmatmul.f32.gmra.mxu0 %v1873
    %v2144 = vpop.f32.mrf.mxu0
    %v2145 = vadd.f32 0.0, %v2144
    %2146 = vmatmul.f32.gmra.mxu0 %v1876
    %v2147 = vpop.f32.mrf.mxu0
    %v2148 = vadd.f32 0.0, %v2147
    %2149 = vmatmul.f32.gmra.mxu0 %v1879
    %v2150 = vpop.f32.mrf.mxu0
    %v2151 = vadd.f32 0.0, %v2150
    %2152 = vmatmul.f32.gmra.mxu0 %v1882
    %v2153 = vpop.f32.mrf.mxu0
    %v2154 = vadd.f32 0.0, %v2153
    %2155 = vmatmul.f32.gmra.mxu0 %v1885
    %v2156 = vpop.f32.mrf.mxu0
    %v2157 = vadd.f32 0.0, %v2156
    %2158 = vmatmul.f32.gmra.mxu0 %v1888
    %v2159 = vpop.f32.mrf.mxu0
    %v2160 = vadd.f32 0.0, %v2159
    %2161 = vmatmul.f32.gmra.mxu0 %v1891
    %v2162 = vpop.f32.mrf.mxu0
    %v2163 = vadd.f32 0.0, %v2162
    %2164 = vmatmul.f32.gmra.mxu0 %v1894
    %v2165 = vpop.f32.mrf.mxu0
    %v2166 = vadd.f32 0.0, %v2165
    %2167 = vmatmul.f32.gmra.mxu0 %v1897
    %v2168 = vpop.f32.mrf.mxu0
    %v2169 = vadd.f32 0.0, %v2168
    %2170 = vmatmul.f32.gmra.mxu0 %v1900
    %v2171 = vpop.f32.mrf.mxu0
    %v2172 = vadd.f32 0.0, %v2171
    %2173 = vmatmul.f32.gmra.mxu0 %v1903
    %v2174 = vpop.f32.mrf.mxu0
    %v2175 = vadd.f32 0.0, %v2174
    %2176 = vmatmul.f32.gmra.mxu0 %v1906
    %v2177 = vpop.f32.mrf.mxu0
    %v2178 = vadd.f32 0.0, %v2177
    %2179 = vmatmul.f32.gmra.mxu0 %v1909
    %v2180 = vpop.f32.mrf.mxu0
    %v2181 = vadd.f32 0.0, %v2180
    %2182 = vmatmul.f32.gmra.mxu0 %v1912
    %v2183 = vpop.f32.mrf.mxu0
    %v2184 = vadd.f32 0.0, %v2183
    %2185 = vmatmul.f32.gmra.mxu0 %v1915
    %v2186 = vpop.f32.mrf.mxu0
    %v2187 = vadd.f32 0.0, %v2186
    %2188 = vmatmul.f32.gmra.mxu0 %v1918
    %v2189 = vpop.f32.mrf.mxu0
    %v2190 = vadd.f32 0.0, %v2189
    %2191 = vmatmul.f32.gmra.mxu0 %v1921
    %v2192 = vpop.f32.mrf.mxu0
    %v2193 = vadd.f32 0.0, %v2192
    %2194 = vmatmul.f32.gmra.mxu0 %v1924
    %v2195 = vpop.f32.mrf.mxu0
    %v2196 = vadd.f32 0.0, %v2195
    %2197 = vmatmul.f32.gmra.mxu0 %v1927
    %v2198 = vpop.f32.mrf.mxu0
    %v2199 = vadd.f32 0.0, %v2198
    %2200 = vmatmul.f32.gmra.mxu0 %v1930
    %v2201 = vpop.f32.mrf.mxu0
    %v2202 = vadd.f32 0.0, %v2201
    %2203 = vmatmul.f32.gmra.mxu0 %v1933
    %v2204 = vpop.f32.mrf.mxu0
    %v2205 = vadd.f32 0.0, %v2204
    %2206 = vmatmul.f32.gmra.mxu0 %v1936
    %v2207 = vpop.f32.mrf.mxu0
    %v2208 = vadd.f32 0.0, %v2207
    %2209 = vmatmul.f32.gmra.mxu0 %v1939
    %v2210 = vpop.f32.mrf.mxu0
    %v2211 = vadd.f32 0.0, %v2210
    %2212 = vmatmul.f32.gmra.mxu0 %v1942
    %v2213 = vpop.f32.mrf.mxu0
    %v2214 = vadd.f32 0.0, %v2213
    %2215 = vmatmul.f32.gmra.mxu0 %v1945
    %v2216 = vpop.f32.mrf.mxu0
    %v2217 = vadd.f32 0.0, %v2216
    %2218 = vmatmul.f32.gmra.mxu0 %v1948
    %v2219 = vpop.f32.mrf.mxu0
    %v2220 = vadd.f32 0.0, %v2219
    %2221 = vmatmul.f32.gmra.mxu0 %v1951
    %v2222 = vpop.f32.mrf.mxu0
    %v2223 = vadd.f32 0.0, %v2222
    %2224 = vmatmul.f32.gmra.mxu0 %v1954
    %v2225 = vpop.f32.mrf.mxu0
    %v2226 = vadd.f32 0.0, %v2225
    %2227 = vmatmul.f32.gmra.mxu0 %v1957
    %v2228 = vpop.f32.mrf.mxu0
    %v2229 = vadd.f32 0.0, %v2228
    %2230 = vmatmul.f32.gmra.mxu0 %v1960
    %v2231 = vpop.f32.mrf.mxu0
    %v2232 = vadd.f32 0.0, %v2231
    %2233 = vmatmul.f32.gmra.mxu0 %v1963
    %v2234 = vpop.f32.mrf.mxu0
    %v2235 = vadd.f32 0.0, %v2234
    %2236 = vmatmul.f32.gmra.mxu0 %v1966
    %v2237 = vpop.f32.mrf.mxu0
    %v2238 = vadd.f32 0.0, %v2237
    %2239 = vmatmul.f32.gmra.mxu0 %v1969
    %v2240 = vpop.f32.mrf.mxu0
    %v2241 = vadd.f32 0.0, %v2240
    %2242 = vmatmul.f32.gmra.mxu0 %v1972
    %v2243 = vpop.f32.mrf.mxu0
    %v2244 = vadd.f32 0.0, %v2243
    %2245 = vmatmul.f32.gmra.mxu0 %v1975
    %v2246 = vpop.f32.mrf.mxu0
    %v2247 = vadd.f32 0.0, %v2246
    %2248 = vmatmul.f32.gmra.mxu0 %v1978
    %v2249 = vpop.f32.mrf.mxu0
    %v2250 = vadd.f32 0.0, %v2249
    %2251 = vmatmul.f32.gmra.mxu0 %v1981
    %v2252 = vpop.f32.mrf.mxu0
    %v2253 = vadd.f32 0.0, %v2252
    %2254 = vmatmul.f32.gmra.mxu0 %v1984
    %v2255 = vpop.f32.mrf.mxu0
    %v2256 = vadd.f32 0.0, %v2255
    %2257 = vmatmul.f32.gmra.mxu0 %v1987
    %v2258 = vpop.f32.mrf.mxu0
    %v2259 = vadd.f32 0.0, %v2258
    %2260 = vmatmul.f32.gmra.mxu0 %v1990
    %v2261 = vpop.f32.mrf.mxu0
    %v2262 = vadd.f32 0.0, %v2261
    %2263 = vmatmul.f32.gmra.mxu0 %v1993
    %v2264 = vpop.f32.mrf.mxu0
    %v2265 = vadd.f32 0.0, %v2264
    %2266 = vmatmul.f32.gmra.mxu0 %v1996
    %v2267 = vpop.f32.mrf.mxu0
    %v2268 = vadd.f32 0.0, %v2267
    %2269 = vmatmul.f32.gmra.mxu0 %v1999
    %v2270 = vpop.f32.mrf.mxu0
    %v2271 = vadd.f32 0.0, %v2270
    %2272 = vmatmul.f32.gmra.mxu0 %v2002
    %v2273 = vpop.f32.mrf.mxu0
    %v2274 = vadd.f32 0.0, %v2273
    %2275 = vmatmul.f32.gmra.mxu0 %v2005
    %v2276 = vpop.f32.mrf.mxu0
    %v2277 = vadd.f32 0.0, %v2276
    %2278 = vmatmul.f32.gmra.mxu0 %v2008
    %v2279 = vpop.f32.mrf.mxu0
    %v2280 = vadd.f32 0.0, %v2279
    %2281 = vmatmul.f32.gmra.mxu0 %v2011
    %v2282 = vpop.f32.mrf.mxu0
    %v2283 = vadd.f32 0.0, %v2282
    %2284 = vmatmul.f32.gmra.mxu0 %v2014
    %v2285 = vpop.f32.mrf.mxu0
    %v2286 = vadd.f32 0.0, %v2285
    %2287 = vdwg.mxu0
    %v2289 = vsel %vm1574, %v1662, 0
    %2291 = vmatpush.msra.mxu0 0.0
    %2292 = vmatpush.msra.mxu0 0.0
    %2293 = vmatpush.msra.mxu0 0.0
    %2294 = vmatpush.msra.mxu0 0.0
    %2295 = vmatpush.msra.mxu0 0.0
    %2296 = vmatpush.msra.mxu0 0.0
    %2297 = vmatpush.msra.mxu0 0.0
    %2298 = vmatpush.msra.mxu0 0.0
    %2299 = vmatpush.msra.mxu0 0.0
    %2300 = vmatpush.msra.mxu0 0.0
    %2301 = vmatpush.msra.mxu0 %v1752
    %2302 = vmatpush.msra.mxu0 %v1751
    %2303 = vmatpush.msra.mxu0 %v1750
    %2304 = vmatpush.msra.mxu0 %v1749
    %2305 = vmatpush.msra.mxu0 %v1748
    %2306 = vmatpush.msra.mxu0 %v1747
    %2307 = vmatmul.f32.gmra.mxu0 %v2289
    %v2308 = vpop.f32.mrf.mxu0
    %v2309 = vadd.f32 %v2034, %v2308
    %2310 = vmatmul.f32.gmra.mxu0 %v1762
    %v2311 = vpop.f32.mrf.mxu0
    %v2312 = vadd.f32 %v2037, %v2311
    %2313 = vmatmul.f32.gmra.mxu0 %v1765
    %v2314 = vpop.f32.mrf.mxu0
    %v2315 = vadd.f32 %v2040, %v2314
    %2316 = vmatmul.f32.gmra.mxu0 %v1768
    %v2317 = vpop.f32.mrf.mxu0
    %v2318 = vadd.f32 %v2043, %v2317
    %2319 = vmatmul.f32.gmra.mxu0 %v1771
    %v2320 = vpop.f32.mrf.mxu0
    %v2321 = vadd.f32 %v2046, %v2320
    %2322 = vmatmul.f32.gmra.mxu0 %v1774
    %v2323 = vpop.f32.mrf.mxu0
    %v2324 = vadd.f32 %v2049, %v2323
    %2325 = vmatmul.f32.gmra.mxu0 %v1777
    %v2326 = vpop.f32.mrf.mxu0
    %v2327 = vadd.f32 %v2052, %v2326
    %2328 = vmatmul.f32.gmra.mxu0 %v1780
    %v2329 = vpop.f32.mrf.mxu0
    %v2330 = vadd.f32 %v2055, %v2329
    %2331 = vmatmul.f32.gmra.mxu0 %v1783
    %v2332 = vpop.f32.mrf.mxu0
    %v2333 = vadd.f32 %v2058, %v2332
    %2334 = vmatmul.f32.gmra.mxu0 %v1786
    %v2335 = vpop.f32.mrf.mxu0
    %v2336 = vadd.f32 %v2061, %v2335
    %2337 = vmatmul.f32.gmra.mxu0 %v1789
    %v2338 = vpop.f32.mrf.mxu0
    %v2339 = vadd.f32 %v2064, %v2338
    %2340 = vmatmul.f32.gmra.mxu0 %v1792
    %v2341 = vpop.f32.mrf.mxu0
    %v2342 = vadd.f32 %v2067, %v2341
    %2343 = vmatmul.f32.gmra.mxu0 %v1795
    %v2344 = vpop.f32.mrf.mxu0
    %v2345 = vadd.f32 %v2070, %v2344
    %2346 = vmatmul.f32.gmra.mxu0 %v1798
    %v2347 = vpop.f32.mrf.mxu0
    %v2348 = vadd.f32 %v2073, %v2347
    %2349 = vmatmul.f32.gmra.mxu0 %v1801
    %v2350 = vpop.f32.mrf.mxu0
    %v2351 = vadd.f32 %v2076, %v2350
    %2352 = vmatmul.f32.gmra.mxu0 %v1804
    %v2353 = vpop.f32.mrf.mxu0
    %v2354 = vadd.f32 %v2079, %v2353
    %2355 = vmatmul.f32.gmra.mxu0 %v1807
    %v2356 = vpop.f32.mrf.mxu0
    %v2357 = vadd.f32 %v2082, %v2356
    %2358 = vmatmul.f32.gmra.mxu0 %v1810
    %v2359 = vpop.f32.mrf.mxu0
    %v2360 = vadd.f32 %v2085, %v2359
    %2361 = vmatmul.f32.gmra.mxu0 %v1813
    %v2362 = vpop.f32.mrf.mxu0
    %v2363 = vadd.f32 %v2088, %v2362
    %2364 = vmatmul.f32.gmra.mxu0 %v1816
    %v2365 = vpop.f32.mrf.mxu0
    %v2366 = vadd.f32 %v2091, %v2365
    %2367 = vmatmul.f32.gmra.mxu0 %v1819
    %v2368 = vpop.f32.mrf.mxu0
    %v2369 = vadd.f32 %v2094, %v2368
    %2370 = vmatmul.f32.gmra.mxu0 %v1822
    %v2371 = vpop.f32.mrf.mxu0
    %v2372 = vadd.f32 %v2097, %v2371
    %2373 = vmatmul.f32.gmra.mxu0 %v1825
    %v2374 = vpop.f32.mrf.mxu0
    %v2375 = vadd.f32 %v2100, %v2374
    %2376 = vmatmul.f32.gmra.mxu0 %v1828
    %v2377 = vpop.f32.mrf.mxu0
    %v2378 = vadd.f32 %v2103, %v2377
    %2379 = vmatmul.f32.gmra.mxu0 %v1831
    %v2380 = vpop.f32.mrf.mxu0
    %v2381 = vadd.f32 %v2106, %v2380
    %2382 = vmatmul.f32.gmra.mxu0 %v1834
    %v2383 = vpop.f32.mrf.mxu0
    %v2384 = vadd.f32 %v2109, %v2383
    %2385 = vmatmul.f32.gmra.mxu0 %v1837
    %v2386 = vpop.f32.mrf.mxu0
    %v2387 = vadd.f32 %v2112, %v2386
    %2388 = vmatmul.f32.gmra.mxu0 %v1840
    %v2389 = vpop.f32.mrf.mxu0
    %v2390 = vadd.f32 %v2115, %v2389
    %2391 = vmatmul.f32.gmra.mxu0 %v1843
    %v2392 = vpop.f32.mrf.mxu0
    %v2393 = vadd.f32 %v2118, %v2392
    %2394 = vmatmul.f32.gmra.mxu0 %v1846
    %v2395 = vpop.f32.mrf.mxu0
    %v2396 = vadd.f32 %v2121, %v2395
    %2397 = vmatmul.f32.gmra.mxu0 %v1849
    %v2398 = vpop.f32.mrf.mxu0
    %v2399 = vadd.f32 %v2124, %v2398
    %2400 = vmatmul.f32.gmra.mxu0 %v1852
    %v2401 = vpop.f32.mrf.mxu0
    %v2402 = vadd.f32 %v2127, %v2401
    %2403 = vmatmul.f32.gmra.mxu0 %v1855
    %v2404 = vpop.f32.mrf.mxu0
    %v2405 = vadd.f32 %v2130, %v2404
    %2406 = vmatmul.f32.gmra.mxu0 %v1858
    %v2407 = vpop.f32.mrf.mxu0
    %v2408 = vadd.f32 %v2133, %v2407
    %2409 = vmatmul.f32.gmra.mxu0 %v1861
    %v2410 = vpop.f32.mrf.mxu0
    %v2411 = vadd.f32 %v2136, %v2410
    %2412 = vmatmul.f32.gmra.mxu0 %v1864
    %v2413 = vpop.f32.mrf.mxu0
    %v2414 = vadd.f32 %v2139, %v2413
    %2415 = vmatmul.f32.gmra.mxu0 %v1867
    %v2416 = vpop.f32.mrf.mxu0
    %v2417 = vadd.f32 %v2142, %v2416
    %2418 = vmatmul.f32.gmra.mxu0 %v1870
    %v2419 = vpop.f32.mrf.mxu0
    %v2420 = vadd.f32 %v2145, %v2419
    %2421 = vmatmul.f32.gmra.mxu0 %v1873
    %v2422 = vpop.f32.mrf.mxu0
    %v2423 = vadd.f32 %v2148, %v2422
    %2424 = vmatmul.f32.gmra.mxu0 %v1876
    %v2425 = vpop.f32.mrf.mxu0
    %v2426 = vadd.f32 %v2151, %v2425
    %2427 = vmatmul.f32.gmra.mxu0 %v1879
    %v2428 = vpop.f32.mrf.mxu0
    %v2429 = vadd.f32 %v2154, %v2428
    %2430 = vmatmul.f32.gmra.mxu0 %v1882
    %v2431 = vpop.f32.mrf.mxu0
    %v2432 = vadd.f32 %v2157, %v2431
    %2433 = vmatmul.f32.gmra.mxu0 %v1885
    %v2434 = vpop.f32.mrf.mxu0
    %v2435 = vadd.f32 %v2160, %v2434
    %2436 = vmatmul.f32.gmra.mxu0 %v1888
    %v2437 = vpop.f32.mrf.mxu0
    %v2438 = vadd.f32 %v2163, %v2437
    %2439 = vmatmul.f32.gmra.mxu0 %v1891
    %v2440 = vpop.f32.mrf.mxu0
    %v2441 = vadd.f32 %v2166, %v2440
    %2442 = vmatmul.f32.gmra.mxu0 %v1894
    %v2443 = vpop.f32.mrf.mxu0
    %v2444 = vadd.f32 %v2169, %v2443
    %2445 = vmatmul.f32.gmra.mxu0 %v1897
    %v2446 = vpop.f32.mrf.mxu0
    %v2447 = vadd.f32 %v2172, %v2446
    %2448 = vmatmul.f32.gmra.mxu0 %v1900
    %v2449 = vpop.f32.mrf.mxu0
    %v2450 = vadd.f32 %v2175, %v2449
    %2451 = vmatmul.f32.gmra.mxu0 %v1903
    %v2452 = vpop.f32.mrf.mxu0
    %v2453 = vadd.f32 %v2178, %v2452
    %2454 = vmatmul.f32.gmra.mxu0 %v1906
    %v2455 = vpop.f32.mrf.mxu0
    %v2456 = vadd.f32 %v2181, %v2455
    %2457 = vmatmul.f32.gmra.mxu0 %v1909
    %v2458 = vpop.f32.mrf.mxu0
    %v2459 = vadd.f32 %v2184, %v2458
    %2460 = vmatmul.f32.gmra.mxu0 %v1912
    %v2461 = vpop.f32.mrf.mxu0
    %v2462 = vadd.f32 %v2187, %v2461
    %2463 = vmatmul.f32.gmra.mxu0 %v1915
    %v2464 = vpop.f32.mrf.mxu0
    %v2465 = vadd.f32 %v2190, %v2464
    %2466 = vmatmul.f32.gmra.mxu0 %v1918
    %v2467 = vpop.f32.mrf.mxu0
    %v2468 = vadd.f32 %v2193, %v2467
    %2469 = vmatmul.f32.gmra.mxu0 %v1921
    %v2470 = vpop.f32.mrf.mxu0
    %v2471 = vadd.f32 %v2196, %v2470
    %2472 = vmatmul.f32.gmra.mxu0 %v1924
    %v2473 = vpop.f32.mrf.mxu0
    %v2474 = vadd.f32 %v2199, %v2473
    %2475 = vmatmul.f32.gmra.mxu0 %v1927
    %v2476 = vpop.f32.mrf.mxu0
    %v2477 = vadd.f32 %v2202, %v2476
    %2478 = vmatmul.f32.gmra.mxu0 %v1930
    %v2479 = vpop.f32.mrf.mxu0
    %v2480 = vadd.f32 %v2205, %v2479
    %2481 = vmatmul.f32.gmra.mxu0 %v1933
    %v2482 = vpop.f32.mrf.mxu0
    %v2483 = vadd.f32 %v2208, %v2482
    %2484 = vmatmul.f32.gmra.mxu0 %v1936
    %v2485 = vpop.f32.mrf.mxu0
    %v2486 = vadd.f32 %v2211, %v2485
    %2487 = vmatmul.f32.gmra.mxu0 %v1939
    %v2488 = vpop.f32.mrf.mxu0
    %v2489 = vadd.f32 %v2214, %v2488
    %2490 = vmatmul.f32.gmra.mxu0 %v1942
    %v2491 = vpop.f32.mrf.mxu0
    %v2492 = vadd.f32 %v2217, %v2491
    %2493 = vmatmul.f32.gmra.mxu0 %v1945
    %v2494 = vpop.f32.mrf.mxu0
    %v2495 = vadd.f32 %v2220, %v2494
    %2496 = vmatmul.f32.gmra.mxu0 %v1948
    %v2497 = vpop.f32.mrf.mxu0
    %v2498 = vadd.f32 %v2223, %v2497
    %2499 = vmatmul.f32.gmra.mxu0 %v1951
    %v2500 = vpop.f32.mrf.mxu0
    %v2501 = vadd.f32 %v2226, %v2500
    %2502 = vmatmul.f32.gmra.mxu0 %v1954
    %v2503 = vpop.f32.mrf.mxu0
    %v2504 = vadd.f32 %v2229, %v2503
    %2505 = vmatmul.f32.gmra.mxu0 %v1957
    %v2506 = vpop.f32.mrf.mxu0
    %v2507 = vadd.f32 %v2232, %v2506
    %2508 = vmatmul.f32.gmra.mxu0 %v1960
    %v2509 = vpop.f32.mrf.mxu0
    %v2510 = vadd.f32 %v2235, %v2509
    %2511 = vmatmul.f32.gmra.mxu0 %v1963
    %v2512 = vpop.f32.mrf.mxu0
    %v2513 = vadd.f32 %v2238, %v2512
    %2514 = vmatmul.f32.gmra.mxu0 %v1966
    %v2515 = vpop.f32.mrf.mxu0
    %v2516 = vadd.f32 %v2241, %v2515
    %2517 = vmatmul.f32.gmra.mxu0 %v1969
    %v2518 = vpop.f32.mrf.mxu0
    %v2519 = vadd.f32 %v2244, %v2518
    %2520 = vmatmul.f32.gmra.mxu0 %v1972
    %v2521 = vpop.f32.mrf.mxu0
    %v2522 = vadd.f32 %v2247, %v2521
    %2523 = vmatmul.f32.gmra.mxu0 %v1975
    %v2524 = vpop.f32.mrf.mxu0
    %v2525 = vadd.f32 %v2250, %v2524
    %2526 = vmatmul.f32.gmra.mxu0 %v1978
    %v2527 = vpop.f32.mrf.mxu0
    %v2528 = vadd.f32 %v2253, %v2527
    %2529 = vmatmul.f32.gmra.mxu0 %v1981
    %v2530 = vpop.f32.mrf.mxu0
    %v2531 = vadd.f32 %v2256, %v2530
    %2532 = vmatmul.f32.gmra.mxu0 %v1984
    %v2533 = vpop.f32.mrf.mxu0
    %v2534 = vadd.f32 %v2259, %v2533
    %2535 = vmatmul.f32.gmra.mxu0 %v1987
    %v2536 = vpop.f32.mrf.mxu0
    %v2537 = vadd.f32 %v2262, %v2536
    %2538 = vmatmul.f32.gmra.mxu0 %v1990
    %v2539 = vpop.f32.mrf.mxu0
    %v2540 = vadd.f32 %v2265, %v2539
    %2541 = vmatmul.f32.gmra.mxu0 %v1993
    %v2542 = vpop.f32.mrf.mxu0
    %v2543 = vadd.f32 %v2268, %v2542
    %2544 = vmatmul.f32.gmra.mxu0 %v1996
    %v2545 = vpop.f32.mrf.mxu0
    %v2546 = vadd.f32 %v2271, %v2545
    %2547 = vmatmul.f32.gmra.mxu0 %v1999
    %v2548 = vpop.f32.mrf.mxu0
    %v2549 = vadd.f32 %v2274, %v2548
    %2550 = vmatmul.f32.gmra.mxu0 %v2002
    %v2551 = vpop.f32.mrf.mxu0
    %v2552 = vadd.f32 %v2277, %v2551
    %2553 = vmatmul.f32.gmra.mxu0 %v2005
    %v2554 = vpop.f32.mrf.mxu0
    %v2555 = vadd.f32 %v2280, %v2554
    %2556 = vmatmul.f32.gmra.mxu0 %v2008
    %v2557 = vpop.f32.mrf.mxu0
    %v2558 = vadd.f32 %v2283, %v2557
    %2559 = vmatmul.f32.gmra.mxu0 %v2011
    %v2560 = vpop.f32.mrf.mxu0
    %v2561 = vadd.f32 %v2286, %v2560
    %2562 = vdwg.mxu0
    %v2563 = vld [vmem:[#allocation2 + $0x10] sm:$0xff]
    %v2564 = vld [vmem:[#allocation2 + $0x18] sm:$0xff]
    %v2565 = vld [vmem:[#allocation2 + $0x20] sm:$0xff]
    %v2566 = vld [vmem:[#allocation2 + $0x28] sm:$0xff]
    %v2567 = vld [vmem:[#allocation2 + $0x30] sm:$0xff]
    %v2568 = vld [vmem:[#allocation2 + $0x38] sm:$0xff]
    %v2569 = vld [vmem:[#allocation2 + $0x40] sm:$0xff]
    %v2570 = vld [vmem:[#allocation2 + $0x48] sm:$0xff]
    %v2571 = vld [vmem:[#allocation2 + $0x50] sm:$0xff]
    %v2572 = vld [vmem:[#allocation2 + $0x58] sm:$0xff]
    %v2573 = vld [vmem:[#allocation2 + $0x60] sm:$0xff]
    %v2574 = vld [vmem:[#allocation2 + $0x68] sm:$0xff]
    %v2575 = vld [vmem:[#allocation2 + $0x70] sm:$0xff]
    %v2576 = vld [vmem:[#allocation2 + $0x78] sm:$0xff]
    %v2577 = vld [vmem:[#allocation2 + $0x80] sm:$0xff]
    %v2578 = vld [vmem:[#allocation2 + $0x88] sm:$0xff]
    %v2579 = vld [vmem:[#allocation2 + $0x90] sm:$0xff]
    %v2580 = vld [vmem:[#allocation2 + $0x98] sm:$0xff]
    %v2581 = vld [vmem:[#allocation2 + $0xa0] sm:$0xff]
    %v2582 = vld [vmem:[#allocation2 + $0xa8] sm:$0xff]
    %v2583 = vld [vmem:[#allocation2 + $0xb0] sm:$0xff]
    %v2584 = vld [vmem:[#allocation2 + $0xb8] sm:$0xff]
    %v2585 = vld [vmem:[#allocation2 + $0xc0] sm:$0xff]
    %v2586 = vld [vmem:[#allocation2 + $0xc8] sm:$0xff]
    %v2587 = vld [vmem:[#allocation2 + $0xd0] sm:$0xff]
    %v2588 = vld [vmem:[#allocation2 + $0xd8] sm:$0xff]
    %v2589 = vld [vmem:[#allocation2 + $0xe0] sm:$0xff]
    %v2590 = vld [vmem:[#allocation2 + $0xe8] sm:$0xff]
    %v2591 = vld [vmem:[#allocation2 + $0xf0] sm:$0xff]
    %v2592 = vld [vmem:[#allocation2 + $0xf8] sm:$0xff]
    %v2593 = vld [vmem:[#allocation2 + $0x100] sm:$0xff]
    %v2594 = vld [vmem:[#allocation2 + $0x108] sm:$0xff]
    %v2595 = vld [vmem:[#allocation2 + $0x110] sm:$0xff]
    %v2596 = vld [vmem:[#allocation2 + $0x118] sm:$0xff]
    %v2597 = vld [vmem:[#allocation2 + $0x120] sm:$0xff]
    %v2598 = vld [vmem:[#allocation2 + $0x128] sm:$0xff]
    %v2599 = vld [vmem:[#allocation2 + $0x130] sm:$0xff]
    %v2600 = vld [vmem:[#allocation2 + $0x138] sm:$0xff]
    %v2601 = vld [vmem:[#allocation2 + $0x140] sm:$0xff]
    %v2602 = vld [vmem:[#allocation2 + $0x148] sm:$0xff]
    %v2603 = vld [vmem:[#allocation2 + $0x150] sm:$0xff]
    %v2604 = vld [vmem:[#allocation2 + $0x158] sm:$0xff]
    %v2605 = vld [vmem:[#allocation2 + $0x160] sm:$0xff]
    %v2606 = vld [vmem:[#allocation2 + $0x168] sm:$0xff]
    %v2607 = vld [vmem:[#allocation2 + $0x170] sm:$0xff]
    %v2608 = vld [vmem:[#allocation2 + $0x178] sm:$0xff]
    %v2609 = vld [vmem:[#allocation2 + $0x180] sm:$0xff]
    %v2610 = vld [vmem:[#allocation2 + $0x188] sm:$0xff]
    %v2611 = vld [vmem:[#allocation2 + $0x190] sm:$0xff]
    %v2612 = vld [vmem:[#allocation2 + $0x198] sm:$0xff]
    %v2613 = vld [vmem:[#allocation2 + $0x1a0] sm:$0xff]
    %v2614 = vld [vmem:[#allocation2 + $0x1a8] sm:$0xff]
    %v2615 = vld [vmem:[#allocation2 + $0x1b0] sm:$0xff]
    %v2616 = vld [vmem:[#allocation2 + $0x1b8] sm:$0xff]
    %v2617 = vld [vmem:[#allocation2 + $0x1c0] sm:$0xff]
    %v2618 = vld [vmem:[#allocation2 + $0x1c8] sm:$0xff]
    %v2619 = vld [vmem:[#allocation2 + $0x1d0] sm:$0xff]
    %v2620 = vld [vmem:[#allocation2 + $0x1d8] sm:$0xff]
    %v2621 = vld [vmem:[#allocation2 + $0x1e0] sm:$0xff]
    %v2622 = vld [vmem:[#allocation2 + $0x1e8] sm:$0xff]
    %v2623 = vld [vmem:[#allocation2 + $0x1f0] sm:$0xff]
    %v2624 = vld [vmem:[#allocation2 + $0x1f8] sm:$0xff]
    %v2625 = vld [vmem:[#allocation2 + $0x200] sm:$0xff]
    %v2626 = vld [vmem:[#allocation2 + $0x208] sm:$0xff]
    %v2627 = vld [vmem:[#allocation2 + $0x210] sm:$0xff]
    %v2628 = vld [vmem:[#allocation2 + $0x218] sm:$0xff]
    %v2629 = vld [vmem:[#allocation2 + $0x220] sm:$0xff]
    %v2630 = vld [vmem:[#allocation2 + $0x228] sm:$0xff]
    %v2631 = vld [vmem:[#allocation2 + $0x230] sm:$0xff]
    %v2632 = vld [vmem:[#allocation2 + $0x238] sm:$0xff]
    %v2633 = vld [vmem:[#allocation2 + $0x240] sm:$0xff]
    %v2634 = vld [vmem:[#allocation2 + $0x248] sm:$0xff]
    %v2635 = vld [vmem:[#allocation2 + $0x250] sm:$0xff]
    %v2636 = vld [vmem:[#allocation2 + $0x258] sm:$0xff]
    %v2637 = vld [vmem:[#allocation2 + $0x260] sm:$0xff]
    %v2638 = vld [vmem:[#allocation2 + $0x268] sm:$0xff]
    %v2639 = vld [vmem:[#allocation2 + $0x270] sm:$0xff]
    %v2640 = vld [vmem:[#allocation2 + $0x278] sm:$0xff]
    %v2641 = vld [vmem:[#allocation2 + $0x280] sm:$0xff]
    %v2642 = vld [vmem:[#allocation2 + $0x288] sm:$0xff]
    %v2643 = vld [vmem:[#allocation2 + $0x290] sm:$0xff]
    %v2644 = vld [vmem:[#allocation2 + $0x298] sm:$0xff]
    %v2645 = vld [vmem:[#allocation2 + $0x2a0] sm:$0xff]
    %v2646 = vld [vmem:[#allocation2 + $0x2a8] sm:$0xff]
    %v2647 = vld [vmem:[#allocation2 + $0x2b0] sm:$0xff]
    %s2648 = scalar_lea.vmem [#allocation9], 96
    %v2649 = vld [vmem:[%s2648] sm:$0xff]
    %v2650 = vld [vmem:[%s2648 + $0x8] sm:$0xff]
    %v2651 = vld [vmem:[%s2648 + $0x10] sm:$0xff]
    %v2652 = vld [vmem:[%s2648 + $0x18] sm:$0xff]
    %v2653 = vld [vmem:[%s2648 + $0x20] sm:$0xff]
    %v2654 = vld [vmem:[%s2648 + $0x28] sm:$0xff]
    %v2656 = vsel %vm1574, %v2563, 0
    %v2659 = vsel %vm1574, %v2564, 0
    %v2662 = vsel %vm1574, %v2565, 0
    %v2665 = vsel %vm1574, %v2566, 0
    %v2668 = vsel %vm1574, %v2567, 0
    %v2671 = vsel %vm1574, %v2568, 0
    %v2674 = vsel %vm1574, %v2569, 0
    %v2677 = vsel %vm1574, %v2570, 0
    %v2680 = vsel %vm1574, %v2571, 0
    %v2683 = vsel %vm1574, %v2572, 0
    %v2686 = vsel %vm1574, %v2573, 0
    %v2689 = vsel %vm1574, %v2574, 0
    %v2692 = vsel %vm1574, %v2575, 0
    %v2695 = vsel %vm1574, %v2576, 0
    %v2698 = vsel %vm1574, %v2577, 0
    %v2701 = vsel %vm1574, %v2578, 0
    %v2704 = vsel %vm1574, %v2579, 0
    %v2707 = vsel %vm1574, %v2580, 0
    %v2710 = vsel %vm1574, %v2581, 0
    %v2713 = vsel %vm1574, %v2582, 0
    %v2716 = vsel %vm1574, %v2583, 0
    %v2719 = vsel %vm1574, %v2584, 0
    %v2722 = vsel %vm1574, %v2585, 0
    %v2725 = vsel %vm1574, %v2586, 0
    %v2728 = vsel %vm1574, %v2587, 0
    %v2731 = vsel %vm1574, %v2588, 0
    %v2734 = vsel %vm1574, %v2589, 0
    %v2737 = vsel %vm1574, %v2590, 0
    %v2740 = vsel %vm1574, %v2591, 0
    %v2743 = vsel %vm1574, %v2592, 0
    %v2746 = vsel %vm1574, %v2593, 0
    %v2749 = vsel %vm1574, %v2594, 0
    %v2752 = vsel %vm1574, %v2595, 0
    %v2755 = vsel %vm1574, %v2596, 0
    %v2758 = vsel %vm1574, %v2597, 0
    %v2761 = vsel %vm1574, %v2598, 0
    %v2764 = vsel %vm1574, %v2599, 0
    %v2767 = vsel %vm1574, %v2600, 0
    %v2770 = vsel %vm1574, %v2601, 0
    %v2773 = vsel %vm1574, %v2602, 0
    %v2776 = vsel %vm1574, %v2603, 0
    %v2779 = vsel %vm1574, %v2604, 0
    %v2782 = vsel %vm1574, %v2605, 0
    %v2785 = vsel %vm1574, %v2606, 0
    %v2788 = vsel %vm1574, %v2607, 0
    %v2791 = vsel %vm1574, %v2608, 0
    %v2794 = vsel %vm1574, %v2609, 0
    %v2797 = vsel %vm1574, %v2610, 0
    %v2800 = vsel %vm1574, %v2611, 0
    %v2803 = vsel %vm1574, %v2612, 0
    %v2806 = vsel %vm1574, %v2613, 0
    %v2809 = vsel %vm1574, %v2614, 0
    %v2812 = vsel %vm1574, %v2615, 0
    %v2815 = vsel %vm1574, %v2616, 0
    %v2818 = vsel %vm1574, %v2617, 0
    %v2821 = vsel %vm1574, %v2618, 0
    %v2824 = vsel %vm1574, %v2619, 0
    %v2827 = vsel %vm1574, %v2620, 0
    %v2830 = vsel %vm1574, %v2621, 0
    %v2833 = vsel %vm1574, %v2622, 0
    %v2836 = vsel %vm1574, %v2623, 0
    %v2839 = vsel %vm1574, %v2624, 0
    %v2842 = vsel %vm1574, %v2625, 0
    %v2845 = vsel %vm1574, %v2626, 0
    %v2848 = vsel %vm1574, %v2627, 0
    %v2851 = vsel %vm1574, %v2628, 0
    %v2854 = vsel %vm1574, %v2629, 0
    %v2857 = vsel %vm1574, %v2630, 0
    %v2860 = vsel %vm1574, %v2631, 0
    %v2863 = vsel %vm1574, %v2632, 0
    %v2866 = vsel %vm1574, %v2633, 0
    %v2869 = vsel %vm1574, %v2634, 0
    %v2872 = vsel %vm1574, %v2635, 0
    %v2875 = vsel %vm1574, %v2636, 0
    %v2878 = vsel %vm1574, %v2637, 0
    %v2881 = vsel %vm1574, %v2638, 0
    %v2884 = vsel %vm1574, %v2639, 0
    %v2887 = vsel %vm1574, %v2640, 0
    %v2890 = vsel %vm1574, %v2641, 0
    %v2893 = vsel %vm1574, %v2642, 0
    %v2896 = vsel %vm1574, %v2643, 0
    %v2899 = vsel %vm1574, %v2644, 0
    %v2902 = vsel %vm1574, %v2645, 0
    %v2905 = vsel %vm1574, %v2646, 0
    %v2908 = vsel %vm1574, %v2647, 0
    %2910 = vmatpush.msra.mxu0 0.0
    %2911 = vmatpush.msra.mxu0 0.0
    %2912 = vmatpush.msra.mxu0 0.0
    %2913 = vmatpush.msra.mxu0 0.0
    %2914 = vmatpush.msra.mxu0 0.0
    %2915 = vmatpush.msra.mxu0 0.0
    %2916 = vmatpush.msra.mxu0 0.0
    %2917 = vmatpush.msra.mxu0 0.0
    %2918 = vmatpush.msra.mxu0 0.0
    %2919 = vmatpush.msra.mxu0 0.0
    %2920 = vmatpush.msra.mxu0 %v2654
    %2921 = vmatpush.msra.mxu0 %v2653
    %2922 = vmatpush.msra.mxu0 %v2652
    %2923 = vmatpush.msra.mxu0 %v2651
    %2924 = vmatpush.msra.mxu0 %v2650
    %2925 = vmatpush.msra.mxu0 %v2649
    %2926 = vmatmul.f32.gmra.mxu0 %v2656
    %v2927 = vpop.f32.mrf.mxu0
    %v2928 = vadd.f32 0.0, %v2927
    %2929 = vmatmul.f32.gmra.mxu0 %v2659
    %v2930 = vpop.f32.mrf.mxu0
    %v2931 = vadd.f32 0.0, %v2930
    %2932 = vmatmul.f32.gmra.mxu0 %v2662
    %v2933 = vpop.f32.mrf.mxu0
    %v2934 = vadd.f32 0.0, %v2933
    %2935 = vmatmul.f32.gmra.mxu0 %v2665
    %v2936 = vpop.f32.mrf.mxu0
    %v2937 = vadd.f32 0.0, %v2936
    %2938 = vmatmul.f32.gmra.mxu0 %v2668
    %v2939 = vpop.f32.mrf.mxu0
    %v2940 = vadd.f32 0.0, %v2939
    %2941 = vmatmul.f32.gmra.mxu0 %v2671
    %v2942 = vpop.f32.mrf.mxu0
    %v2943 = vadd.f32 0.0, %v2942
    %2944 = vmatmul.f32.gmra.mxu0 %v2674
    %v2945 = vpop.f32.mrf.mxu0
    %v2946 = vadd.f32 0.0, %v2945
    %2947 = vmatmul.f32.gmra.mxu0 %v2677
    %v2948 = vpop.f32.mrf.mxu0
    %v2949 = vadd.f32 0.0, %v2948
    %2950 = vmatmul.f32.gmra.mxu0 %v2680
    %v2951 = vpop.f32.mrf.mxu0
    %v2952 = vadd.f32 0.0, %v2951
    %2953 = vmatmul.f32.gmra.mxu0 %v2683
    %v2954 = vpop.f32.mrf.mxu0
    %v2955 = vadd.f32 0.0, %v2954
    %2956 = vmatmul.f32.gmra.mxu0 %v2686
    %v2957 = vpop.f32.mrf.mxu0
    %v2958 = vadd.f32 0.0, %v2957
    %2959 = vmatmul.f32.gmra.mxu0 %v2689
    %v2960 = vpop.f32.mrf.mxu0
    %v2961 = vadd.f32 0.0, %v2960
    %2962 = vmatmul.f32.gmra.mxu0 %v2692
    %v2963 = vpop.f32.mrf.mxu0
    %v2964 = vadd.f32 0.0, %v2963
    %2965 = vmatmul.f32.gmra.mxu0 %v2695
    %v2966 = vpop.f32.mrf.mxu0
    %v2967 = vadd.f32 0.0, %v2966
    %2968 = vmatmul.f32.gmra.mxu0 %v2698
    %v2969 = vpop.f32.mrf.mxu0
    %v2970 = vadd.f32 0.0, %v2969
    %2971 = vmatmul.f32.gmra.mxu0 %v2701
    %v2972 = vpop.f32.mrf.mxu0
    %v2973 = vadd.f32 0.0, %v2972
    %2974 = vmatmul.f32.gmra.mxu0 %v2704
    %v2975 = vpop.f32.mrf.mxu0
    %v2976 = vadd.f32 0.0, %v2975
    %2977 = vmatmul.f32.gmra.mxu0 %v2707
    %v2978 = vpop.f32.mrf.mxu0
    %v2979 = vadd.f32 0.0, %v2978
    %2980 = vmatmul.f32.gmra.mxu0 %v2710
    %v2981 = vpop.f32.mrf.mxu0
    %v2982 = vadd.f32 0.0, %v2981
    %2983 = vmatmul.f32.gmra.mxu0 %v2713
    %v2984 = vpop.f32.mrf.mxu0
    %v2985 = vadd.f32 0.0, %v2984
    %2986 = vmatmul.f32.gmra.mxu0 %v2716
    %v2987 = vpop.f32.mrf.mxu0
    %v2988 = vadd.f32 0.0, %v2987
    %2989 = vmatmul.f32.gmra.mxu0 %v2719
    %v2990 = vpop.f32.mrf.mxu0
    %v2991 = vadd.f32 0.0, %v2990
    %2992 = vmatmul.f32.gmra.mxu0 %v2722
    %v2993 = vpop.f32.mrf.mxu0
    %v2994 = vadd.f32 0.0, %v2993
    %2995 = vmatmul.f32.gmra.mxu0 %v2725
    %v2996 = vpop.f32.mrf.mxu0
    %v2997 = vadd.f32 0.0, %v2996
    %2998 = vmatmul.f32.gmra.mxu0 %v2728
    %v2999 = vpop.f32.mrf.mxu0
    %v3000 = vadd.f32 0.0, %v2999
    %3001 = vmatmul.f32.gmra.mxu0 %v2731
    %v3002 = vpop.f32.mrf.mxu0
    %v3003 = vadd.f32 0.0, %v3002
    %3004 = vmatmul.f32.gmra.mxu0 %v2734
    %v3005 = vpop.f32.mrf.mxu0
    %v3006 = vadd.f32 0.0, %v3005
    %3007 = vmatmul.f32.gmra.mxu0 %v2737
    %v3008 = vpop.f32.mrf.mxu0
    %v3009 = vadd.f32 0.0, %v3008
    %3010 = vmatmul.f32.gmra.mxu0 %v2740
    %v3011 = vpop.f32.mrf.mxu0
    %v3012 = vadd.f32 0.0, %v3011
    %3013 = vmatmul.f32.gmra.mxu0 %v2743
    %v3014 = vpop.f32.mrf.mxu0
    %v3015 = vadd.f32 0.0, %v3014
    %3016 = vmatmul.f32.gmra.mxu0 %v2746
    %v3017 = vpop.f32.mrf.mxu0
    %v3018 = vadd.f32 0.0, %v3017
    %3019 = vmatmul.f32.gmra.mxu0 %v2749
    %v3020 = vpop.f32.mrf.mxu0
    %v3021 = vadd.f32 0.0, %v3020
    %3022 = vmatmul.f32.gmra.mxu0 %v2752
    %v3023 = vpop.f32.mrf.mxu0
    %v3024 = vadd.f32 0.0, %v3023
    %3025 = vmatmul.f32.gmra.mxu0 %v2755
    %v3026 = vpop.f32.mrf.mxu0
    %v3027 = vadd.f32 0.0, %v3026
    %3028 = vmatmul.f32.gmra.mxu0 %v2758
    %v3029 = vpop.f32.mrf.mxu0
    %v3030 = vadd.f32 0.0, %v3029
    %3031 = vmatmul.f32.gmra.mxu0 %v2761
    %v3032 = vpop.f32.mrf.mxu0
    %v3033 = vadd.f32 0.0, %v3032
    %3034 = vmatmul.f32.gmra.mxu0 %v2764
    %v3035 = vpop.f32.mrf.mxu0
    %v3036 = vadd.f32 0.0, %v3035
    %3037 = vmatmul.f32.gmra.mxu0 %v2767
    %v3038 = vpop.f32.mrf.mxu0
    %v3039 = vadd.f32 0.0, %v3038
    %3040 = vmatmul.f32.gmra.mxu0 %v2770
    %v3041 = vpop.f32.mrf.mxu0
    %v3042 = vadd.f32 0.0, %v3041
    %3043 = vmatmul.f32.gmra.mxu0 %v2773
    %v3044 = vpop.f32.mrf.mxu0
    %v3045 = vadd.f32 0.0, %v3044
    %3046 = vmatmul.f32.gmra.mxu0 %v2776
    %v3047 = vpop.f32.mrf.mxu0
    %v3048 = vadd.f32 0.0, %v3047
    %3049 = vmatmul.f32.gmra.mxu0 %v2779
    %v3050 = vpop.f32.mrf.mxu0
    %v3051 = vadd.f32 0.0, %v3050
    %3052 = vmatmul.f32.gmra.mxu0 %v2782
    %v3053 = vpop.f32.mrf.mxu0
    %v3054 = vadd.f32 0.0, %v3053
    %3055 = vmatmul.f32.gmra.mxu0 %v2785
    %v3056 = vpop.f32.mrf.mxu0
    %v3057 = vadd.f32 0.0, %v3056
    %3058 = vmatmul.f32.gmra.mxu0 %v2788
    %v3059 = vpop.f32.mrf.mxu0
    %v3060 = vadd.f32 0.0, %v3059
    %3061 = vmatmul.f32.gmra.mxu0 %v2791
    %v3062 = vpop.f32.mrf.mxu0
    %v3063 = vadd.f32 0.0, %v3062
    %3064 = vmatmul.f32.gmra.mxu0 %v2794
    %v3065 = vpop.f32.mrf.mxu0
    %v3066 = vadd.f32 0.0, %v3065
    %3067 = vmatmul.f32.gmra.mxu0 %v2797
    %v3068 = vpop.f32.mrf.mxu0
    %v3069 = vadd.f32 0.0, %v3068
    %3070 = vmatmul.f32.gmra.mxu0 %v2800
    %v3071 = vpop.f32.mrf.mxu0
    %v3072 = vadd.f32 0.0, %v3071
    %3073 = vmatmul.f32.gmra.mxu0 %v2803
    %v3074 = vpop.f32.mrf.mxu0
    %v3075 = vadd.f32 0.0, %v3074
    %3076 = vmatmul.f32.gmra.mxu0 %v2806
    %v3077 = vpop.f32.mrf.mxu0
    %v3078 = vadd.f32 0.0, %v3077
    %3079 = vmatmul.f32.gmra.mxu0 %v2809
    %v3080 = vpop.f32.mrf.mxu0
    %v3081 = vadd.f32 0.0, %v3080
    %3082 = vmatmul.f32.gmra.mxu0 %v2812
    %v3083 = vpop.f32.mrf.mxu0
    %v3084 = vadd.f32 0.0, %v3083
    %3085 = vmatmul.f32.gmra.mxu0 %v2815
    %v3086 = vpop.f32.mrf.mxu0
    %v3087 = vadd.f32 0.0, %v3086
    %3088 = vmatmul.f32.gmra.mxu0 %v2818
    %v3089 = vpop.f32.mrf.mxu0
    %v3090 = vadd.f32 0.0, %v3089
    %3091 = vmatmul.f32.gmra.mxu0 %v2821
    %v3092 = vpop.f32.mrf.mxu0
    %v3093 = vadd.f32 0.0, %v3092
    %3094 = vmatmul.f32.gmra.mxu0 %v2824
    %v3095 = vpop.f32.mrf.mxu0
    %v3096 = vadd.f32 0.0, %v3095
    %3097 = vmatmul.f32.gmra.mxu0 %v2827
    %v3098 = vpop.f32.mrf.mxu0
    %v3099 = vadd.f32 0.0, %v3098
    %3100 = vmatmul.f32.gmra.mxu0 %v2830
    %v3101 = vpop.f32.mrf.mxu0
    %v3102 = vadd.f32 0.0, %v3101
    %3103 = vmatmul.f32.gmra.mxu0 %v2833
    %v3104 = vpop.f32.mrf.mxu0
    %v3105 = vadd.f32 0.0, %v3104
    %3106 = vmatmul.f32.gmra.mxu0 %v2836
    %v3107 = vpop.f32.mrf.mxu0
    %v3108 = vadd.f32 0.0, %v3107
    %3109 = vmatmul.f32.gmra.mxu0 %v2839
    %v3110 = vpop.f32.mrf.mxu0
    %v3111 = vadd.f32 0.0, %v3110
    %3112 = vmatmul.f32.gmra.mxu0 %v2842
    %v3113 = vpop.f32.mrf.mxu0
    %v3114 = vadd.f32 0.0, %v3113
    %3115 = vmatmul.f32.gmra.mxu0 %v2845
    %v3116 = vpop.f32.mrf.mxu0
    %v3117 = vadd.f32 0.0, %v3116
    %3118 = vmatmul.f32.gmra.mxu0 %v2848
    %v3119 = vpop.f32.mrf.mxu0
    %v3120 = vadd.f32 0.0, %v3119
    %3121 = vmatmul.f32.gmra.mxu0 %v2851
    %v3122 = vpop.f32.mrf.mxu0
    %v3123 = vadd.f32 0.0, %v3122
    %3124 = vmatmul.f32.gmra.mxu0 %v2854
    %v3125 = vpop.f32.mrf.mxu0
    %v3126 = vadd.f32 0.0, %v3125
    %3127 = vmatmul.f32.gmra.mxu0 %v2857
    %v3128 = vpop.f32.mrf.mxu0
    %v3129 = vadd.f32 0.0, %v3128
    %3130 = vmatmul.f32.gmra.mxu0 %v2860
    %v3131 = vpop.f32.mrf.mxu0
    %v3132 = vadd.f32 0.0, %v3131
    %3133 = vmatmul.f32.gmra.mxu0 %v2863
    %v3134 = vpop.f32.mrf.mxu0
    %v3135 = vadd.f32 0.0, %v3134
    %3136 = vmatmul.f32.gmra.mxu0 %v2866
    %v3137 = vpop.f32.mrf.mxu0
    %v3138 = vadd.f32 0.0, %v3137
    %3139 = vmatmul.f32.gmra.mxu0 %v2869
    %v3140 = vpop.f32.mrf.mxu0
    %v3141 = vadd.f32 0.0, %v3140
    %3142 = vmatmul.f32.gmra.mxu0 %v2872
    %v3143 = vpop.f32.mrf.mxu0
    %v3144 = vadd.f32 0.0, %v3143
    %3145 = vmatmul.f32.gmra.mxu0 %v2875
    %v3146 = vpop.f32.mrf.mxu0
    %v3147 = vadd.f32 0.0, %v3146
    %3148 = vmatmul.f32.gmra.mxu0 %v2878
    %v3149 = vpop.f32.mrf.mxu0
    %v3150 = vadd.f32 0.0, %v3149
    %3151 = vmatmul.f32.gmra.mxu0 %v2881
    %v3152 = vpop.f32.mrf.mxu0
    %v3153 = vadd.f32 0.0, %v3152
    %3154 = vmatmul.f32.gmra.mxu0 %v2884
    %v3155 = vpop.f32.mrf.mxu0
    %v3156 = vadd.f32 0.0, %v3155
    %3157 = vmatmul.f32.gmra.mxu0 %v2887
    %v3158 = vpop.f32.mrf.mxu0
    %v3159 = vadd.f32 0.0, %v3158
    %3160 = vmatmul.f32.gmra.mxu0 %v2890
    %v3161 = vpop.f32.mrf.mxu0
    %v3162 = vadd.f32 0.0, %v3161
    %3163 = vmatmul.f32.gmra.mxu0 %v2893
    %v3164 = vpop.f32.mrf.mxu0
    %v3165 = vadd.f32 0.0, %v3164
    %3166 = vmatmul.f32.gmra.mxu0 %v2896
    %v3167 = vpop.f32.mrf.mxu0
    %v3168 = vadd.f32 0.0, %v3167
    %3169 = vmatmul.f32.gmra.mxu0 %v2899
    %v3170 = vpop.f32.mrf.mxu0
    %v3171 = vadd.f32 0.0, %v3170
    %3172 = vmatmul.f32.gmra.mxu0 %v2902
    %v3173 = vpop.f32.mrf.mxu0
    %v3174 = vadd.f32 0.0, %v3173
    %3175 = vmatmul.f32.gmra.mxu0 %v2905
    %v3176 = vpop.f32.mrf.mxu0
    %v3177 = vadd.f32 0.0, %v3176
    %3178 = vmatmul.f32.gmra.mxu0 %v2908
    %v3179 = vpop.f32.mrf.mxu0
    %v3180 = vadd.f32 0.0, %v3179
    %3181 = vdwg.mxu0
    %v3182 = vadd.f32 %v2309, %v2928
    %v3183 = vadd.f32 %v2312, %v2931
    %v3184 = vadd.f32 %v2315, %v2934
    %v3185 = vadd.f32 %v2318, %v2937
    %v3186 = vadd.f32 %v2321, %v2940
    %v3187 = vadd.f32 %v2324, %v2943
    %v3188 = vadd.f32 %v2327, %v2946
    %v3189 = vadd.f32 %v2330, %v2949
    %v3190 = vadd.f32 %v2333, %v2952
    %v3191 = vadd.f32 %v2336, %v2955
    %v3192 = vadd.f32 %v2339, %v2958
    %v3193 = vadd.f32 %v2342, %v2961
    %v3194 = vadd.f32 %v2345, %v2964
    %v3195 = vadd.f32 %v2348, %v2967
    %v3196 = vadd.f32 %v2351, %v2970
    %v3197 = vadd.f32 %v2354, %v2973
    %v3198 = vadd.f32 %v2357, %v2976
    %v3199 = vadd.f32 %v2360, %v2979
    %v3200 = vadd.f32 %v2363, %v2982
    %v3201 = vadd.f32 %v2366, %v2985
    %v3202 = vadd.f32 %v2369, %v2988
    %v3203 = vadd.f32 %v2372, %v2991
    %v3204 = vadd.f32 %v2375, %v2994
    %v3205 = vadd.f32 %v2378, %v2997
    %v3206 = vadd.f32 %v2381, %v3000
    %v3207 = vadd.f32 %v2384, %v3003
    %v3208 = vadd.f32 %v2387, %v3006
    %v3209 = vadd.f32 %v2390, %v3009
    %v3210 = vadd.f32 %v2393, %v3012
    %v3211 = vadd.f32 %v2396, %v3015
    %v3212 = vadd.f32 %v2399, %v3018
    %v3213 = vadd.f32 %v2402, %v3021
    %v3214 = vadd.f32 %v2405, %v3024
    %v3215 = vadd.f32 %v2408, %v3027
    %v3216 = vadd.f32 %v2411, %v3030
    %v3217 = vadd.f32 %v2414, %v3033
    %v3218 = vadd.f32 %v2417, %v3036
    %v3219 = vadd.f32 %v2420, %v3039
    %v3220 = vadd.f32 %v2423, %v3042
    %v3221 = vadd.f32 %v2426, %v3045
    %v3222 = vadd.f32 %v2429, %v3048
    %v3223 = vadd.f32 %v2432, %v3051
    %v3224 = vadd.f32 %v2435, %v3054
    %v3225 = vadd.f32 %v2438, %v3057
    %v3226 = vadd.f32 %v2441, %v3060
    %v3227 = vadd.f32 %v2444, %v3063
    %v3228 = vadd.f32 %v2447, %v3066
    %v3229 = vadd.f32 %v2450, %v3069
    %v3230 = vadd.f32 %v2453, %v3072
    %v3231 = vadd.f32 %v2456, %v3075
    %v3232 = vadd.f32 %v2459, %v3078
    %v3233 = vadd.f32 %v2462, %v3081
    %v3234 = vadd.f32 %v2465, %v3084
    %v3235 = vadd.f32 %v2468, %v3087
    %v3236 = vadd.f32 %v2471, %v3090
    %v3237 = vadd.f32 %v2474, %v3093
    %v3238 = vadd.f32 %v2477, %v3096
    %v3239 = vadd.f32 %v2480, %v3099
    %v3240 = vadd.f32 %v2483, %v3102
    %v3241 = vadd.f32 %v2486, %v3105
    %v3242 = vadd.f32 %v2489, %v3108
    %v3243 = vadd.f32 %v2492, %v3111
    %v3244 = vadd.f32 %v2495, %v3114
    %v3245 = vadd.f32 %v2498, %v3117
    %v3246 = vadd.f32 %v2501, %v3120
    %v3247 = vadd.f32 %v2504, %v3123
    %v3248 = vadd.f32 %v2507, %v3126
    %v3249 = vadd.f32 %v2510, %v3129
    %v3250 = vadd.f32 %v2513, %v3132
    %v3251 = vadd.f32 %v2516, %v3135
    %v3252 = vadd.f32 %v2519, %v3138
    %v3253 = vadd.f32 %v2522, %v3141
    %v3254 = vadd.f32 %v2525, %v3144
    %v3255 = vadd.f32 %v2528, %v3147
    %v3256 = vadd.f32 %v2531, %v3150
    %v3257 = vadd.f32 %v2534, %v3153
    %v3258 = vadd.f32 %v2537, %v3156
    %v3259 = vadd.f32 %v2540, %v3159
    %v3260 = vadd.f32 %v2543, %v3162
    %v3261 = vadd.f32 %v2546, %v3165
    %v3262 = vadd.f32 %v2549, %v3168
    %v3263 = vadd.f32 %v2552, %v3171
    %v3264 = vadd.f32 %v2555, %v3174
    %v3265 = vadd.f32 %v2558, %v3177
    %v3266 = vadd.f32 %v2561, %v3180
    %v3267 = vld [vmem:[#allocation10] sm:$0x1]
    %v3269 = vperm.slane %v3267, 0
    %v3271 = vadd.f32 %v3182, %v3269
    %v3272 = vadd.f32 %v3183, %v3269
    %v3273 = vadd.f32 %v3184, %v3269
    %v3274 = vadd.f32 %v3185, %v3269
    %v3275 = vadd.f32 %v3186, %v3269
    %v3276 = vadd.f32 %v3187, %v3269
    %v3277 = vadd.f32 %v3188, %v3269
    %v3278 = vadd.f32 %v3189, %v3269
    %v3279 = vadd.f32 %v3190, %v3269
    %v3280 = vadd.f32 %v3191, %v3269
    %v3281 = vadd.f32 %v3192, %v3269
    %v3282 = vadd.f32 %v3193, %v3269
    %v3283 = vadd.f32 %v3194, %v3269
    %v3284 = vadd.f32 %v3195, %v3269
    %v3285 = vadd.f32 %v3196, %v3269
    %v3286 = vadd.f32 %v3197, %v3269
    %v3287 = vadd.f32 %v3198, %v3269
    %v3288 = vadd.f32 %v3199, %v3269
    %v3289 = vadd.f32 %v3200, %v3269
    %v3290 = vadd.f32 %v3201, %v3269
    %v3291 = vadd.f32 %v3202, %v3269
    %v3292 = vadd.f32 %v3203, %v3269
    %v3293 = vadd.f32 %v3204, %v3269
    %v3294 = vadd.f32 %v3205, %v3269
    %v3295 = vadd.f32 %v3206, %v3269
    %v3296 = vadd.f32 %v3207, %v3269
    %v3297 = vadd.f32 %v3208, %v3269
    %v3298 = vadd.f32 %v3209, %v3269
    %v3299 = vadd.f32 %v3210, %v3269
    %v3300 = vadd.f32 %v3211, %v3269
    %v3301 = vadd.f32 %v3212, %v3269
    %v3302 = vadd.f32 %v3213, %v3269
    %v3303 = vadd.f32 %v3214, %v3269
    %v3304 = vadd.f32 %v3215, %v3269
    %v3305 = vadd.f32 %v3216, %v3269
    %v3306 = vadd.f32 %v3217, %v3269
    %v3307 = vadd.f32 %v3218, %v3269
    %v3308 = vadd.f32 %v3219, %v3269
    %v3309 = vadd.f32 %v3220, %v3269
    %v3310 = vadd.f32 %v3221, %v3269
    %v3311 = vadd.f32 %v3222, %v3269
    %v3312 = vadd.f32 %v3223, %v3269
    %v3313 = vadd.f32 %v3224, %v3269
    %v3314 = vadd.f32 %v3225, %v3269
    %v3315 = vadd.f32 %v3226, %v3269
    %v3316 = vadd.f32 %v3227, %v3269
    %v3317 = vadd.f32 %v3228, %v3269
    %v3318 = vadd.f32 %v3229, %v3269
    %v3319 = vadd.f32 %v3230, %v3269
    %v3320 = vadd.f32 %v3231, %v3269
    %v3321 = vadd.f32 %v3232, %v3269
    %v3322 = vadd.f32 %v3233, %v3269
    %v3323 = vadd.f32 %v3234, %v3269
    %v3324 = vadd.f32 %v3235, %v3269
    %v3325 = vadd.f32 %v3236, %v3269
    %v3326 = vadd.f32 %v3237, %v3269
    %v3327 = vadd.f32 %v3238, %v3269
    %v3328 = vadd.f32 %v3239, %v3269
    %v3329 = vadd.f32 %v3240, %v3269
    %v3330 = vadd.f32 %v3241, %v3269
    %v3331 = vadd.f32 %v3242, %v3269
    %v3332 = vadd.f32 %v3243, %v3269
    %v3333 = vadd.f32 %v3244, %v3269
    %v3334 = vadd.f32 %v3245, %v3269
    %v3335 = vadd.f32 %v3246, %v3269
    %v3336 = vadd.f32 %v3247, %v3269
    %v3337 = vadd.f32 %v3248, %v3269
    %v3338 = vadd.f32 %v3249, %v3269
    %v3339 = vadd.f32 %v3250, %v3269
    %v3340 = vadd.f32 %v3251, %v3269
    %v3341 = vadd.f32 %v3252, %v3269
    %v3342 = vadd.f32 %v3253, %v3269
    %v3343 = vadd.f32 %v3254, %v3269
    %v3344 = vadd.f32 %v3255, %v3269
    %v3345 = vadd.f32 %v3256, %v3269
    %v3346 = vadd.f32 %v3257, %v3269
    %v3347 = vadd.f32 %v3258, %v3269
    %v3348 = vadd.f32 %v3259, %v3269
    %v3349 = vadd.f32 %v3260, %v3269
    %v3350 = vadd.f32 %v3261, %v3269
    %v3351 = vadd.f32 %v3262, %v3269
    %v3352 = vadd.f32 %v3263, %v3269
    %v3353 = vadd.f32 %v3264, %v3269
    %v3354 = vadd.f32 %v3265, %v3269
    %v3355 = vadd.f32 %v3266, %v3269
    %v3356 = vmax.f32 %v3271, 0.0
    %v3357 = vmax.f32 %v3272, 0.0
    %v3358 = vmax.f32 %v3273, 0.0
    %v3359 = vmax.f32 %v3274, 0.0
    %v3360 = vmax.f32 %v3275, 0.0
    %v3361 = vmax.f32 %v3276, 0.0
    %v3362 = vmax.f32 %v3277, 0.0
    %v3363 = vmax.f32 %v3278, 0.0
    %v3364 = vmax.f32 %v3279, 0.0
    %v3365 = vmax.f32 %v3280, 0.0
    %v3366 = vmax.f32 %v3281, 0.0
    %v3367 = vmax.f32 %v3282, 0.0
    %v3368 = vmax.f32 %v3283, 0.0
    %v3369 = vmax.f32 %v3284, 0.0
    %v3370 = vmax.f32 %v3285, 0.0
    %v3371 = vmax.f32 %v3286, 0.0
    %v3372 = vmax.f32 %v3287, 0.0
    %v3373 = vmax.f32 %v3288, 0.0
    %v3374 = vmax.f32 %v3289, 0.0
    %v3375 = vmax.f32 %v3290, 0.0
    %v3376 = vmax.f32 %v3291, 0.0
    %v3377 = vmax.f32 %v3292, 0.0
    %v3378 = vmax.f32 %v3293, 0.0
    %v3379 = vmax.f32 %v3294, 0.0
    %v3380 = vmax.f32 %v3295, 0.0
    %v3381 = vmax.f32 %v3296, 0.0
    %v3382 = vmax.f32 %v3297, 0.0
    %v3383 = vmax.f32 %v3298, 0.0
    %v3384 = vmax.f32 %v3299, 0.0
    %v3385 = vmax.f32 %v3300, 0.0
    %v3386 = vmax.f32 %v3301, 0.0
    %v3387 = vmax.f32 %v3302, 0.0
    %v3388 = vmax.f32 %v3303, 0.0
    %v3389 = vmax.f32 %v3304, 0.0
    %v3390 = vmax.f32 %v3305, 0.0
    %v3391 = vmax.f32 %v3306, 0.0
    %v3392 = vmax.f32 %v3307, 0.0
    %v3393 = vmax.f32 %v3308, 0.0
    %v3394 = vmax.f32 %v3309, 0.0
    %v3395 = vmax.f32 %v3310, 0.0
    %v3396 = vmax.f32 %v3311, 0.0
    %v3397 = vmax.f32 %v3312, 0.0
    %v3398 = vmax.f32 %v3313, 0.0
    %v3399 = vmax.f32 %v3314, 0.0
    %v3400 = vmax.f32 %v3315, 0.0
    %v3401 = vmax.f32 %v3316, 0.0
    %v3402 = vmax.f32 %v3317, 0.0
    %v3403 = vmax.f32 %v3318, 0.0
    %v3404 = vmax.f32 %v3319, 0.0
    %v3405 = vmax.f32 %v3320, 0.0
    %v3406 = vmax.f32 %v3321, 0.0
    %v3407 = vmax.f32 %v3322, 0.0
    %v3408 = vmax.f32 %v3323, 0.0
    %v3409 = vmax.f32 %v3324, 0.0
    %v3410 = vmax.f32 %v3325, 0.0
    %v3411 = vmax.f32 %v3326, 0.0
    %v3412 = vmax.f32 %v3327, 0.0
    %v3413 = vmax.f32 %v3328, 0.0
    %v3414 = vmax.f32 %v3329, 0.0
    %v3415 = vmax.f32 %v3330, 0.0
    %v3416 = vmax.f32 %v3331, 0.0
    %v3417 = vmax.f32 %v3332, 0.0
    %v3418 = vmax.f32 %v3333, 0.0
    %v3419 = vmax.f32 %v3334, 0.0
    %v3420 = vmax.f32 %v3335, 0.0
    %v3421 = vmax.f32 %v3336, 0.0
    %v3422 = vmax.f32 %v3337, 0.0
    %v3423 = vmax.f32 %v3338, 0.0
    %v3424 = vmax.f32 %v3339, 0.0
    %v3425 = vmax.f32 %v3340, 0.0
    %v3426 = vmax.f32 %v3341, 0.0
    %v3427 = vmax.f32 %v3342, 0.0
    %v3428 = vmax.f32 %v3343, 0.0
    %v3429 = vmax.f32 %v3344, 0.0
    %v3430 = vmax.f32 %v3345, 0.0
    %v3431 = vmax.f32 %v3346, 0.0
    %v3432 = vmax.f32 %v3347, 0.0
    %v3433 = vmax.f32 %v3348, 0.0
    %v3434 = vmax.f32 %v3349, 0.0
    %v3435 = vmax.f32 %v3350, 0.0
    %v3436 = vmax.f32 %v3351, 0.0
    %v3437 = vmax.f32 %v3352, 0.0
    %v3438 = vmax.f32 %v3353, 0.0
    %v3439 = vmax.f32 %v3354, 0.0
    %v3440 = vmax.f32 %v3355, 0.0
    %vm3441 = vcmask 785408
    %3442 = vst.msk [vmem:[#allocation3] sm:$0xff] %vm3441, %v3356
    %3443 = vst.msk [vmem:[#allocation3 + $0x8] sm:$0xff] %vm3441, %v3357
    %3444 = vst.msk [vmem:[#allocation3 + $0x10] sm:$0xff] %vm3441, %v3358
    %3445 = vst.msk [vmem:[#allocation3 + $0x18] sm:$0xff] %vm3441, %v3359
    %3446 = vst.msk [vmem:[#allocation3 + $0x20] sm:$0xff] %vm3441, %v3360
    %3447 = vst.msk [vmem:[#allocation3 + $0x28] sm:$0xff] %vm3441, %v3361
    %3448 = vst.msk [vmem:[#allocation3 + $0x30] sm:$0xff] %vm3441, %v3362
    %3449 = vst.msk [vmem:[#allocation3 + $0x38] sm:$0xff] %vm3441, %v3363
    %3450 = vst.msk [vmem:[#allocation3 + $0x40] sm:$0xff] %vm3441, %v3364
    %3451 = vst.msk [vmem:[#allocation3 + $0x48] sm:$0xff] %vm3441, %v3365
    %3452 = vst.msk [vmem:[#allocation3 + $0x50] sm:$0xff] %vm3441, %v3366
    %3453 = vst.msk [vmem:[#allocation3 + $0x58] sm:$0xff] %vm3441, %v3367
    %3454 = vst.msk [vmem:[#allocation3 + $0x60] sm:$0xff] %vm3441, %v3368
    %3455 = vst.msk [vmem:[#allocation3 + $0x68] sm:$0xff] %vm3441, %v3369
    %3456 = vst.msk [vmem:[#allocation3 + $0x70] sm:$0xff] %vm3441, %v3370
    %3457 = vst.msk [vmem:[#allocation3 + $0x78] sm:$0xff] %vm3441, %v3371
    %3458 = vst.msk [vmem:[#allocation3 + $0x80] sm:$0xff] %vm3441, %v3372
    %3459 = vst.msk [vmem:[#allocation3 + $0x88] sm:$0xff] %vm3441, %v3373
    %3460 = vst.msk [vmem:[#allocation3 + $0x90] sm:$0xff] %vm3441, %v3374
    %3461 = vst.msk [vmem:[#allocation3 + $0x98] sm:$0xff] %vm3441, %v3375
    %3462 = vst.msk [vmem:[#allocation3 + $0xa0] sm:$0xff] %vm3441, %v3376
    %3463 = vst.msk [vmem:[#allocation3 + $0xa8] sm:$0xff] %vm3441, %v3377
    %3464 = vst.msk [vmem:[#allocation3 + $0xb0] sm:$0xff] %vm3441, %v3378
    %3465 = vst.msk [vmem:[#allocation3 + $0xb8] sm:$0xff] %vm3441, %v3379
    %3466 = vst.msk [vmem:[#allocation3 + $0xc0] sm:$0xff] %vm3441, %v3380
    %3467 = vst.msk [vmem:[#allocation3 + $0xc8] sm:$0xff] %vm3441, %v3381
    %3468 = vst.msk [vmem:[#allocation3 + $0xd0] sm:$0xff] %vm3441, %v3382
    %3469 = vst.msk [vmem:[#allocation3 + $0xd8] sm:$0xff] %vm3441, %v3383
    %3470 = vst.msk [vmem:[#allocation3 + $0xe0] sm:$0xff] %vm3441, %v3384
    %3471 = vst.msk [vmem:[#allocation3 + $0xe8] sm:$0xff] %vm3441, %v3385
    %3472 = vst.msk [vmem:[#allocation3 + $0xf0] sm:$0xff] %vm3441, %v3386
    %3473 = vst.msk [vmem:[#allocation3 + $0xf8] sm:$0xff] %vm3441, %v3387
    %3474 = vst.msk [vmem:[#allocation3 + $0x100] sm:$0xff] %vm3441, %v3388
    %3475 = vst.msk [vmem:[#allocation3 + $0x108] sm:$0xff] %vm3441, %v3389
    %3476 = vst.msk [vmem:[#allocation3 + $0x110] sm:$0xff] %vm3441, %v3390
    %3477 = vst.msk [vmem:[#allocation3 + $0x118] sm:$0xff] %vm3441, %v3391
    %3478 = vst.msk [vmem:[#allocation3 + $0x120] sm:$0xff] %vm3441, %v3392
    %3479 = vst.msk [vmem:[#allocation3 + $0x128] sm:$0xff] %vm3441, %v3393
    %3480 = vst.msk [vmem:[#allocation3 + $0x130] sm:$0xff] %vm3441, %v3394
    %3481 = vst.msk [vmem:[#allocation3 + $0x138] sm:$0xff] %vm3441, %v3395
    %3482 = vst.msk [vmem:[#allocation3 + $0x140] sm:$0xff] %vm3441, %v3396
    %3483 = vst.msk [vmem:[#allocation3 + $0x148] sm:$0xff] %vm3441, %v3397
    %3484 = vst.msk [vmem:[#allocation3 + $0x150] sm:$0xff] %vm3441, %v3398
    %3485 = vst.msk [vmem:[#allocation3 + $0x158] sm:$0xff] %vm3441, %v3399
    %3486 = vst.msk [vmem:[#allocation3 + $0x160] sm:$0xff] %vm3441, %v3400
    %3487 = vst.msk [vmem:[#allocation3 + $0x168] sm:$0xff] %vm3441, %v3401
    %3488 = vst.msk [vmem:[#allocation3 + $0x170] sm:$0xff] %vm3441, %v3402
    %3489 = vst.msk [vmem:[#allocation3 + $0x178] sm:$0xff] %vm3441, %v3403
    %3490 = vst.msk [vmem:[#allocation3 + $0x180] sm:$0xff] %vm3441, %v3404
    %3491 = vst.msk [vmem:[#allocation3 + $0x188] sm:$0xff] %vm3441, %v3405
    %3492 = vst.msk [vmem:[#allocation3 + $0x190] sm:$0xff] %vm3441, %v3406
    %3493 = vst.msk [vmem:[#allocation3 + $0x198] sm:$0xff] %vm3441, %v3407
    %3494 = vst.msk [vmem:[#allocation3 + $0x1a0] sm:$0xff] %vm3441, %v3408
    %3495 = vst.msk [vmem:[#allocation3 + $0x1a8] sm:$0xff] %vm3441, %v3409
    %3496 = vst.msk [vmem:[#allocation3 + $0x1b0] sm:$0xff] %vm3441, %v3410
    %3497 = vst.msk [vmem:[#allocation3 + $0x1b8] sm:$0xff] %vm3441, %v3411
    %3498 = vst.msk [vmem:[#allocation3 + $0x1c0] sm:$0xff] %vm3441, %v3412
    %3499 = vst.msk [vmem:[#allocation3 + $0x1c8] sm:$0xff] %vm3441, %v3413
    %3500 = vst.msk [vmem:[#allocation3 + $0x1d0] sm:$0xff] %vm3441, %v3414
    %3501 = vst.msk [vmem:[#allocation3 + $0x1d8] sm:$0xff] %vm3441, %v3415
    %3502 = vst.msk [vmem:[#allocation3 + $0x1e0] sm:$0xff] %vm3441, %v3416
    %3503 = vst.msk [vmem:[#allocation3 + $0x1e8] sm:$0xff] %vm3441, %v3417
    %3504 = vst.msk [vmem:[#allocation3 + $0x1f0] sm:$0xff] %vm3441, %v3418
    %3505 = vst.msk [vmem:[#allocation3 + $0x1f8] sm:$0xff] %vm3441, %v3419
    %3506 = vst.msk [vmem:[#allocation3 + $0x200] sm:$0xff] %vm3441, %v3420
    %3507 = vst.msk [vmem:[#allocation3 + $0x208] sm:$0xff] %vm3441, %v3421
    %3508 = vst.msk [vmem:[#allocation3 + $0x210] sm:$0xff] %vm3441, %v3422
    %3509 = vst.msk [vmem:[#allocation3 + $0x218] sm:$0xff] %vm3441, %v3423
    %3510 = vst.msk [vmem:[#allocation3 + $0x220] sm:$0xff] %vm3441, %v3424
    %3511 = vst.msk [vmem:[#allocation3 + $0x228] sm:$0xff] %vm3441, %v3425
    %3512 = vst.msk [vmem:[#allocation3 + $0x230] sm:$0xff] %vm3441, %v3426
    %3513 = vst.msk [vmem:[#allocation3 + $0x238] sm:$0xff] %vm3441, %v3427
    %3514 = vst.msk [vmem:[#allocation3 + $0x240] sm:$0xff] %vm3441, %v3428
    %3515 = vst.msk [vmem:[#allocation3 + $0x248] sm:$0xff] %vm3441, %v3429
    %3516 = vst.msk [vmem:[#allocation3 + $0x250] sm:$0xff] %vm3441, %v3430
    %3517 = vst.msk [vmem:[#allocation3 + $0x258] sm:$0xff] %vm3441, %v3431
    %3518 = vst.msk [vmem:[#allocation3 + $0x260] sm:$0xff] %vm3441, %v3432
    %3519 = vst.msk [vmem:[#allocation3 + $0x268] sm:$0xff] %vm3441, %v3433
    %3520 = vst.msk [vmem:[#allocation3 + $0x270] sm:$0xff] %vm3441, %v3434
    %3521 = vst.msk [vmem:[#allocation3 + $0x278] sm:$0xff] %vm3441, %v3435
    %3522 = vst.msk [vmem:[#allocation3 + $0x280] sm:$0xff] %vm3441, %v3436
    %3523 = vst.msk [vmem:[#allocation3 + $0x288] sm:$0xff] %vm3441, %v3437
    %3524 = vst.msk [vmem:[#allocation3 + $0x290] sm:$0xff] %vm3441, %v3438
    %3525 = vst.msk [vmem:[#allocation3 + $0x298] sm:$0xff] %vm3441, %v3439
    %3526 = vst.msk [vmem:[#allocation3 + $0x2a0] sm:$0xff] %vm3441, %v3440
    loop: start=0, step=1, limit=85
    $region66: #{my_cnn_forward.1} parent=1 // loop_pre_header
      _
    $region67: #{my_cnn_forward.1} parent=1 // loop_header
      %s3528 = sphi 0, %s3532
      %p3529 = scmp.ge.s32.totalorder %s3528, 85
      %v3533 = vphi 0.0, %v3574
    $region68: #{my_cnn_forward.1} parent=1 // loop_header_branch
      %3531 = sbr.rel (%p3529) target = $region72
    $region69: #{my_cnn_forward.1} parent=1 // loop_body
      %s3534 = smul.u32 %s3528, 8
      %s3535 = scalar_lea.vmem [#allocation3], %s3534
      %v3536 = vld [vmem:[%s3535] sm:$0xff]
      %s3537 = smul.u32 %s3528, 96
      %s3538 = scalar_lea.vmem [#allocation12], %s3537
      %v3539 = vld [vmem:[%s3538] sm:$0xff]
      %v3540 = vld [vmem:[%s3538 + $0x8] sm:$0xff]
      %v3541 = vld [vmem:[%s3538 + $0x10] sm:$0xff]
      %v3542 = vld [vmem:[%s3538 + $0x18] sm:$0xff]
      %v3543 = vld [vmem:[%s3538 + $0x20] sm:$0xff]
      %v3544 = vld [vmem:[%s3538 + $0x28] sm:$0xff]
      %v3545 = vld [vmem:[%s3538 + $0x30] sm:$0xff]
      %v3546 = vld [vmem:[%s3538 + $0x38] sm:$0xff]
      %v3547 = vld [vmem:[%s3538 + $0x40] sm:$0xff]
      %v3548 = vld [vmem:[%s3538 + $0x48] sm:$0xff]
      %v3549 = vld [vmem:[%s3538 + $0x50] sm:$0xff]
      %v3550 = vld [vmem:[%s3538 + $0x58] sm:$0xff]
      %v3552 = vsel %vm3441, %v3536, 0
      %3554 = vmatpush.msra.mxu0 0.0
      %3555 = vmatpush.msra.mxu0 0.0
      %3556 = vmatpush.msra.mxu0 0.0
      %3557 = vmatpush.msra.mxu0 0.0
      %3558 = vmatpush.msra.mxu0 %v3550
      %3559 = vmatpush.msra.mxu0 %v3549
      %3560 = vmatpush.msra.mxu0 %v3548
      %3561 = vmatpush.msra.mxu0 %v3547
      %3562 = vmatpush.msra.mxu0 %v3546
      %3563 = vmatpush.msra.mxu0 %v3545
      %3564 = vmatpush.msra.mxu0 %v3544
      %3565 = vmatpush.msra.mxu0 %v3543
      %3566 = vmatpush.msra.mxu0 %v3542
      %3567 = vmatpush.msra.mxu0 %v3541
      %3568 = vmatpush.msra.mxu0 %v3540
      %3569 = vmatpush.msra.mxu0 %v3539
      %3570 = vmatmul.f32.gmra.mxu0 %v3552
      %v3571 = vpop.f32.mrf.mxu0
      %v3572 = vadd.f32 0.0, %v3571
      %3573 = vdwg.mxu0
      %v3574 = vadd.f32 %v3533, %v3572
    $region70: #{my_cnn_forward.1} parent=1 // loop_footer
      %s3532 = sadd.s32 1, %s3528
    $region71: #{my_cnn_forward.1} parent=1 // loop_footer_branch
      %3527 = sbr.rel target = $region67
    $region72: #{my_cnn_forward.1} parent=1 // loop_exit
      _
    %v3575 = vld [vmem:[#allocation13] sm:$0x1]
    %v3577 = vperm.slane %v3575, 0
    %v3579 = vadd.f32 %v3533, %v3577
    %v3580 = vmax.f32 %v3579, 0.0
    %v3581 = vld [vmem:[#allocation15] sm:$0x1]
    %v3583 = vperm.slane %v3581, 0
    %v3585 = vmul.f32 %v3580, %v3583
    %3586 = vadd.xlane.f32.xlu0 %v3585
    %v3587 = vpop.xlane.xlu0 %3586
    %v3588 = vld [vmem:[#allocation4] sm:$0x1]
    %v3590 = vperm.slane %v3588, 0
    %v3592 = vadd.f32 %v3587, %v3590
    %vm3593 = vcmask 7168
    %3594 = vst.msk [vmem:[%s9] sm:$0xff] %vm3593, %v3592
    // Predicated region
    $region73: #{my_cnn_forward.1} parent=1 // pred_check
      _
    $region74: #{my_cnn_forward.1} parent=1 // pred_check_branch
      %3596 = sbr.rel (0) target = $region76
    $region75: #{my_cnn_forward.1} parent=1 // pred_region
      _
    $region76: #{my_cnn_forward.1} parent=1 // pred_fallthru
      _
    // Predicated region
    $region77: #{my_cnn_forward.1} parent=1 // pred_check
      _
    $region78: #{my_cnn_forward.1} parent=1 // pred_check_branch
      %3598 = sbr.rel (0) target = $region80
    $region79: #{my_cnn_forward.1} parent=1 // pred_region
      _
    $region80: #{my_cnn_forward.1} parent=1 // pred_fallthru
      _
    %3599 = vsyncpa [#allocation6], 1
    %3600 = vsyncpa [#allocation8], 1
    %3601 = vsyncpa [#allocation11], 1
    %3602 = vsyncpa [#allocation14], 1

</llo_original>
